<compile_context>
chip_gen: v5e
topology: v5e:2x2
jax: 0.10.0
libtpu: 0.0.40
codegen_flags: <defaults>
</compile_context>

<pallas_src>
import functools

import jax
import jax.numpy as jnp
from jax import lax
from jax.experimental import pallas as pl
from jax.experimental.pallas import tpu as pltpu

EPS = 1e-5   # nn.InstanceNorm2d default eps
LANE = 128


def _round_up(x, m):
    return (x + m - 1) // m * m


def _halo_geom(H, W):
    """Flat zero-halo layout: interior pixel (i, j) lives at row BASE + i*PW + j."""
    PW = _round_up(W + 2, 8)                       # 8-aligned padded row pitch
    BASE = _round_up(PW + 1, 8)                    # 8-aligned interior origin (>= PW+1)
    NPR = _round_up(BASE + (H + 1) * PW + 1, 8)    # covers every shifted window read
    return PW, BASE, NPR


def _instance_norm(y, count, relu):
    # One-pass InstanceNorm (affine=False): sum & sum-of-squares in one sweep,
    # var = E[y^2] - mean^2, normalize (+ReLU) fused.  `count` = valid spatial
    # positions (H*W).  Zero-padded lane channels have sum = sumsq = 0 and stay 0.
    inv_cnt = 1.0 / count
    s = jnp.sum(y, axis=0, keepdims=True)
    ss = jnp.sum(y * y, axis=0, keepdims=True)
    mean = s * inv_cnt
    var = jnp.maximum(ss * inv_cnt - mean * mean, 0.0)
    inv = lax.rsqrt(var + EPS)
    out = y * inv - mean * inv
    return jnp.maximum(out, 0.0) if relu else out


def _bottleneck_kernel(x_ref, w1_ref, w2_ref, w3_ref, o_ref, pad_ref, *, H, W):
    cmp_ = pad_ref.shape[-1]                       # padded mid channels (Cmp)
    PW, BASE, _ = _halo_geom(H, W)
    HW = H * W
    cnt = float(HW)

    x = x_ref[0]                                   # (H*W, Cp) f32, lane-dense

    # ---- Conv2d(C, C/4, k=1) [bias cancels in InstanceNorm] + IN + ReLU
    a1 = jnp.dot(x.astype(jnp.bfloat16), w1_ref[...],
                 preferred_element_type=jnp.float32)
    a1 = _instance_norm(a1, cnt, relu=True)        # (H*W, Cmp) f32

    # ---- Stage the normalized activation into the flat 2D zero-halo scratch.
    #      Interior rows are 8-aligned writes; everything else stays zero.
    #      (Re-zeroed every step so megacore-sharded grids, each with their own
    #      scratch, remain correct.)
    pad_ref[...] = jnp.zeros(pad_ref.shape, pad_ref.dtype)
    # TODO(synk): for large H use lax.fori_loop / a strided store instead of an
    # unrolled Python loop.
    for i in range(H):
        r = BASE + i * PW
        pad_ref[r:r + W, :] = a1[i * W:(i + 1) * W, :]

    # ---- Conv2d(C/4, C/4, k=3, pad=1): 9 shifted contiguous row-window reads
    #      accumulated into one f32 accumulator (no im2col slab, no concatenate).
    #      Columns W..PW-1 of each image row are garbage and dropped below.
    acc = None
    for kh in range(3):
        for kw in range(3):
            s = BASE + (kh - 1) * PW + (kw - 1)
            win = pad_ref[s:s + H * PW, :].astype(jnp.bfloat16)   # (H*PW, Cmp)
            d = jnp.dot(win, w2_ref[kh * 3 + kw],
                        preferred_element_type=jnp.float32)
            acc = d if acc is None else acc + d
    a2 = acc.reshape(H, PW, cmp_)[:, :W, :].reshape(HW, cmp_)     # drop garbage cols
    a2 = _instance_norm(a2, cnt, relu=True)        # (H*W, Cmp) f32

    # ---- Conv2d(C/4, C, k=1) + InstanceNorm (no ReLU), then residual add.
    a3 = jnp.dot(a2.astype(jnp.bfloat16), w3_ref[...],
                 preferred_element_type=jnp.float32)
    a3 = _instance_norm(a3, cnt, relu=False)       # (H*W, Cp) f32

    o_ref[0] = (x + a3).astype(o_ref.dtype)        # lane-dense, unmasked store


def resnet_bottleneck_block(x_nchw, w1_pt, b1, w2_pt, b2, w3_pt, b3):
    """x_nchw: (N, C, H, W).  Weights in PyTorch Conv2d layout:
       w1_pt (C/4, C, 1, 1), b1 (C/4,), w2_pt (C/4, C/4, 3, 3), b2 (C/4,),
       w3_pt (C, C/4, 1, 1), b3 (C,).  Returns (N, C, H, W)."""
    N, C, H, W = x_nchw.shape
    Cmid = w1_pt.shape[0]
    Cp = _round_up(C, LANE)
    Cmp = _round_up(Cmid, LANE)
    _, _, NPR = _halo_geom(H, W)

    # Conv biases are accepted for API parity but unused: InstanceNorm(affine=False)
    # subtracts the per-channel mean immediately after each conv, so a constant
    # per-channel bias cancels exactly (identical output to the PyTorch block).
    del b1, b2, b3

    # channels-last, flattened-spatial, channel-padded input (lane-dense).
    x = jnp.transpose(x_nchw, (0, 2, 3, 1)).reshape(N, H * W, C).astype(jnp.float32)
    x = jnp.pad(x, ((0, 0), (0, 0), (0, Cp - C)))

    # Conv weights -> (Cin, Cout) matmul layout, zero-padded to lane multiples,
    # cast to bf16 (MXU-native).  Accumulation stays f32 in-kernel.
    w1 = jnp.pad(jnp.transpose(w1_pt[:, :, 0, 0], (1, 0)),
                 ((0, Cp - C), (0, Cmp - Cmid))).astype(jnp.bfloat16)        # (Cp, Cmp)
    w2 = jnp.transpose(w2_pt, (2, 3, 1, 0))                                  # (3,3,Cin,Cout)
    w2 = jnp.pad(w2, ((0, 0), (0, 0), (0, Cmp - Cmid), (0, Cmp - Cmid)))
    w2 = w2.reshape(9, Cmp, Cmp).astype(jnp.bfloat16)                        # per-tap weights
    w3 = jnp.pad(jnp.transpose(w3_pt[:, :, 0, 0], (1, 0)),
                 ((0, Cmp - Cmid), (0, Cp - C))).astype(jnp.bfloat16)        # (Cmp, Cp)

    kernel = functools.partial(_bottleneck_kernel, H=H, W=W)
    out = pl.pallas_call(
        kernel,
        out_shape=jax.ShapeDtypeStruct((N, H * W, Cp), jnp.float32),
        grid_spec=pltpu.PrefetchScalarGridSpec(
            num_scalar_prefetch=0,
            grid=(N,),
            in_specs=[
                pl.BlockSpec((1, H * W, Cp), lambda n: (n, 0, 0)),
                pl.BlockSpec((Cp, Cmp), lambda n: (0, 0)),
                pl.BlockSpec((9, Cmp, Cmp), lambda n: (0, 0, 0)),
                pl.BlockSpec((Cmp, Cp), lambda n: (0, 0)),
            ],
            out_specs=pl.BlockSpec((1, H * W, Cp), lambda n: (n, 0, 0)),
            scratch_shapes=[pltpu.VMEM((NPR, Cmp), jnp.float32)],
        ),
        compiler_params=pltpu.CompilerParams(
            dimension_semantics=("parallel",),
            vmem_limit_bytes=64 * 1024 * 1024),
    )(x, w1, w2, w3)

    out = out[:, :, :C].reshape(N, H, W, C)
    return jnp.transpose(out, (0, 3, 1, 2))                    # back to NCHW


def _reference(x, w1, b1, w2, b2, w3, b3):
    """Pure-JAX f32 reference of the PyTorch forward (biases included)."""
    dn = ('NCHW', 'OIHW', 'NCHW')

    def inorm(y):
        m = jnp.mean(y, axis=(2, 3), keepdims=True)
        v = jnp.mean((y - m) ** 2, axis=(2, 3), keepdims=True)
        return (y - m) * lax.rsqrt(v + EPS)

    y = lax.conv_general_dilated(x, w1, (1, 1), [(0, 0), (0, 0)], dimension_numbers=dn)
    y = jnp.maximum(inorm(y + b1[None, :, None, None]), 0.0)
    y = lax.conv_general_dilated(y, w2, (1, 1), [(1, 1), (1, 1)], dimension_numbers=dn)
    y = jnp.maximum(inorm(y + b2[None, :, None, None]), 0.0)
    y = lax.conv_general_dilated(y, w3, (1, 1), [(0, 0), (0, 0)], dimension_numbers=dn)
    y = inorm(y + b3[None, :, None, None])
    return x + y


if __name__ == "__main__":
    key = jax.random.PRNGKey(0)
    kx, k1, kb1, k2, kb2, k3, kb3 = jax.random.split(key, 7)
    N, C, H, W = 2, 32, 16, 16
    Cmid = C // 4

    x = jax.random.normal(kx, (N, C, H, W), jnp.float32)
    # deterministic synthetic parameters (PyTorch Conv2d weight layouts)
    w1 = jax.random.normal(k1, (Cmid, C, 1, 1), jnp.float32) * 0.2
    b1 = jax.random.normal(kb1, (Cmid,), jnp.float32) * 0.1
    w2 = jax.random.normal(k2, (Cmid, Cmid, 3, 3), jnp.float32) * 0.1
    b2 = jax.random.normal(kb2, (Cmid,), jnp.float32) * 0.1
    w3 = jax.random.normal(k3, (C, Cmid, 1, 1), jnp.float32) * 0.2
    b3 = jax.random.normal(kb3, (C,), jnp.float32) * 0.1

    out = jax.block_until_ready(resnet_bottleneck_block(x, w1, b1, w2, b2, w3, b3))
    ref = jax.block_until_ready(_reference(x, w1, b1, w2, b2, w3, b3))

    assert out.shape == (N, C, H, W), out.shape
    max_err = float(jnp.max(jnp.abs(out - ref)))
    # bf16 matmul operands (f32 accumulation) -> relaxed tolerance vs f32 reference.
    assert max_err < 5e-2, max_err
    print("KERNEL_OK")
</pallas_src>

<mosaic_0001>
module attributes {stable_mosaic.version = 11 : i64} {
  func.func @_bottleneck_kernel(%arg0: i32, %arg1: memref<1x256x128xf32, #tpu.memory_space<vmem>>, %arg2: memref<128x128xbf16, #tpu.memory_space<vmem>>, %arg3: memref<9x128x128xbf16, #tpu.memory_space<vmem>>, %arg4: memref<128x128xbf16, #tpu.memory_space<vmem>>, %arg5: memref<1x256x128xf32, #tpu.memory_space<vmem>>, %arg6: memref<448x128xf32, #tpu.memory_space<vmem>>) attributes {dimension_semantics = [#tpu.dimension_semantics<parallel>], iteration_bounds = array<i64: 2>, scalar_prefetch = 0 : i64, scratch_operands = 1 : i64, tpu.core_type = #tpu.core_type<tc>, window_params = [{transform_indices = @transform_0, window_bounds = array<i64: 1, 256, 128>}, {pipeline_mode = #tpu.pipeline_mode<synchronous>, transform_indices = @transform_1, window_bounds = array<i64: 128, 128>}, {pipeline_mode = #tpu.pipeline_mode<synchronous>, transform_indices = @transform_2, window_bounds = array<i64: 9, 128, 128>}, {pipeline_mode = #tpu.pipeline_mode<synchronous>, transform_indices = @transform_3, window_bounds = array<i64: 128, 128>}, {transform_indices = @transform_4, window_bounds = array<i64: 1, 256, 128>}]} {
    %c0 = arith.constant 0 : index
    %c0_0 = arith.constant 0 : index
    %c0_1 = arith.constant 0 : index
    %0 = vector.load %arg1[%c0, %c0_0, %c0_1] : memref<1x256x128xf32, #tpu.memory_space<vmem>>, vector<1x256x128xf32>
    %1 = vector.shape_cast %0 : vector<1x256x128xf32> to vector<256x128xf32>
    %2 = arith.truncf %1 : vector<256x128xf32> to vector<256x128xbf16>
    %c0_2 = arith.constant 0 : index
    %c0_3 = arith.constant 0 : index
    %3 = vector.load %arg2[%c0_2, %c0_3] : memref<128x128xbf16, #tpu.memory_space<vmem>>, vector<128x128xbf16>
    %cst = arith.constant dense<0.000000e+00> : vector<256x128xf32>
    %4 = tpu.matmul %2, %3, %cst {dimension_numbers = #tpu.dot_dimension_numbers<[1], [0], [0], [1], [0, 0, 1, 1], [], []>} : vector<256x128xbf16>, vector<128x128xbf16>, vector<256x128xf32> -> vector<256x128xf32>
    %cst_4 = arith.constant dense<0.000000e+00> : vector<128xf32>
    %5 = vector.multi_reduction <add>, %4, %cst_4 [0] : vector<256x128xf32> to vector<128xf32>
    %6 = vector.shape_cast %5 : vector<128xf32> to vector<1x128xf32>
    %7 = arith.mulf %4, %4 : vector<256x128xf32>
    %cst_5 = arith.constant dense<0.000000e+00> : vector<128xf32>
    %8 = vector.multi_reduction <add>, %7, %cst_5 [0] : vector<256x128xf32> to vector<128xf32>
    %9 = vector.shape_cast %8 : vector<128xf32> to vector<1x128xf32>
    %cst_6 = arith.constant 3.906250e-03 : f32
    %10 = vector.broadcast %cst_6 : f32 to vector<1x128xf32>
    %11 = arith.mulf %6, %10 : vector<1x128xf32>
    %cst_7 = arith.constant 3.906250e-03 : f32
    %12 = vector.broadcast %cst_7 : f32 to vector<1x128xf32>
    %13 = arith.mulf %9, %12 : vector<1x128xf32>
    %14 = arith.mulf %11, %11 : vector<1x128xf32>
    %15 = arith.subf %13, %14 : vector<1x128xf32>
    %cst_8 = arith.constant 0.000000e+00 : f32
    %16 = vector.broadcast %cst_8 : f32 to vector<1x128xf32>
    %17 = arith.maximumf %15, %16 : vector<1x128xf32>
    %cst_9 = arith.constant 9.99999974E-6 : f32
    %18 = vector.broadcast %cst_9 : f32 to vector<1x128xf32>
    %19 = arith.addf %17, %18 : vector<1x128xf32>
    %20 = math.rsqrt %19 : vector<1x128xf32>
    %21 = vector.broadcast %20 : vector<1x128xf32> to vector<256x128xf32>
    %22 = arith.mulf %4, %21 : vector<256x128xf32>
    %23 = arith.mulf %11, %20 : vector<1x128xf32>
    %24 = vector.broadcast %23 : vector<1x128xf32> to vector<256x128xf32>
    %25 = arith.subf %22, %24 : vector<256x128xf32>
    %cst_10 = arith.constant 0.000000e+00 : f32
    %26 = vector.broadcast %cst_10 : f32 to vector<256x128xf32>
    %27 = arith.maximumf %25, %26 : vector<256x128xf32>
    %cst_11 = arith.constant 0.000000e+00 : f32
    %28 = vector.broadcast %cst_11 : f32 to vector<448x128xf32>
    %c0_12 = arith.constant 0 : index
    %c0_13 = arith.constant 0 : index
    %29 = vector.load %arg6[%c0_12, %c0_13] : memref<448x128xf32, #tpu.memory_space<vmem>>, vector<448x128xf32>
    tpu.vector_store %arg6[%c0_12, %c0_13], %28 {strides = array<i32>} : memref<448x128xf32, #tpu.memory_space<vmem>>, vector<448x128xf32>,
    %30 = vector.extract_strided_slice %27 {offsets = [0, 0], sizes = [16, 128], strides = [1, 1]} : vector<256x128xf32> to vector<16x128xf32>
    %c32 = arith.constant 32 : index
    %c0_14 = arith.constant 0 : index
    %31 = vector.load %arg6[%c32, %c0_14] : memref<448x128xf32, #tpu.memory_space<vmem>>, vector<16x128xf32>
    tpu.vector_store %arg6[%c32, %c0_14], %30 {strides = array<i32>} : memref<448x128xf32, #tpu.memory_space<vmem>>, vector<16x128xf32>,
    %32 = vector.extract_strided_slice %27 {offsets = [16, 0], sizes = [16, 128], strides = [1, 1]} : vector<256x128xf32> to vector<16x128xf32>
    %c56 = arith.constant 56 : index
    %c0_15 = arith.constant 0 : index
    %33 = vector.load %arg6[%c56, %c0_15] : memref<448x128xf32, #tpu.memory_space<vmem>>, vector<16x128xf32>
    tpu.vector_store %arg6[%c56, %c0_15], %32 {strides = array<i32>} : memref<448x128xf32, #tpu.memory_space<vmem>>, vector<16x128xf32>,
    %34 = vector.extract_strided_slice %27 {offsets = [32, 0], sizes = [16, 128], strides = [1, 1]} : vector<256x128xf32> to vector<16x128xf32>
    %c80 = arith.constant 80 : index
    %c0_16 = arith.constant 0 : index
    %35 = vector.load %arg6[%c80, %c0_16] : memref<448x128xf32, #tpu.memory_space<vmem>>, vector<16x128xf32>
    tpu.vector_store %arg6[%c80, %c0_16], %34 {strides = array<i32>} : memref<448x128xf32, #tpu.memory_space<vmem>>, vector<16x128xf32>,
    %36 = vector.extract_strided_slice %27 {offsets = [48, 0], sizes = [16, 128], strides = [1, 1]} : vector<256x128xf32> to vector<16x128xf32>
    %c104 = arith.constant 104 : index
    %c0_17 = arith.constant 0 : index
    %37 = vector.load %arg6[%c104, %c0_17] : memref<448x128xf32, #tpu.memory_space<vmem>>, vector<16x128xf32>
    tpu.vector_store %arg6[%c104, %c0_17], %36 {strides = array<i32>} : memref<448x128xf32, #tpu.memory_space<vmem>>, vector<16x128xf32>,
    %38 = vector.extract_strided_slice %27 {offsets = [64, 0], sizes = [16, 128], strides = [1, 1]} : vector<256x128xf32> to vector<16x128xf32>
    %c128 = arith.constant 128 : index
    %c0_18 = arith.constant 0 : index
    %39 = vector.load %arg6[%c128, %c0_18] : memref<448x128xf32, #tpu.memory_space<vmem>>, vector<16x128xf32>
    tpu.vector_store %arg6[%c128, %c0_18], %38 {strides = array<i32>} : memref<448x128xf32, #tpu.memory_space<vmem>>, vector<16x128xf32>,
    %40 = vector.extract_strided_slice %27 {offsets = [80, 0], sizes = [16, 128], strides = [1, 1]} : vector<256x128xf32> to vector<16x128xf32>
    %c152 = arith.constant 152 : index
    %c0_19 = arith.constant 0 : index
    %41 = vector.load %arg6[%c152, %c0_19] : memref<448x128xf32, #tpu.memory_space<vmem>>, vector<16x128xf32>
    tpu.vector_store %arg6[%c152, %c0_19], %40 {strides = array<i32>} : memref<448x128xf32, #tpu.memory_space<vmem>>, vector<16x128xf32>,
    %42 = vector.extract_strided_slice %27 {offsets = [96, 0], sizes = [16, 128], strides = [1, 1]} : vector<256x128xf32> to vector<16x128xf32>
    %c176 = arith.constant 176 : index
    %c0_20 = arith.constant 0 : index
    %43 = vector.load %arg6[%c176, %c0_20] : memref<448x128xf32, #tpu.memory_space<vmem>>, vector<16x128xf32>
    tpu.vector_store %arg6[%c176, %c0_20], %42 {strides = array<i32>} : memref<448x128xf32, #tpu.memory_space<vmem>>, vector<16x128xf32>,
    %44 = vector.extract_strided_slice %27 {offsets = [112, 0], sizes = [16, 128], strides = [1, 1]} : vector<256x128xf32> to vector<16x128xf32>
    %c200 = arith.constant 200 : index
    %c0_21 = arith.constant 0 : index
    %45 = vector.load %arg6[%c200, %c0_21] : memref<448x128xf32, #tpu.memory_space<vmem>>, vector<16x128xf32>
    tpu.vector_store %arg6[%c200, %c0_21], %44 {strides = array<i32>} : memref<448x128xf32, #tpu.memory_space<vmem>>, vector<16x128xf32>,
    %46 = vector.extract_strided_slice %27 {offsets = [128, 0], sizes = [16, 128], strides = [1, 1]} : vector<256x128xf32> to vector<16x128xf32>
    %c224 = arith.constant 224 : index
    %c0_22 = arith.constant 0 : index
    %47 = vector.load %arg6[%c224, %c0_22] : memref<448x128xf32, #tpu.memory_space<vmem>>, vector<16x128xf32>
    tpu.vector_store %arg6[%c224, %c0_22], %46 {strides = array<i32>} : memref<448x128xf32, #tpu.memory_space<vmem>>, vector<16x128xf32>,
    %48 = vector.extract_strided_slice %27 {offsets = [144, 0], sizes = [16, 128], strides = [1, 1]} : vector<256x128xf32> to vector<16x128xf32>
    %c248 = arith.constant 248 : index
    %c0_23 = arith.constant 0 : index
    %49 = vector.load %arg6[%c248, %c0_23] : memref<448x128xf32, #tpu.memory_space<vmem>>, vector<16x128xf32>
    tpu.vector_store %arg6[%c248, %c0_23], %48 {strides = array<i32>} : memref<448x128xf32, #tpu.memory_space<vmem>>, vector<16x128xf32>,
    %50 = vector.extract_strided_slice %27 {offsets = [160, 0], sizes = [16, 128], strides = [1, 1]} : vector<256x128xf32> to vector<16x128xf32>
    %c272 = arith.constant 272 : index
    %c0_24 = arith.constant 0 : index
    %51 = vector.load %arg6[%c272, %c0_24] : memref<448x128xf32, #tpu.memory_space<vmem>>, vector<16x128xf32>
    tpu.vector_store %arg6[%c272, %c0_24], %50 {strides = array<i32>} : memref<448x128xf32, #tpu.memory_space<vmem>>, vector<16x128xf32>,
    %52 = vector.extract_strided_slice %27 {offsets = [176, 0], sizes = [16, 128], strides = [1, 1]} : vector<256x128xf32> to vector<16x128xf32>
    %c296 = arith.constant 296 : index
    %c0_25 = arith.constant 0 : index
    %53 = vector.load %arg6[%c296, %c0_25] : memref<448x128xf32, #tpu.memory_space<vmem>>, vector<16x128xf32>
    tpu.vector_store %arg6[%c296, %c0_25], %52 {strides = array<i32>} : memref<448x128xf32, #tpu.memory_space<vmem>>, vector<16x128xf32>,
    %54 = vector.extract_strided_slice %27 {offsets = [192, 0], sizes = [16, 128], strides = [1, 1]} : vector<256x128xf32> to vector<16x128xf32>
    %c320 = arith.constant 320 : index
    %c0_26 = arith.constant 0 : index
    %55 = vector.load %arg6[%c320, %c0_26] : memref<448x128xf32, #tpu.memory_space<vmem>>, vector<16x128xf32>
    tpu.vector_store %arg6[%c320, %c0_26], %54 {strides = array<i32>} : memref<448x128xf32, #tpu.memory_space<vmem>>, vector<16x128xf32>,
    %56 = vector.extract_strided_slice %27 {offsets = [208, 0], sizes = [16, 128], strides = [1, 1]} : vector<256x128xf32> to vector<16x128xf32>
    %c344 = arith.constant 344 : index
    %c0_27 = arith.constant 0 : index
    %57 = vector.load %arg6[%c344, %c0_27] : memref<448x128xf32, #tpu.memory_space<vmem>>, vector<16x128xf32>
    tpu.vector_store %arg6[%c344, %c0_27], %56 {strides = array<i32>} : memref<448x128xf32, #tpu.memory_space<vmem>>, vector<16x128xf32>,
    %58 = vector.extract_strided_slice %27 {offsets = [224, 0], sizes = [16, 128], strides = [1, 1]} : vector<256x128xf32> to vector<16x128xf32>
    %c368 = arith.constant 368 : index
    %c0_28 = arith.constant 0 : index
    %59 = vector.load %arg6[%c368, %c0_28] : memref<448x128xf32, #tpu.memory_space<vmem>>, vector<16x128xf32>
    tpu.vector_store %arg6[%c368, %c0_28], %58 {strides = array<i32>} : memref<448x128xf32, #tpu.memory_space<vmem>>, vector<16x128xf32>,
    %60 = vector.extract_strided_slice %27 {offsets = [240, 0], sizes = [16, 128], strides = [1, 1]} : vector<256x128xf32> to vector<16x128xf32>
    %c392 = arith.constant 392 : index
    %c0_29 = arith.constant 0 : index
    %61 = vector.load %arg6[%c392, %c0_29] : memref<448x128xf32, #tpu.memory_space<vmem>>, vector<16x128xf32>
    tpu.vector_store %arg6[%c392, %c0_29], %60 {strides = array<i32>} : memref<448x128xf32, #tpu.memory_space<vmem>>, vector<16x128xf32>,
    %c7 = arith.constant 7 : index
    %c0_30 = arith.constant 0 : index
    %62 = vector.load %arg6[%c7, %c0_30] : memref<448x128xf32, #tpu.memory_space<vmem>>, vector<384x128xf32>
    %63 = arith.truncf %62 : vector<384x128xf32> to vector<384x128xbf16>
    %c0_31 = arith.constant 0 : index
    %c0_32 = arith.constant 0 : index
    %c0_33 = arith.constant 0 : index
    %64 = vector.load %arg3[%c0_31, %c0_32, %c0_33] : memref<9x128x128xbf16, #tpu.memory_space<vmem>>, vector<1x128x128xbf16>
    %65 = vector.shape_cast %64 : vector<1x128x128xbf16> to vector<128x128xbf16>
    %cst_34 = arith.constant dense<0.000000e+00> : vector<384x128xf32>
    %66 = tpu.matmul %63, %65, %cst_34 {dimension_numbers = #tpu.dot_dimension_numbers<[1], [0], [0], [1], [0, 0, 1, 1], [], []>} : vector<384x128xbf16>, vector<128x128xbf16>, vector<384x128xf32> -> vector<384x128xf32>
    %c8 = arith.constant 8 : index
    %c0_35 = arith.constant 0 : index
    %67 = vector.load %arg6[%c8, %c0_35] : memref<448x128xf32, #tpu.memory_space<vmem>>, vector<384x128xf32>
    %68 = arith.truncf %67 : vector<384x128xf32> to vector<384x128xbf16>
    %c1 = arith.constant 1 : index
    %c0_36 = arith.constant 0 : index
    %c0_37 = arith.constant 0 : index
    %69 = vector.load %arg3[%c1, %c0_36, %c0_37] : memref<9x128x128xbf16, #tpu.memory_space<vmem>>, vector<1x128x128xbf16>
    %70 = vector.shape_cast %69 : vector<1x128x128xbf16> to vector<128x128xbf16>
    %cst_38 = arith.constant dense<0.000000e+00> : vector<384x128xf32>
    %71 = tpu.matmul %68, %70, %cst_38 {dimension_numbers = #tpu.dot_dimension_numbers<[1], [0], [0], [1], [0, 0, 1, 1], [], []>} : vector<384x128xbf16>, vector<128x128xbf16>, vector<384x128xf32> -> vector<384x128xf32>
    %72 = arith.addf %66, %71 : vector<384x128xf32>
    %c9 = arith.constant 9 : index
    %c0_39 = arith.constant 0 : index
    %73 = vector.load %arg6[%c9, %c0_39] : memref<448x128xf32, #tpu.memory_space<vmem>>, vector<384x128xf32>
    %74 = arith.truncf %73 : vector<384x128xf32> to vector<384x128xbf16>
    %c2 = arith.constant 2 : index
    %c0_40 = arith.constant 0 : index
    %c0_41 = arith.constant 0 : index
    %75 = vector.load %arg3[%c2, %c0_40, %c0_41] : memref<9x128x128xbf16, #tpu.memory_space<vmem>>, vector<1x128x128xbf16>
    %76 = vector.shape_cast %75 : vector<1x128x128xbf16> to vector<128x128xbf16>
    %cst_42 = arith.constant dense<0.000000e+00> : vector<384x128xf32>
    %77 = tpu.matmul %74, %76, %cst_42 {dimension_numbers = #tpu.dot_dimension_numbers<[1], [0], [0], [1], [0, 0, 1, 1], [], []>} : vector<384x128xbf16>, vector<128x128xbf16>, vector<384x128xf32> -> vector<384x128xf32>
    %78 = arith.addf %72, %77 : vector<384x128xf32>
    %c31 = arith.constant 31 : index
    %c0_43 = arith.constant 0 : index
    %79 = vector.load %arg6[%c31, %c0_43] : memref<448x128xf32, #tpu.memory_space<vmem>>, vector<384x128xf32>
    %80 = arith.truncf %79 : vector<384x128xf32> to vector<384x128xbf16>
    %c3 = arith.constant 3 : index
    %c0_44 = arith.constant 0 : index
    %c0_45 = arith.constant 0 : index
    %81 = vector.load %arg3[%c3, %c0_44, %c0_45] : memref<9x128x128xbf16, #tpu.memory_space<vmem>>, vector<1x128x128xbf16>
    %82 = vector.shape_cast %81 : vector<1x128x128xbf16> to vector<128x128xbf16>
    %cst_46 = arith.constant dense<0.000000e+00> : vector<384x128xf32>
    %83 = tpu.matmul %80, %82, %cst_46 {dimension_numbers = #tpu.dot_dimension_numbers<[1], [0], [0], [1], [0, 0, 1, 1], [], []>} : vector<384x128xbf16>, vector<128x128xbf16>, vector<384x128xf32> -> vector<384x128xf32>
    %84 = arith.addf %78, %83 : vector<384x128xf32>
    %c32_47 = arith.constant 32 : index
    %c0_48 = arith.constant 0 : index
    %85 = vector.load %arg6[%c32_47, %c0_48] : memref<448x128xf32, #tpu.memory_space<vmem>>, vector<384x128xf32>
    %86 = arith.truncf %85 : vector<384x128xf32> to vector<384x128xbf16>
    %c4 = arith.constant 4 : index
    %c0_49 = arith.constant 0 : index
    %c0_50 = arith.constant 0 : index
    %87 = vector.load %arg3[%c4, %c0_49, %c0_50] : memref<9x128x128xbf16, #tpu.memory_space<vmem>>, vector<1x128x128xbf16>
    %88 = vector.shape_cast %87 : vector<1x128x128xbf16> to vector<128x128xbf16>
    %cst_51 = arith.constant dense<0.000000e+00> : vector<384x128xf32>
    %89 = tpu.matmul %86, %88, %cst_51 {dimension_numbers = #tpu.dot_dimension_numbers<[1], [0], [0], [1], [0, 0, 1, 1], [], []>} : vector<384x128xbf16>, vector<128x128xbf16>, vector<384x128xf32> -> vector<384x128xf32>
    %90 = arith.addf %84, %89 : vector<384x128xf32>
    %c33 = arith.constant 33 : index
    %c0_52 = arith.constant 0 : index
    %91 = vector.load %arg6[%c33, %c0_52] : memref<448x128xf32, #tpu.memory_space<vmem>>, vector<384x128xf32>
    %92 = arith.truncf %91 : vector<384x128xf32> to vector<384x128xbf16>
    %c5 = arith.constant 5 : index
    %c0_53 = arith.constant 0 : index
    %c0_54 = arith.constant 0 : index
    %93 = vector.load %arg3[%c5, %c0_53, %c0_54] : memref<9x128x128xbf16, #tpu.memory_space<vmem>>, vector<1x128x128xbf16>
    %94 = vector.shape_cast %93 : vector<1x128x128xbf16> to vector<128x128xbf16>
    %cst_55 = arith.constant dense<0.000000e+00> : vector<384x128xf32>
    %95 = tpu.matmul %92, %94, %cst_55 {dimension_numbers = #tpu.dot_dimension_numbers<[1], [0], [0], [1], [0, 0, 1, 1], [], []>} : vector<384x128xbf16>, vector<128x128xbf16>, vector<384x128xf32> -> vector<384x128xf32>
    %96 = arith.addf %90, %95 : vector<384x128xf32>
    %c55 = arith.constant 55 : index
    %c0_56 = arith.constant 0 : index
    %97 = vector.load %arg6[%c55, %c0_56] : memref<448x128xf32, #tpu.memory_space<vmem>>, vector<384x128xf32>
    %98 = arith.truncf %97 : vector<384x128xf32> to vector<384x128xbf16>
    %c6 = arith.constant 6 : index
    %c0_57 = arith.constant 0 : index
    %c0_58 = arith.constant 0 : index
    %99 = vector.load %arg3[%c6, %c0_57, %c0_58] : memref<9x128x128xbf16, #tpu.memory_space<vmem>>, vector<1x128x128xbf16>
    %100 = vector.shape_cast %99 : vector<1x128x128xbf16> to vector<128x128xbf16>
    %cst_59 = arith.constant dense<0.000000e+00> : vector<384x128xf32>
    %101 = tpu.matmul %98, %100, %cst_59 {dimension_numbers = #tpu.dot_dimension_numbers<[1], [0], [0], [1], [0, 0, 1, 1], [], []>} : vector<384x128xbf16>, vector<128x128xbf16>, vector<384x128xf32> -> vector<384x128xf32>
    %102 = arith.addf %96, %101 : vector<384x128xf32>
    %c56_60 = arith.constant 56 : index
    %c0_61 = arith.constant 0 : index
    %103 = vector.load %arg6[%c56_60, %c0_61] : memref<448x128xf32, #tpu.memory_space<vmem>>, vector<384x128xf32>
    %104 = arith.truncf %103 : vector<384x128xf32> to vector<384x128xbf16>
    %c7_62 = arith.constant 7 : index
    %c0_63 = arith.constant 0 : index
    %c0_64 = arith.constant 0 : index
    %105 = vector.load %arg3[%c7_62, %c0_63, %c0_64] : memref<9x128x128xbf16, #tpu.memory_space<vmem>>, vector<1x128x128xbf16>
    %106 = vector.shape_cast %105 : vector<1x128x128xbf16> to vector<128x128xbf16>
    %cst_65 = arith.constant dense<0.000000e+00> : vector<384x128xf32>
    %107 = tpu.matmul %104, %106, %cst_65 {dimension_numbers = #tpu.dot_dimension_numbers<[1], [0], [0], [1], [0, 0, 1, 1], [], []>} : vector<384x128xbf16>, vector<128x128xbf16>, vector<384x128xf32> -> vector<384x128xf32>
    %108 = arith.addf %102, %107 : vector<384x128xf32>
    %c57 = arith.constant 57 : index
    %c0_66 = arith.constant 0 : index
    %109 = vector.load %arg6[%c57, %c0_66] : memref<448x128xf32, #tpu.memory_space<vmem>>, vector<384x128xf32>
    %110 = arith.truncf %109 : vector<384x128xf32> to vector<384x128xbf16>
    %c8_67 = arith.constant 8 : index
    %c0_68 = arith.constant 0 : index
    %c0_69 = arith.constant 0 : index
    %111 = vector.load %arg3[%c8_67, %c0_68, %c0_69] : memref<9x128x128xbf16, #tpu.memory_space<vmem>>, vector<1x128x128xbf16>
    %112 = vector.shape_cast %111 : vector<1x128x128xbf16> to vector<128x128xbf16>
    %cst_70 = arith.constant dense<0.000000e+00> : vector<384x128xf32>
    %113 = tpu.matmul %110, %112, %cst_70 {dimension_numbers = #tpu.dot_dimension_numbers<[1], [0], [0], [1], [0, 0, 1, 1], [], []>} : vector<384x128xbf16>, vector<128x128xbf16>, vector<384x128xf32> -> vector<384x128xf32>
    %114 = arith.addf %108, %113 : vector<384x128xf32>
    %115 = vector.shape_cast %114 : vector<384x128xf32> to vector<16x24x128xf32>
    %116 = vector.extract_strided_slice %115 {offsets = [0, 0, 0], sizes = [16, 16, 128], strides = [1, 1, 1]} : vector<16x24x128xf32> to vector<16x16x128xf32>
    %117 = vector.shape_cast %116 : vector<16x16x128xf32> to vector<256x128xf32>
    %cst_71 = arith.constant dense<0.000000e+00> : vector<128xf32>
    %118 = vector.multi_reduction <add>, %117, %cst_71 [0] : vector<256x128xf32> to vector<128xf32>
    %119 = vector.shape_cast %118 : vector<128xf32> to vector<1x128xf32>
    %120 = arith.mulf %117, %117 : vector<256x128xf32>
    %cst_72 = arith.constant dense<0.000000e+00> : vector<128xf32>
    %121 = vector.multi_reduction <add>, %120, %cst_72 [0] : vector<256x128xf32> to vector<128xf32>
    %122 = vector.shape_cast %121 : vector<128xf32> to vector<1x128xf32>
    %cst_73 = arith.constant 3.906250e-03 : f32
    %123 = vector.broadcast %cst_73 : f32 to vector<1x128xf32>
    %124 = arith.mulf %119, %123 : vector<1x128xf32>
    %cst_74 = arith.constant 3.906250e-03 : f32
    %125 = vector.broadcast %cst_74 : f32 to vector<1x128xf32>
    %126 = arith.mulf %122, %125 : vector<1x128xf32>
    %127 = arith.mulf %124, %124 : vector<1x128xf32>
    %128 = arith.subf %126, %127 : vector<1x128xf32>
    %cst_75 = arith.constant 0.000000e+00 : f32
    %129 = vector.broadcast %cst_75 : f32 to vector<1x128xf32>
    %130 = arith.maximumf %128, %129 : vector<1x128xf32>
    %cst_76 = arith.constant 9.99999974E-6 : f32
    %131 = vector.broadcast %cst_76 : f32 to vector<1x128xf32>
    %132 = arith.addf %130, %131 : vector<1x128xf32>
    %133 = math.rsqrt %132 : vector<1x128xf32>
    %134 = vector.broadcast %133 : vector<1x128xf32> to vector<256x128xf32>
    %135 = arith.mulf %117, %134 : vector<256x128xf32>
    %136 = arith.mulf %124, %133 : vector<1x128xf32>
    %137 = vector.broadcast %136 : vector<1x128xf32> to vector<256x128xf32>
    %138 = arith.subf %135, %137 : vector<256x128xf32>
    %cst_77 = arith.constant 0.000000e+00 : f32
    %139 = vector.broadcast %cst_77 : f32 to vector<256x128xf32>
    %140 = arith.maximumf %138, %139 : vector<256x128xf32>
    %141 = arith.truncf %140 : vector<256x128xf32> to vector<256x128xbf16>
    %c0_78 = arith.constant 0 : index
    %c0_79 = arith.constant 0 : index
    %142 = vector.load %arg4[%c0_78, %c0_79] : memref<128x128xbf16, #tpu.memory_space<vmem>>, vector<128x128xbf16>
    %cst_80 = arith.constant dense<0.000000e+00> : vector<256x128xf32>
    %143 = tpu.matmul %141, %142, %cst_80 {dimension_numbers = #tpu.dot_dimension_numbers<[1], [0], [0], [1], [0, 0, 1, 1], [], []>} : vector<256x128xbf16>, vector<128x128xbf16>, vector<256x128xf32> -> vector<256x128xf32>
    %cst_81 = arith.constant dense<0.000000e+00> : vector<128xf32>
    %144 = vector.multi_reduction <add>, %143, %cst_81 [0] : vector<256x128xf32> to vector<128xf32>
    %145 = vector.shape_cast %144 : vector<128xf32> to vector<1x128xf32>
    %146 = arith.mulf %143, %143 : vector<256x128xf32>
    %cst_82 = arith.constant dense<0.000000e+00> : vector<128xf32>
    %147 = vector.multi_reduction <add>, %146, %cst_82 [0] : vector<256x128xf32> to vector<128xf32>
    %148 = vector.shape_cast %147 : vector<128xf32> to vector<1x128xf32>
    %cst_83 = arith.constant 3.906250e-03 : f32
    %149 = vector.broadcast %cst_83 : f32 to vector<1x128xf32>
    %150 = arith.mulf %145, %149 : vector<1x128xf32>
    %cst_84 = arith.constant 3.906250e-03 : f32
    %151 = vector.broadcast %cst_84 : f32 to vector<1x128xf32>
    %152 = arith.mulf %148, %151 : vector<1x128xf32>
    %153 = arith.mulf %150, %150 : vector<1x128xf32>
    %154 = arith.subf %152, %153 : vector<1x128xf32>
    %cst_85 = arith.constant 0.000000e+00 : f32
    %155 = vector.broadcast %cst_85 : f32 to vector<1x128xf32>
    %156 = arith.maximumf %154, %155 : vector<1x128xf32>
    %cst_86 = arith.constant 9.99999974E-6 : f32
    %157 = vector.broadcast %cst_86 : f32 to vector<1x128xf32>
    %158 = arith.addf %156, %157 : vector<1x128xf32>
    %159 = math.rsqrt %158 : vector<1x128xf32>
    %160 = vector.broadcast %159 : vector<1x128xf32> to vector<256x128xf32>
    %161 = arith.mulf %143, %160 : vector<256x128xf32>
    %162 = arith.mulf %150, %159 : vector<1x128xf32>
    %163 = vector.broadcast %162 : vector<1x128xf32> to vector<256x128xf32>
    %164 = arith.subf %161, %163 : vector<256x128xf32>
    %165 = arith.addf %1, %164 : vector<256x128xf32>
    %c0_87 = arith.constant 0 : index
    %c0_88 = arith.constant 0 : index
    %c0_89 = arith.constant 0 : index
    %166 = vector.load %arg5[%c0_87, %c0_88, %c0_89] : memref<1x256x128xf32, #tpu.memory_space<vmem>>, vector<1x256x128xf32>
    %167 = vector.shape_cast %166 : vector<1x256x128xf32> to vector<256x128xf32>
    %168 = vector.shape_cast %165 : vector<256x128xf32> to vector<1x256x128xf32>
    tpu.vector_store %arg5[%c0_87, %c0_88, %c0_89], %168 {strides = array<i32>} : memref<1x256x128xf32, #tpu.memory_space<vmem>>, vector<1x256x128xf32>,
    return
  }
  func.func @transform_0(%arg0: i32) -> (i32, i32, i32) {
    %c0_i32 = arith.constant 0 : i32
    %c0_i32_0 = arith.constant 0 : i32
    %c0_i32_1 = arith.constant 0 : i32
    return %arg0, %c0_i32, %c0_i32_0 : i32, i32, i32
  }
  func.func @transform_1(%arg0: i32) -> (i32, i32) {
    %c0_i32 = arith.constant 0 : i32
    %c0_i32_0 = arith.constant 0 : i32
    %c0_i32_1 = arith.constant 0 : i32
    return %c0_i32, %c0_i32_0 : i32, i32
  }
  func.func @transform_2(%arg0: i32) -> (i32, i32, i32) {
    %c0_i32 = arith.constant 0 : i32
    %c0_i32_0 = arith.constant 0 : i32
    %c0_i32_1 = arith.constant 0 : i32
    %c0_i32_2 = arith.constant 0 : i32
    return %c0_i32, %c0_i32_0, %c0_i32_1 : i32, i32, i32
  }
  func.func @transform_3(%arg0: i32) -> (i32, i32) {
    %c0_i32 = arith.constant 0 : i32
    %c0_i32_0 = arith.constant 0 : i32
    %c0_i32_1 = arith.constant 0 : i32
    return %c0_i32, %c0_i32_0 : i32, i32
  }
  func.func @transform_4(%arg0: i32) -> (i32, i32, i32) {
    %c0_i32 = arith.constant 0 : i32
    %c0_i32_0 = arith.constant 0 : i32
    %c0_i32_1 = arith.constant 0 : i32
    return %arg0, %c0_i32, %c0_i32_0 : i32, i32, i32
  }
}

</mosaic_0001>

<llo_original>
// kernel: tpu_custom_call.1
$region0: #{tpu_custom_call.1}
  #allocation0 [shape = 'u32[]', space=smem, size = 0x4, offset = 0x4, fixed_abs, tag = 'smem constant byte address 0x4 - core index']
  #allocation1 [shape = 'u32[72,128]{1,0:T(1,128)}', space=vmem, size = 0x9000, scoped, tag = 'internal scratch']
  #allocation2 [shape = 'f32[448,128]{1,0:T(8,128)}', space=vmem, size = 0x38000, scoped, tag = 'scratch operand']
  %s0 = inlined_call_operand.hbm [shape: f32[2,256,128], index: 0, kind: input, shape index: {}]
  %s1 = inlined_call_operand.hbm [shape: bf16[128,128], index: 1, kind: input, shape index: {}]
  %s2 = inlined_call_operand.hbm [shape: bf16[9,128,128], index: 2, kind: input, shape index: {}]
  %s3 = inlined_call_operand.hbm [shape: bf16[128,128], index: 3, kind: input, shape index: {}]
  %s4 = inlined_call_operand.hbm [shape: f32[2,256,128], index: 4, kind: output, shape index: {}]
  %s5 = sld [smem:[#allocation0]]
  $region65: #{tpu_custom_call.1} parent=0
    _
  %s7 = ssub.s32 1, %s5
  %s8 = scalar_select 0, %s7, %s5
  $region1: #{tpu_custom_call.1} parent=0
    #allocation3 [shape = 'u8[262144]{0}', space=vmem, size = 0x40000, scoped, tag = 'input window, operand 0']
    #allocation4 [shape = 's32[2]{0}', space=sflag, size = 0x8, scoped, tag = 'scoped memory for tpu_custom_call.1']
    #allocation5 [shape = 's32[2]{0}', space=sflag, size = 0x8, scoped, tag = 'scoped memory for tpu_custom_call.1']
    #allocation6 [shape = 'u8[32768]{0}', space=vmem, size = 0x8000, scoped, tag = 'input window, operand 1, single buffered']
    #allocation7 [shape = 's32[1]{0}', space=sflag, size = 0x4, scoped, tag = 'scoped memory for tpu_custom_call.1']
    #allocation8 [shape = 'u8[294912]{0}', space=vmem, size = 0x48000, scoped, tag = 'input window, operand 2, single buffered']
    #allocation9 [shape = 'u8[32768]{0}', space=vmem, size = 0x8000, scoped, tag = 'input window, operand 3, single buffered']
    #allocation10 [shape = 's32[1]{0}', space=sflag, size = 0x4, scoped, tag = 'scoped memory for tpu_custom_call.1']
    #allocation11 [shape = 'u8[262144]{0}', space=vmem, size = 0x40000, scoped, tag = 'output window, operand 0']
    %9 = vsyncpa [#allocation4], 0
    %s10 = scalar_lea.sflag [#allocation4], 1
    %11 = vsyncpa %s10, 0
    %12 = vsyncpa [#allocation7], 0
    %13 = vsyncpa [#allocation10], 0
    %14 = vsyncpa [#allocation5], 0
    %s15 = scalar_lea.sflag [#allocation5], 1
    %16 = vsyncpa %s15, 0
    loop: start=0, step=1, limit=4
    $region2: #{tpu_custom_call.1} parent=1 // loop_pre_header
      _
    $region3: #{tpu_custom_call.1} parent=1 // loop_header
      %s18 = sphi 0, %s22
      %p19 = scmp.ge.s32.totalorder %s18, 4
      %s28 = sphi 0, %s30
      %s31 = sphi 0, %s28
      %s32 = sphi 0, %s31
      %s48 = sphi 0, %s32
      %s52 = sphi 0, %s52
      %s54 = sphi 0, %s52
      %s55 = sphi 0, %s54
      %s69 = sphi 0, %s55
      %s73 = sphi 0, %s73
      %s75 = sphi 0, %s73
      %s76 = sphi 0, %s75
      %s90 = sphi 0, %s76
      %s94 = sphi 0, %s94
      %s96 = sphi 0, %s94
      %s97 = sphi 0, %s96
      %s111 = sphi 0, %s97
      %s117 = sphi 0, %s119
      %s120 = sphi 0, %s117
      %s121 = sphi 0, %s120
      %s137 = sphi 0, %s121
    $region4: #{tpu_custom_call.1} parent=1 // loop_header_branch
      %21 = sbr.rel (%p19) target = $region8
    $region5: #{tpu_custom_call.1} parent=1 // loop_body
      %s23 = ssub.s32 %s18, 1
      %s24 = ssub.s32 %s18, 2
      %s25 = sadd.s32 %s18, 1
      %s26 = ssub.s32 %s18, %s25
      %p27 = scmp.eq.s32.totalorder %s26, 0
      %s29 = sadd.s32 %s28, 1
      %s30 = scalar_select %p27, %s28, %s29
      %p33 = pneg %p27
      %p34 = scmp.eq.s32.totalorder %s18, 1
      %p35 = por %p33, %p34
      %p36 = scmp.ne.s32.totalorder %s28, %s31
      %p37 = scmp.eq.s32.totalorder %s18, 0
      %p38 = por %p36, %p37
      %p39 = scmp.ne.s32.totalorder %s28, %s31
      %p40 = scmp.eq.s32.totalorder %s23, 1
      %p41 = por %p39, %p40
      %p42 = scmp.ne.s32.totalorder %s31, %s32
      %p43 = scmp.eq.s32.totalorder %s23, 0
      %p44 = por %p42, %p43
      %p45 = scmp.ne.s32.totalorder %s31, %s32
      %p46 = scmp.eq.s32.totalorder %s24, 1
      %p47 = por %p45, %p46
      %p49 = scmp.ne.s32.totalorder %s32, %s48
      %p50 = scmp.eq.s32.totalorder %s24, 0
      %p51 = por %p49, %p50
      %s53 = sadd.s32 %s52, 1
      %p56 = scmp.eq.s32.totalorder %s18, 1
      %p57 = scmp.ne.s32.totalorder %s52, %s54
      %p58 = scmp.eq.s32.totalorder %s18, 0
      %p59 = por %p57, %p58
      %p60 = scmp.ne.s32.totalorder %s52, %s54
      %p61 = scmp.eq.s32.totalorder %s23, 1
      %p62 = por %p60, %p61
      %p63 = scmp.ne.s32.totalorder %s54, %s55
      %p64 = scmp.eq.s32.totalorder %s23, 0
      %p65 = por %p63, %p64
      %p66 = scmp.ne.s32.totalorder %s54, %s55
      %p67 = scmp.eq.s32.totalorder %s24, 1
      %p68 = por %p66, %p67
      %p70 = scmp.ne.s32.totalorder %s55, %s69
      %p71 = scmp.eq.s32.totalorder %s24, 0
      %p72 = por %p70, %p71
      %s74 = sadd.s32 %s73, 1
      %p77 = scmp.eq.s32.totalorder %s18, 1
      %p78 = scmp.ne.s32.totalorder %s73, %s75
      %p79 = scmp.eq.s32.totalorder %s18, 0
      %p80 = por %p78, %p79
      %p81 = scmp.ne.s32.totalorder %s73, %s75
      %p82 = scmp.eq.s32.totalorder %s23, 1
      %p83 = por %p81, %p82
      %p84 = scmp.ne.s32.totalorder %s75, %s76
      %p85 = scmp.eq.s32.totalorder %s23, 0
      %p86 = por %p84, %p85
      %p87 = scmp.ne.s32.totalorder %s75, %s76
      %p88 = scmp.eq.s32.totalorder %s24, 1
      %p89 = por %p87, %p88
      %p91 = scmp.ne.s32.totalorder %s76, %s90
      %p92 = scmp.eq.s32.totalorder %s24, 0
      %p93 = por %p91, %p92
      %s95 = sadd.s32 %s94, 1
      %p98 = scmp.eq.s32.totalorder %s18, 1
      %p99 = scmp.ne.s32.totalorder %s94, %s96
      %p100 = scmp.eq.s32.totalorder %s18, 0
      %p101 = por %p99, %p100
      %p102 = scmp.ne.s32.totalorder %s94, %s96
      %p103 = scmp.eq.s32.totalorder %s23, 1
      %p104 = por %p102, %p103
      %p105 = scmp.ne.s32.totalorder %s96, %s97
      %p106 = scmp.eq.s32.totalorder %s23, 0
      %p107 = por %p105, %p106
      %p108 = scmp.ne.s32.totalorder %s96, %s97
      %p109 = scmp.eq.s32.totalorder %s24, 1
      %p110 = por %p108, %p109
      %p112 = scmp.ne.s32.totalorder %s97, %s111
      %p113 = scmp.eq.s32.totalorder %s24, 0
      %p114 = por %p112, %p113
      %s115 = ssub.s32 %s18, %s25
      %p116 = scmp.eq.s32.totalorder %s115, 0
      %s118 = sadd.s32 %s117, 1
      %s119 = scalar_select %p116, %s117, %s118
      %p122 = pneg %p116
      %p123 = scmp.eq.s32.totalorder %s18, 1
      %p124 = por %p122, %p123
      %p125 = scmp.ne.s32.totalorder %s117, %s120
      %p126 = scmp.eq.s32.totalorder %s18, 0
      %p127 = por %p125, %p126
      %p128 = scmp.ne.s32.totalorder %s117, %s120
      %p129 = scmp.eq.s32.totalorder %s23, 1
      %p130 = por %p128, %p129
      %p131 = scmp.ne.s32.totalorder %s120, %s121
      %p132 = scmp.eq.s32.totalorder %s23, 0
      %p133 = por %p131, %p132
      %p134 = scmp.ne.s32.totalorder %s120, %s121
      %p135 = scmp.eq.s32.totalorder %s24, 1
      %p136 = por %p134, %p135
      %p138 = scmp.ne.s32.totalorder %s121, %s137
      %p139 = scmp.eq.s32.totalorder %s24, 0
      %p140 = por %p138, %p139
      %p141 = scmp.le.s32.totalorder 1, %s18
      %p142 = scmp.lt.s32.totalorder %s18, 3
      %p143 = pnand %p141, %p142
      %p144 = pneg %p143
      // Predicated region
      $region9: #{tpu_custom_call.1} parent=5 // pred_check
        _
      $region10: #{tpu_custom_call.1} parent=5 // pred_check_branch
        %146 = sbr.rel (%p143) target = $region12
      $region11: #{tpu_custom_call.1} parent=5 // pred_region
        %s147 = ssub.s32 %s18, 1
        // Predicated region
        $region13: #{tpu_custom_call.1} parent=11 // pred_check
          %p148 = pneg %p65
        $region14: #{tpu_custom_call.1} parent=11 // pred_check_branch
          %150 = sbr.rel (%p148) target = $region16
        $region15: #{tpu_custom_call.1} parent=11 // pred_region
          %152 = vsyncadd [#allocation7], 0
          %s153 = sshll.u32 %s1, 4
          %s154 = int_to_ptr.hbm [resolvable:$true] %s153
          %s155 = sshll.u32 [#allocation6], 4
          %s156 = int_to_ptr.vmem [resolvable:$true] %s155
          %161 = dma.hbm_to_vmem [thread:$0]  %s154, 1024, %s156, [#allocation7], 64, 64, 4
        $region16: #{tpu_custom_call.1} parent=11 // pred_fallthru
          _
        // Predicated region
        $region17: #{tpu_custom_call.1} parent=11 // pred_check
          %p162 = pneg %p86
        $region18: #{tpu_custom_call.1} parent=11 // pred_check_branch
          %164 = sbr.rel (%p162) target = $region20
        $region19: #{tpu_custom_call.1} parent=11 // pred_region
          %166 = vsyncadd [#allocation7], 0
          %s167 = sshll.u32 %s2, 4
          %s168 = int_to_ptr.hbm [resolvable:$true] %s167
          %s169 = sshll.u32 [#allocation8], 4
          %s170 = int_to_ptr.vmem [resolvable:$true] %s169
          %175 = dma.hbm_to_vmem [thread:$0]  %s168, 9216, %s170, [#allocation7], 64, 64, 4
        $region20: #{tpu_custom_call.1} parent=11 // pred_fallthru
          _
        // Predicated region
        $region21: #{tpu_custom_call.1} parent=11 // pred_check
          %p176 = pneg %p107
        $region22: #{tpu_custom_call.1} parent=11 // pred_check_branch
          %178 = sbr.rel (%p176) target = $region24
        $region23: #{tpu_custom_call.1} parent=11 // pred_region
          %180 = vsyncadd [#allocation10], 0
          %s181 = sshll.u32 %s3, 4
          %s182 = int_to_ptr.hbm [resolvable:$true] %s181
          %s183 = sshll.u32 [#allocation9], 4
          %s184 = int_to_ptr.vmem [resolvable:$true] %s183
          %189 = dma.hbm_to_vmem [thread:$0]  %s182, 1024, %s184, [#allocation10], 64, 64, 4
        $region24: #{tpu_custom_call.1} parent=11 // pred_fallthru
          _
      $region12: #{tpu_custom_call.1} parent=5 // pred_fallthru
        _
      %p190 = scmp.lt.s32.totalorder %s18, 2
      // Predicated region
      $region25: #{tpu_custom_call.1} parent=5 // pred_check
        %p191 = pneg %p190
      $region26: #{tpu_custom_call.1} parent=5 // pred_check_branch
        %193 = sbr.rel (%p191) target = $region28
      $region27: #{tpu_custom_call.1} parent=5 // pred_region
        // Predicated region
        $region29: #{tpu_custom_call.1} parent=27 // pred_check
          %p194 = pneg %p38
        $region30: #{tpu_custom_call.1} parent=27 // pred_check_branch
          %196 = sbr.rel (%p194) target = $region32
        $region31: #{tpu_custom_call.1} parent=27 // pred_region
          %s197 = sand.u32 %s28, 1
          %s198 = scalar_lea.sflag [#allocation4], %s197
          %s199 = sand.u32 %s28, 1
          %s200 = smul.addr %s199, 256
          %s201 = scalar_lea.vmem [#allocation3], %s200
          %203 = vsyncadd %s198, 0
          %s204 = smul.addr %s18, 32
          %s205 = smul.addr %s204, 8
          %s206 = scalar_lea.hbm %s0, %s205
          %s207 = sshll.u32 %s206, 4
          %s208 = int_to_ptr.hbm [resolvable:$true] %s207
          %s209 = sshll.u32 %s201, 4
          %s210 = int_to_ptr.vmem [resolvable:$true] %s209
          %215 = dma.hbm_to_vmem [thread:$0]  %s208, 4096, %s210, %s198, 128, 128, 8
        $region32: #{tpu_custom_call.1} parent=27 // pred_fallthru
          _
      $region28: #{tpu_custom_call.1} parent=5 // pred_fallthru
        _
      %p216 = scmp.le.s32.totalorder 1, %s18
      %p217 = scmp.lt.s32.totalorder %s18, 3
      %p218 = pnand %p216, %p217
      %p219 = pneg %p218
      // Predicated region
      $region33: #{tpu_custom_call.1} parent=5 // pred_check
        _
      $region34: #{tpu_custom_call.1} parent=5 // pred_check_branch
        %221 = sbr.rel (%p218) target = $region36
      $region35: #{tpu_custom_call.1} parent=5 // pred_region
        %s222 = ssub.s32 %s18, 1
        %s223 = sand.u32 %s31, 1
        %s224 = scalar_lea.sflag [#allocation4], %s223
        %s225 = sand.u32 %s31, 1
        %s226 = smul.addr %s225, 256
        %s227 = scalar_lea.vmem [#allocation3], %s226
        // Predicated region
        $region37: #{tpu_custom_call.1} parent=35 // pred_check
          %p228 = pneg %p44
        $region38: #{tpu_custom_call.1} parent=35 // pred_check_branch
          %230 = sbr.rel (%p228) target = $region40
        $region39: #{tpu_custom_call.1} parent=35 // pred_region
          %232 = dma.done %s224, 4096
        $region40: #{tpu_custom_call.1} parent=35 // pred_fallthru
          _
        // Predicated region
        $region41: #{tpu_custom_call.1} parent=35 // pred_check
          %p233 = pneg %p65
        $region42: #{tpu_custom_call.1} parent=35 // pred_check_branch
          %235 = sbr.rel (%p233) target = $region44
        $region43: #{tpu_custom_call.1} parent=35 // pred_region
          %237 = dma.done [#allocation7], 1024
        $region44: #{tpu_custom_call.1} parent=35 // pred_fallthru
          _
        // Predicated region
        $region45: #{tpu_custom_call.1} parent=35 // pred_check
          %p238 = pneg %p86
        $region46: #{tpu_custom_call.1} parent=35 // pred_check_branch
          %240 = sbr.rel (%p238) target = $region48
        $region47: #{tpu_custom_call.1} parent=35 // pred_region
          %242 = dma.done [#allocation7], 9216
        $region48: #{tpu_custom_call.1} parent=35 // pred_fallthru
          _
        // Predicated region
        $region49: #{tpu_custom_call.1} parent=35 // pred_check
          %p243 = pneg %p107
        $region50: #{tpu_custom_call.1} parent=35 // pred_check_branch
          %245 = sbr.rel (%p243) target = $region52
        $region51: #{tpu_custom_call.1} parent=35 // pred_region
          %247 = dma.done [#allocation10], 1024
        $region52: #{tpu_custom_call.1} parent=35 // pred_fallthru
          _
        %s248 = sand.u32 %s31, 1
        %s249 = scalar_lea.sflag [#allocation4], %s248
        %s250 = sand.u32 %s31, 1
        %s251 = smul.addr %s250, 256
        %s252 = scalar_lea.vmem [#allocation3], %s251
        %p253 = pneg %p44
        %p254 = pneg %p41
        %p255 = pneg %p65
        %p256 = pneg %p62
        %p257 = pneg %p86
        %p258 = pneg %p83
        %p259 = pneg %p107
        %p260 = pneg %p104
        %p261 = pneg %p133
        %p262 = pneg %p130
        %s263 = sand.u32 %s120, 1
        %s264 = scalar_lea.sflag [#allocation5], %s263
        %s265 = sand.u32 %s120, 1
        %s266 = smul.addr %s265, 256
        %s267 = scalar_lea.vmem [#allocation11], %s266
        %v268 = vld [vmem:[%s227] sm:$0xff]
        %v269 = vld [vmem:[%s227 + $0x8] sm:$0xff]
        %v270 = vld [vmem:[%s227 + $0x10] sm:$0xff]
        %v271 = vld [vmem:[%s227 + $0x18] sm:$0xff]
        %v272 = vld [vmem:[%s227 + $0x20] sm:$0xff]
        %v273 = vld [vmem:[%s227 + $0x28] sm:$0xff]
        %v274 = vld [vmem:[%s227 + $0x30] sm:$0xff]
        %v275 = vld [vmem:[%s227 + $0x38] sm:$0xff]
        %v276 = vld [vmem:[%s227 + $0x40] sm:$0xff]
        %v277 = vld [vmem:[%s227 + $0x48] sm:$0xff]
        %v278 = vld [vmem:[%s227 + $0x50] sm:$0xff]
        %v279 = vld [vmem:[%s227 + $0x58] sm:$0xff]
        %v280 = vld [vmem:[%s227 + $0x60] sm:$0xff]
        %v281 = vld [vmem:[%s227 + $0x68] sm:$0xff]
        %v282 = vld [vmem:[%s227 + $0x70] sm:$0xff]
        %v283 = vld [vmem:[%s227 + $0x78] sm:$0xff]
        %v284 = vld [vmem:[%s227 + $0x80] sm:$0xff]
        %v285 = vld [vmem:[%s227 + $0x88] sm:$0xff]
        %v286 = vld [vmem:[%s227 + $0x90] sm:$0xff]
        %v287 = vld [vmem:[%s227 + $0x98] sm:$0xff]
        %v288 = vld [vmem:[%s227 + $0xa0] sm:$0xff]
        %v289 = vld [vmem:[%s227 + $0xa8] sm:$0xff]
        %v290 = vld [vmem:[%s227 + $0xb0] sm:$0xff]
        %v291 = vld [vmem:[%s227 + $0xb8] sm:$0xff]
        %v292 = vld [vmem:[%s227 + $0xc0] sm:$0xff]
        %v293 = vld [vmem:[%s227 + $0xc8] sm:$0xff]
        %v294 = vld [vmem:[%s227 + $0xd0] sm:$0xff]
        %v295 = vld [vmem:[%s227 + $0xd8] sm:$0xff]
        %v296 = vld [vmem:[%s227 + $0xe0] sm:$0xff]
        %v297 = vld [vmem:[%s227 + $0xe8] sm:$0xff]
        %v298 = vld [vmem:[%s227 + $0xf0] sm:$0xff]
        %v299 = vld [vmem:[%s227 + $0xf8] sm:$0xff]
        %v300 = vpack.c.bf16 %v269, %v268
        %v301 = vpack.c.bf16 %v271, %v270
        %v302 = vpack.c.bf16 %v273, %v272
        %v303 = vpack.c.bf16 %v275, %v274
        %v304 = vpack.c.bf16 %v277, %v276
        %v305 = vpack.c.bf16 %v279, %v278
        %v306 = vpack.c.bf16 %v281, %v280
        %v307 = vpack.c.bf16 %v283, %v282
        %v308 = vpack.c.bf16 %v285, %v284
        %v309 = vpack.c.bf16 %v287, %v286
        %v310 = vpack.c.bf16 %v289, %v288
        %v311 = vpack.c.bf16 %v291, %v290
        %v312 = vpack.c.bf16 %v293, %v292
        %v313 = vpack.c.bf16 %v295, %v294
        %v314 = vpack.c.bf16 %v297, %v296
        %v315 = vpack.c.bf16 %v299, %v298
        %v316 = vld [vmem:[#allocation6] sm:$0xf]
        %v317 = vld [vmem:[#allocation6 + $0x4] sm:$0xf]
        %v318 = vld [vmem:[#allocation6 + $0x8] sm:$0xf]
        %v319 = vld [vmem:[#allocation6 + $0xc] sm:$0xf]
        %v320 = vld [vmem:[#allocation6 + $0x10] sm:$0xf]
        %v321 = vld [vmem:[#allocation6 + $0x14] sm:$0xf]
        %v322 = vld [vmem:[#allocation6 + $0x18] sm:$0xf]
        %v323 = vld [vmem:[#allocation6 + $0x1c] sm:$0xf]
        %v324 = vld [vmem:[#allocation6 + $0x20] sm:$0xf]
        %v325 = vld [vmem:[#allocation6 + $0x24] sm:$0xf]
        %v326 = vld [vmem:[#allocation6 + $0x28] sm:$0xf]
        %v327 = vld [vmem:[#allocation6 + $0x2c] sm:$0xf]
        %v328 = vld [vmem:[#allocation6 + $0x30] sm:$0xf]
        %v329 = vld [vmem:[#allocation6 + $0x34] sm:$0xf]
        %v330 = vld [vmem:[#allocation6 + $0x38] sm:$0xf]
        %v331 = vld [vmem:[#allocation6 + $0x3c] sm:$0xf]
        %v348 = vunpack.c.l.b16 %v316
        %v349 = vunpack.c.l.b16 %v317
        %v350 = vunpack.c.l.b16 %v318
        %v351 = vunpack.c.l.b16 %v319
        %v352 = vunpack.c.l.b16 %v320
        %v353 = vunpack.c.l.b16 %v321
        %v354 = vunpack.c.l.b16 %v322
        %v355 = vunpack.c.l.b16 %v323
        %v356 = vunpack.c.l.b16 %v324
        %v357 = vunpack.c.l.b16 %v325
        %v358 = vunpack.c.l.b16 %v326
        %v359 = vunpack.c.l.b16 %v327
        %v360 = vunpack.c.l.b16 %v328
        %v361 = vunpack.c.l.b16 %v329
        %v362 = vunpack.c.l.b16 %v330
        %v363 = vunpack.c.l.b16 %v331
        %v364 = vpack.c.b16 %v349, %v348
        %v365 = vpack.c.b16 %v351, %v350
        %v366 = vpack.c.b16 %v353, %v352
        %v367 = vpack.c.b16 %v355, %v354
        %v368 = vpack.c.b16 %v357, %v356
        %v369 = vpack.c.b16 %v359, %v358
        %v370 = vpack.c.b16 %v361, %v360
        %v371 = vpack.c.b16 %v363, %v362
        %380 = vmatpush.bf16.msra.mxu0 %v371
        %381 = vmatpush.bf16.msra.mxu0 %v370
        %382 = vmatpush.bf16.msra.mxu0 %v369
        %383 = vmatpush.bf16.msra.mxu0 %v368
        %384 = vmatpush.bf16.msra.mxu0 %v367
        %385 = vmatpush.bf16.msra.mxu0 %v366
        %386 = vmatpush.bf16.msra.mxu0 %v365
        %387 = vmatpush.bf16.msra.mxu0 %v364
        %388 = vmatmul.bf16.gmra.mxu0 %v300
        %v389 = vpop.f32.mrf.mxu0
        %v390 = vadd.f32 0.0, %v389
        %v391 = vpop.f32.mrf.mxu0
        %v392 = vadd.f32 0.0, %v391
        %393 = vmatmul.bf16.gmra.mxu0 %v301
        %v394 = vpop.f32.mrf.mxu0
        %v395 = vadd.f32 0.0, %v394
        %v396 = vpop.f32.mrf.mxu0
        %v397 = vadd.f32 0.0, %v396
        %398 = vmatmul.bf16.gmra.mxu0 %v302
        %v399 = vpop.f32.mrf.mxu0
        %v400 = vadd.f32 0.0, %v399
        %v401 = vpop.f32.mrf.mxu0
        %v402 = vadd.f32 0.0, %v401
        %403 = vmatmul.bf16.gmra.mxu0 %v303
        %v404 = vpop.f32.mrf.mxu0
        %v405 = vadd.f32 0.0, %v404
        %v406 = vpop.f32.mrf.mxu0
        %v407 = vadd.f32 0.0, %v406
        %408 = vmatmul.bf16.gmra.mxu0 %v304
        %v409 = vpop.f32.mrf.mxu0
        %v410 = vadd.f32 0.0, %v409
        %v411 = vpop.f32.mrf.mxu0
        %v412 = vadd.f32 0.0, %v411
        %413 = vmatmul.bf16.gmra.mxu0 %v305
        %v414 = vpop.f32.mrf.mxu0
        %v415 = vadd.f32 0.0, %v414
        %v416 = vpop.f32.mrf.mxu0
        %v417 = vadd.f32 0.0, %v416
        %418 = vmatmul.bf16.gmra.mxu0 %v306
        %v419 = vpop.f32.mrf.mxu0
        %v420 = vadd.f32 0.0, %v419
        %v421 = vpop.f32.mrf.mxu0
        %v422 = vadd.f32 0.0, %v421
        %423 = vmatmul.bf16.gmra.mxu0 %v307
        %v424 = vpop.f32.mrf.mxu0
        %v425 = vadd.f32 0.0, %v424
        %v426 = vpop.f32.mrf.mxu0
        %v427 = vadd.f32 0.0, %v426
        %428 = vmatmul.bf16.gmra.mxu0 %v308
        %v429 = vpop.f32.mrf.mxu0
        %v430 = vadd.f32 0.0, %v429
        %v431 = vpop.f32.mrf.mxu0
        %v432 = vadd.f32 0.0, %v431
        %433 = vmatmul.bf16.gmra.mxu0 %v309
        %v434 = vpop.f32.mrf.mxu0
        %v435 = vadd.f32 0.0, %v434
        %v436 = vpop.f32.mrf.mxu0
        %v437 = vadd.f32 0.0, %v436
        %438 = vmatmul.bf16.gmra.mxu0 %v310
        %v439 = vpop.f32.mrf.mxu0
        %v440 = vadd.f32 0.0, %v439
        %v441 = vpop.f32.mrf.mxu0
        %v442 = vadd.f32 0.0, %v441
        %443 = vmatmul.bf16.gmra.mxu0 %v311
        %v444 = vpop.f32.mrf.mxu0
        %v445 = vadd.f32 0.0, %v444
        %v446 = vpop.f32.mrf.mxu0
        %v447 = vadd.f32 0.0, %v446
        %448 = vmatmul.bf16.gmra.mxu0 %v312
        %v449 = vpop.f32.mrf.mxu0
        %v450 = vadd.f32 0.0, %v449
        %v451 = vpop.f32.mrf.mxu0
        %v452 = vadd.f32 0.0, %v451
        %453 = vmatmul.bf16.gmra.mxu0 %v313
        %v454 = vpop.f32.mrf.mxu0
        %v455 = vadd.f32 0.0, %v454
        %v456 = vpop.f32.mrf.mxu0
        %v457 = vadd.f32 0.0, %v456
        %458 = vmatmul.bf16.gmra.mxu0 %v314
        %v459 = vpop.f32.mrf.mxu0
        %v460 = vadd.f32 0.0, %v459
        %v461 = vpop.f32.mrf.mxu0
        %v462 = vadd.f32 0.0, %v461
        %463 = vmatmul.bf16.gmra.mxu0 %v315
        %v464 = vpop.f32.mrf.mxu0
        %v465 = vadd.f32 0.0, %v464
        %v466 = vpop.f32.mrf.mxu0
        %v467 = vadd.f32 0.0, %v466
        %468 = vdwg.mxu0
        %v469 = vadd.f32 %v390, %v392
        %v470 = vadd.f32 %v469, %v395
        %v471 = vadd.f32 %v470, %v397
        %v472 = vadd.f32 %v471, %v400
        %v473 = vadd.f32 %v472, %v402
        %v474 = vadd.f32 %v473, %v405
        %v475 = vadd.f32 %v474, %v407
        %v476 = vadd.f32 %v475, %v410
        %v477 = vadd.f32 %v476, %v412
        %v478 = vadd.f32 %v477, %v415
        %v479 = vadd.f32 %v478, %v417
        %v480 = vadd.f32 %v479, %v420
        %v481 = vadd.f32 %v480, %v422
        %v482 = vadd.f32 %v481, %v425
        %v483 = vadd.f32 %v482, %v427
        %v484 = vadd.f32 %v483, %v430
        %v485 = vadd.f32 %v484, %v432
        %v486 = vadd.f32 %v485, %v435
        %v487 = vadd.f32 %v486, %v437
        %v488 = vadd.f32 %v487, %v440
        %v489 = vadd.f32 %v488, %v442
        %v490 = vadd.f32 %v489, %v445
        %v491 = vadd.f32 %v490, %v447
        %v492 = vadd.f32 %v491, %v450
        %v493 = vadd.f32 %v492, %v452
        %v494 = vadd.f32 %v493, %v455
        %v495 = vadd.f32 %v494, %v457
        %v496 = vadd.f32 %v495, %v460
        %v497 = vadd.f32 %v496, %v462
        %v498 = vadd.f32 %v497, %v465
        %v499 = vadd.f32 %v498, %v467
        %v500 = vrot.slane %v499, 4
        %v501 = vadd.f32 %v499, %v500
        %v502 = vrot.slane %v501, 2
        %v503 = vadd.f32 %v501, %v502
        %v504 = vrot.slane %v503, 1
        %v505 = vadd.f32 %v503, %v504
        %v506 = vmul.f32 %v390, %v390
        %v507 = vmul.f32 %v392, %v392
        %v508 = vmul.f32 %v395, %v395
        %v509 = vmul.f32 %v397, %v397
        %v510 = vmul.f32 %v400, %v400
        %v511 = vmul.f32 %v402, %v402
        %v512 = vmul.f32 %v405, %v405
        %v513 = vmul.f32 %v407, %v407
        %v514 = vmul.f32 %v410, %v410
        %v515 = vmul.f32 %v412, %v412
        %v516 = vmul.f32 %v415, %v415
        %v517 = vmul.f32 %v417, %v417
        %v518 = vmul.f32 %v420, %v420
        %v519 = vmul.f32 %v422, %v422
        %v520 = vmul.f32 %v425, %v425
        %v521 = vmul.f32 %v427, %v427
        %v522 = vmul.f32 %v430, %v430
        %v523 = vmul.f32 %v432, %v432
        %v524 = vmul.f32 %v435, %v435
        %v525 = vmul.f32 %v437, %v437
        %v526 = vmul.f32 %v440, %v440
        %v527 = vmul.f32 %v442, %v442
        %v528 = vmul.f32 %v445, %v445
        %v529 = vmul.f32 %v447, %v447
        %v530 = vmul.f32 %v450, %v450
        %v531 = vmul.f32 %v452, %v452
        %v532 = vmul.f32 %v455, %v455
        %v533 = vmul.f32 %v457, %v457
        %v534 = vmul.f32 %v460, %v460
        %v535 = vmul.f32 %v462, %v462
        %v536 = vmul.f32 %v465, %v465
        %v537 = vmul.f32 %v467, %v467
        %v538 = vadd.f32 %v506, %v507
        %v539 = vadd.f32 %v538, %v508
        %v540 = vadd.f32 %v539, %v509
        %v541 = vadd.f32 %v540, %v510
        %v542 = vadd.f32 %v541, %v511
        %v543 = vadd.f32 %v542, %v512
        %v544 = vadd.f32 %v543, %v513
        %v545 = vadd.f32 %v544, %v514
        %v546 = vadd.f32 %v545, %v515
        %v547 = vadd.f32 %v546, %v516
        %v548 = vadd.f32 %v547, %v517
        %v549 = vadd.f32 %v548, %v518
        %v550 = vadd.f32 %v549, %v519
        %v551 = vadd.f32 %v550, %v520
        %v552 = vadd.f32 %v551, %v521
        %v553 = vadd.f32 %v552, %v522
        %v554 = vadd.f32 %v553, %v523
        %v555 = vadd.f32 %v554, %v524
        %v556 = vadd.f32 %v555, %v525
        %v557 = vadd.f32 %v556, %v526
        %v558 = vadd.f32 %v557, %v527
        %v559 = vadd.f32 %v558, %v528
        %v560 = vadd.f32 %v559, %v529
        %v561 = vadd.f32 %v560, %v530
        %v562 = vadd.f32 %v561, %v531
        %v563 = vadd.f32 %v562, %v532
        %v564 = vadd.f32 %v563, %v533
        %v565 = vadd.f32 %v564, %v534
        %v566 = vadd.f32 %v565, %v535
        %v567 = vadd.f32 %v566, %v536
        %v568 = vadd.f32 %v567, %v537
        %v569 = vrot.slane %v568, 4
        %v570 = vadd.f32 %v568, %v569
        %v571 = vrot.slane %v570, 2
        %v572 = vadd.f32 %v570, %v571
        %v573 = vrot.slane %v572, 1
        %v574 = vadd.f32 %v572, %v573
        %v575 = vmul.f32 %v505, 0.00390625
        %v576 = vmul.f32 %v574, 0.00390625
        %v577 = vmul.f32 %v575, %v575
        %v578 = vsub.f32 %v576, %v577
        %v579 = vmax.f32 %v578, 0.0
        %v580 = vadd.f32 %v579, 1e-05
        %v581 = vrsqrt.pop %v580
        %v582 = vmul.f32 %v581, %v580
        %v583 = vmul.f32 %v582, %v581
        %v584 = vmul.f32 0.5, %v583
        %v585 = vsub.f32 1.5, %v584
        %v586 = vmul.f32 %v581, %v585
        %vm587 = vweird.f32 %v580
        %vm588 = vweird.f32 %v581
        %vm589 = vmor %vm587, %vm588
        %v590 = vsel %vm589, %v581, %v586
        %v591 = vmul.f32 %v390, %v590
        %v592 = vmul.f32 %v392, %v590
        %v593 = vmul.f32 %v395, %v590
        %v594 = vmul.f32 %v397, %v590
        %v595 = vmul.f32 %v400, %v590
        %v596 = vmul.f32 %v402, %v590
        %v597 = vmul.f32 %v405, %v590
        %v598 = vmul.f32 %v407, %v590
        %v599 = vmul.f32 %v410, %v590
        %v600 = vmul.f32 %v412, %v590
        %v601 = vmul.f32 %v415, %v590
        %v602 = vmul.f32 %v417, %v590
        %v603 = vmul.f32 %v420, %v590
        %v604 = vmul.f32 %v422, %v590
        %v605 = vmul.f32 %v425, %v590
        %v606 = vmul.f32 %v427, %v590
        %v607 = vmul.f32 %v430, %v590
        %v608 = vmul.f32 %v432, %v590
        %v609 = vmul.f32 %v435, %v590
        %v610 = vmul.f32 %v437, %v590
        %v611 = vmul.f32 %v440, %v590
        %v612 = vmul.f32 %v442, %v590
        %v613 = vmul.f32 %v445, %v590
        %v614 = vmul.f32 %v447, %v590
        %v615 = vmul.f32 %v450, %v590
        %v616 = vmul.f32 %v452, %v590
        %v617 = vmul.f32 %v455, %v590
        %v618 = vmul.f32 %v457, %v590
        %v619 = vmul.f32 %v460, %v590
        %v620 = vmul.f32 %v462, %v590
        %v621 = vmul.f32 %v465, %v590
        %v622 = vmul.f32 %v467, %v590
        %v623 = vmul.f32 %v575, %v590
        %v624 = vsub.f32 %v591, %v623
        %v625 = vsub.f32 %v592, %v623
        %v626 = vsub.f32 %v593, %v623
        %v627 = vsub.f32 %v594, %v623
        %v628 = vsub.f32 %v595, %v623
        %v629 = vsub.f32 %v596, %v623
        %v630 = vsub.f32 %v597, %v623
        %v631 = vsub.f32 %v598, %v623
        %v632 = vsub.f32 %v599, %v623
        %v633 = vsub.f32 %v600, %v623
        %v634 = vsub.f32 %v601, %v623
        %v635 = vsub.f32 %v602, %v623
        %v636 = vsub.f32 %v603, %v623
        %v637 = vsub.f32 %v604, %v623
        %v638 = vsub.f32 %v605, %v623
        %v639 = vsub.f32 %v606, %v623
        %v640 = vsub.f32 %v607, %v623
        %v641 = vsub.f32 %v608, %v623
        %v642 = vsub.f32 %v609, %v623
        %v643 = vsub.f32 %v610, %v623
        %v644 = vsub.f32 %v611, %v623
        %v645 = vsub.f32 %v612, %v623
        %v646 = vsub.f32 %v613, %v623
        %v647 = vsub.f32 %v614, %v623
        %v648 = vsub.f32 %v615, %v623
        %v649 = vsub.f32 %v616, %v623
        %v650 = vsub.f32 %v617, %v623
        %v651 = vsub.f32 %v618, %v623
        %v652 = vsub.f32 %v619, %v623
        %v653 = vsub.f32 %v620, %v623
        %v654 = vsub.f32 %v621, %v623
        %v655 = vsub.f32 %v622, %v623
        %v656 = vmax.f32 %v624, 0.0
        %v657 = vmax.f32 %v625, 0.0
        %v658 = vmax.f32 %v626, 0.0
        %v659 = vmax.f32 %v627, 0.0
        %v660 = vmax.f32 %v628, 0.0
        %v661 = vmax.f32 %v629, 0.0
        %v662 = vmax.f32 %v630, 0.0
        %v663 = vmax.f32 %v631, 0.0
        %v664 = vmax.f32 %v632, 0.0
        %v665 = vmax.f32 %v633, 0.0
        %v666 = vmax.f32 %v634, 0.0
        %v667 = vmax.f32 %v635, 0.0
        %v668 = vmax.f32 %v636, 0.0
        %v669 = vmax.f32 %v637, 0.0
        %v670 = vmax.f32 %v638, 0.0
        %v671 = vmax.f32 %v639, 0.0
        %v672 = vmax.f32 %v640, 0.0
        %v673 = vmax.f32 %v641, 0.0
        %v674 = vmax.f32 %v642, 0.0
        %v675 = vmax.f32 %v643, 0.0
        %v676 = vmax.f32 %v644, 0.0
        %v677 = vmax.f32 %v645, 0.0
        %v678 = vmax.f32 %v646, 0.0
        %v679 = vmax.f32 %v647, 0.0
        %v680 = vmax.f32 %v648, 0.0
        %v681 = vmax.f32 %v649, 0.0
        %v682 = vmax.f32 %v650, 0.0
        %v683 = vmax.f32 %v651, 0.0
        %v684 = vmax.f32 %v652, 0.0
        %v685 = vmax.f32 %v653, 0.0
        %v686 = vmax.f32 %v654, 0.0
        %v687 = vmax.f32 %v655, 0.0
        %688 = vst [vmem:[#allocation2] sm:$0xff] 0.0
        %689 = vst [vmem:[#allocation2 + $0x8] sm:$0xff] 0.0
        %690 = vst [vmem:[#allocation2 + $0x10] sm:$0xff] 0.0
        %691 = vst [vmem:[#allocation2 + $0x18] sm:$0xff] 0.0
        %692 = vst [vmem:[#allocation2 + $0x20] sm:$0xff] 0.0
        %693 = vst [vmem:[#allocation2 + $0x28] sm:$0xff] 0.0
        %694 = vst [vmem:[#allocation2 + $0x30] sm:$0xff] 0.0
        %695 = vst [vmem:[#allocation2 + $0x38] sm:$0xff] 0.0
        %696 = vst [vmem:[#allocation2 + $0x40] sm:$0xff] 0.0
        %697 = vst [vmem:[#allocation2 + $0x48] sm:$0xff] 0.0
        %698 = vst [vmem:[#allocation2 + $0x50] sm:$0xff] 0.0
        %699 = vst [vmem:[#allocation2 + $0x58] sm:$0xff] 0.0
        %700 = vst [vmem:[#allocation2 + $0x60] sm:$0xff] 0.0
        %701 = vst [vmem:[#allocation2 + $0x68] sm:$0xff] 0.0
        %702 = vst [vmem:[#allocation2 + $0x70] sm:$0xff] 0.0
        %703 = vst [vmem:[#allocation2 + $0x78] sm:$0xff] 0.0
        %704 = vst [vmem:[#allocation2 + $0x80] sm:$0xff] 0.0
        %705 = vst [vmem:[#allocation2 + $0x88] sm:$0xff] 0.0
        %706 = vst [vmem:[#allocation2 + $0x90] sm:$0xff] 0.0
        %707 = vst [vmem:[#allocation2 + $0x98] sm:$0xff] 0.0
        %708 = vst [vmem:[#allocation2 + $0xa0] sm:$0xff] 0.0
        %709 = vst [vmem:[#allocation2 + $0xa8] sm:$0xff] 0.0
        %710 = vst [vmem:[#allocation2 + $0xb0] sm:$0xff] 0.0
        %711 = vst [vmem:[#allocation2 + $0xb8] sm:$0xff] 0.0
        %712 = vst [vmem:[#allocation2 + $0xc0] sm:$0xff] 0.0
        %713 = vst [vmem:[#allocation2 + $0xc8] sm:$0xff] 0.0
        %714 = vst [vmem:[#allocation2 + $0xd0] sm:$0xff] 0.0
        %715 = vst [vmem:[#allocation2 + $0xd8] sm:$0xff] 0.0
        %716 = vst [vmem:[#allocation2 + $0xe0] sm:$0xff] 0.0
        %717 = vst [vmem:[#allocation2 + $0xe8] sm:$0xff] 0.0
        %718 = vst [vmem:[#allocation2 + $0xf0] sm:$0xff] 0.0
        %719 = vst [vmem:[#allocation2 + $0xf8] sm:$0xff] 0.0
        %720 = vst [vmem:[#allocation2 + $0x100] sm:$0xff] 0.0
        %721 = vst [vmem:[#allocation2 + $0x108] sm:$0xff] 0.0
        %722 = vst [vmem:[#allocation2 + $0x110] sm:$0xff] 0.0
        %723 = vst [vmem:[#allocation2 + $0x118] sm:$0xff] 0.0
        %724 = vst [vmem:[#allocation2 + $0x120] sm:$0xff] 0.0
        %725 = vst [vmem:[#allocation2 + $0x128] sm:$0xff] 0.0
        %726 = vst [vmem:[#allocation2 + $0x130] sm:$0xff] 0.0
        %727 = vst [vmem:[#allocation2 + $0x138] sm:$0xff] 0.0
        %728 = vst [vmem:[#allocation2 + $0x140] sm:$0xff] 0.0
        %729 = vst [vmem:[#allocation2 + $0x148] sm:$0xff] 0.0
        %730 = vst [vmem:[#allocation2 + $0x150] sm:$0xff] 0.0
        %731 = vst [vmem:[#allocation2 + $0x158] sm:$0xff] 0.0
        %732 = vst [vmem:[#allocation2 + $0x160] sm:$0xff] 0.0
        %733 = vst [vmem:[#allocation2 + $0x168] sm:$0xff] 0.0
        %734 = vst [vmem:[#allocation2 + $0x170] sm:$0xff] 0.0
        %735 = vst [vmem:[#allocation2 + $0x178] sm:$0xff] 0.0
        %736 = vst [vmem:[#allocation2 + $0x180] sm:$0xff] 0.0
        %737 = vst [vmem:[#allocation2 + $0x188] sm:$0xff] 0.0
        %738 = vst [vmem:[#allocation2 + $0x190] sm:$0xff] 0.0
        %739 = vst [vmem:[#allocation2 + $0x198] sm:$0xff] 0.0
        %740 = vst [vmem:[#allocation2 + $0x1a0] sm:$0xff] 0.0
        %741 = vst [vmem:[#allocation2 + $0x1a8] sm:$0xff] 0.0
        %742 = vst [vmem:[#allocation2 + $0x1b0] sm:$0xff] 0.0
        %743 = vst [vmem:[#allocation2 + $0x1b8] sm:$0xff] 0.0
        %744 = vst [vmem:[#allocation2 + $0x20] sm:$0xff] %v656
        %745 = vst [vmem:[#allocation2 + $0x28] sm:$0xff] %v657
        %746 = vst [vmem:[#allocation2 + $0x38] sm:$0xff] %v658
        %747 = vst [vmem:[#allocation2 + $0x40] sm:$0xff] %v659
        %748 = vst [vmem:[#allocation2 + $0x50] sm:$0xff] %v660
        %749 = vst [vmem:[#allocation2 + $0x58] sm:$0xff] %v661
        %750 = vst [vmem:[#allocation2 + $0x68] sm:$0xff] %v662
        %751 = vst [vmem:[#allocation2 + $0x70] sm:$0xff] %v663
        %752 = vst [vmem:[#allocation2 + $0x80] sm:$0xff] %v664
        %753 = vst [vmem:[#allocation2 + $0x88] sm:$0xff] %v665
        %754 = vst [vmem:[#allocation2 + $0x98] sm:$0xff] %v666
        %755 = vst [vmem:[#allocation2 + $0xa0] sm:$0xff] %v667
        %756 = vst [vmem:[#allocation2 + $0xb0] sm:$0xff] %v668
        %757 = vst [vmem:[#allocation2 + $0xb8] sm:$0xff] %v669
        %758 = vst [vmem:[#allocation2 + $0xc8] sm:$0xff] %v670
        %759 = vst [vmem:[#allocation2 + $0xd0] sm:$0xff] %v671
        %760 = vst [vmem:[#allocation2 + $0xe0] sm:$0xff] %v672
        %761 = vst [vmem:[#allocation2 + $0xe8] sm:$0xff] %v673
        %762 = vst [vmem:[#allocation2 + $0xf8] sm:$0xff] %v674
        %763 = vst [vmem:[#allocation2 + $0x100] sm:$0xff] %v675
        %764 = vst [vmem:[#allocation2 + $0x110] sm:$0xff] %v676
        %765 = vst [vmem:[#allocation2 + $0x118] sm:$0xff] %v677
        %766 = vst [vmem:[#allocation2 + $0x128] sm:$0xff] %v678
        %767 = vst [vmem:[#allocation2 + $0x130] sm:$0xff] %v679
        %768 = vst [vmem:[#allocation2 + $0x140] sm:$0xff] %v680
        %769 = vst [vmem:[#allocation2 + $0x148] sm:$0xff] %v681
        %770 = vst [vmem:[#allocation2 + $0x158] sm:$0xff] %v682
        %771 = vst [vmem:[#allocation2 + $0x160] sm:$0xff] %v683
        %772 = vst [vmem:[#allocation2 + $0x170] sm:$0xff] %v684
        %773 = vst [vmem:[#allocation2 + $0x178] sm:$0xff] %v685
        %774 = vst [vmem:[#allocation2 + $0x188] sm:$0xff] %v686
        %775 = vst [vmem:[#allocation2 + $0x190] sm:$0xff] %v687
        %v776 = vld [vmem:[#allocation2 + $0x7] sm:$0xff]
        %v777 = vld [vmem:[#allocation2 + $0xf] sm:$0xff]
        %v778 = vld [vmem:[#allocation2 + $0x17] sm:$0xff]
        %v779 = vld [vmem:[#allocation2 + $0x1f] sm:$0xff]
        %v780 = vld [vmem:[#allocation2 + $0x27] sm:$0xff]
        %v781 = vld [vmem:[#allocation2 + $0x2f] sm:$0xff]
        %v782 = vld [vmem:[#allocation2 + $0x37] sm:$0xff]
        %v783 = vld [vmem:[#allocation2 + $0x3f] sm:$0xff]
        %v784 = vld [vmem:[#allocation2 + $0x47] sm:$0xff]
        %v785 = vld [vmem:[#allocation2 + $0x4f] sm:$0xff]
        %v786 = vld [vmem:[#allocation2 + $0x57] sm:$0xff]
        %v787 = vld [vmem:[#allocation2 + $0x5f] sm:$0xff]
        %v788 = vld [vmem:[#allocation2 + $0x67] sm:$0xff]
        %v789 = vld [vmem:[#allocation2 + $0x6f] sm:$0xff]
        %v790 = vld [vmem:[#allocation2 + $0x77] sm:$0xff]
        %v791 = vld [vmem:[#allocation2 + $0x7f] sm:$0xff]
        %v792 = vld [vmem:[#allocation2 + $0x87] sm:$0xff]
        %v793 = vld [vmem:[#allocation2 + $0x8f] sm:$0xff]
        %v794 = vld [vmem:[#allocation2 + $0x97] sm:$0xff]
        %v795 = vld [vmem:[#allocation2 + $0x9f] sm:$0xff]
        %v796 = vld [vmem:[#allocation2 + $0xa7] sm:$0xff]
        %v797 = vld [vmem:[#allocation2 + $0xaf] sm:$0xff]
        %v798 = vld [vmem:[#allocation2 + $0xb7] sm:$0xff]
        %v799 = vld [vmem:[#allocation2 + $0xbf] sm:$0xff]
        %v800 = vld [vmem:[#allocation2 + $0xc7] sm:$0xff]
        %v801 = vld [vmem:[#allocation2 + $0xcf] sm:$0xff]
        %v802 = vld [vmem:[#allocation2 + $0xd7] sm:$0xff]
        %v803 = vld [vmem:[#allocation2 + $0xdf] sm:$0xff]
        %v804 = vld [vmem:[#allocation2 + $0xe7] sm:$0xff]
        %v805 = vld [vmem:[#allocation2 + $0xef] sm:$0xff]
        %v806 = vld [vmem:[#allocation2 + $0xf7] sm:$0xff]
        %v807 = vld [vmem:[#allocation2 + $0xff] sm:$0xff]
        %v808 = vld [vmem:[#allocation2 + $0x107] sm:$0xff]
        %v809 = vld [vmem:[#allocation2 + $0x10f] sm:$0xff]
        %v810 = vld [vmem:[#allocation2 + $0x117] sm:$0xff]
        %v811 = vld [vmem:[#allocation2 + $0x11f] sm:$0xff]
        %v812 = vld [vmem:[#allocation2 + $0x127] sm:$0xff]
        %v813 = vld [vmem:[#allocation2 + $0x12f] sm:$0xff]
        %v814 = vld [vmem:[#allocation2 + $0x137] sm:$0xff]
        %v815 = vld [vmem:[#allocation2 + $0x13f] sm:$0xff]
        %v816 = vld [vmem:[#allocation2 + $0x147] sm:$0xff]
        %v817 = vld [vmem:[#allocation2 + $0x14f] sm:$0xff]
        %v818 = vld [vmem:[#allocation2 + $0x157] sm:$0xff]
        %v819 = vld [vmem:[#allocation2 + $0x15f] sm:$0xff]
        %v820 = vld [vmem:[#allocation2 + $0x167] sm:$0xff]
        %v821 = vld [vmem:[#allocation2 + $0x16f] sm:$0xff]
        %v822 = vld [vmem:[#allocation2 + $0x177] sm:$0xff]
        %v823 = vld [vmem:[#allocation2 + $0x17f] sm:$0xff]
        %v824 = vpack.c.bf16 %v777, %v776
        %v825 = vpack.c.bf16 %v779, %v778
        %v826 = vpack.c.bf16 %v781, %v780
        %v827 = vpack.c.bf16 %v783, %v782
        %v828 = vpack.c.bf16 %v785, %v784
        %v829 = vpack.c.bf16 %v787, %v786
        %v830 = vpack.c.bf16 %v789, %v788
        %v831 = vpack.c.bf16 %v791, %v790
        %v832 = vpack.c.bf16 %v793, %v792
        %v833 = vpack.c.bf16 %v795, %v794
        %v834 = vpack.c.bf16 %v797, %v796
        %v835 = vpack.c.bf16 %v799, %v798
        %v836 = vpack.c.bf16 %v801, %v800
        %v837 = vpack.c.bf16 %v803, %v802
        %v838 = vpack.c.bf16 %v805, %v804
        %v839 = vpack.c.bf16 %v807, %v806
        %v840 = vpack.c.bf16 %v809, %v808
        %v841 = vpack.c.bf16 %v811, %v810
        %v842 = vpack.c.bf16 %v813, %v812
        %v843 = vpack.c.bf16 %v815, %v814
        %v844 = vpack.c.bf16 %v817, %v816
        %v845 = vpack.c.bf16 %v819, %v818
        %v846 = vpack.c.bf16 %v821, %v820
        %v847 = vpack.c.bf16 %v823, %v822
        %v848 = vld [vmem:[#allocation8] sm:$0xf]
        %v849 = vld [vmem:[#allocation8 + $0x4] sm:$0xf]
        %v850 = vld [vmem:[#allocation8 + $0x8] sm:$0xf]
        %v851 = vld [vmem:[#allocation8 + $0xc] sm:$0xf]
        %v852 = vld [vmem:[#allocation8 + $0x10] sm:$0xf]
        %v853 = vld [vmem:[#allocation8 + $0x14] sm:$0xf]
        %v854 = vld [vmem:[#allocation8 + $0x18] sm:$0xf]
        %v855 = vld [vmem:[#allocation8 + $0x1c] sm:$0xf]
        %v856 = vld [vmem:[#allocation8 + $0x20] sm:$0xf]
        %v857 = vld [vmem:[#allocation8 + $0x24] sm:$0xf]
        %v858 = vld [vmem:[#allocation8 + $0x28] sm:$0xf]
        %v859 = vld [vmem:[#allocation8 + $0x2c] sm:$0xf]
        %v860 = vld [vmem:[#allocation8 + $0x30] sm:$0xf]
        %v861 = vld [vmem:[#allocation8 + $0x34] sm:$0xf]
        %v862 = vld [vmem:[#allocation8 + $0x38] sm:$0xf]
        %v863 = vld [vmem:[#allocation8 + $0x3c] sm:$0xf]
        %v864 = vld [vmem:[#allocation2 + $0x8] sm:$0xff]
        %v865 = vld [vmem:[#allocation2 + $0x10] sm:$0xff]
        %v866 = vld [vmem:[#allocation2 + $0x18] sm:$0xff]
        %v867 = vld [vmem:[#allocation2 + $0x20] sm:$0xff]
        %v868 = vld [vmem:[#allocation2 + $0x28] sm:$0xff]
        %v869 = vld [vmem:[#allocation2 + $0x30] sm:$0xff]
        %v870 = vld [vmem:[#allocation2 + $0x38] sm:$0xff]
        %v871 = vld [vmem:[#allocation2 + $0x40] sm:$0xff]
        %v872 = vld [vmem:[#allocation2 + $0x48] sm:$0xff]
        %v873 = vld [vmem:[#allocation2 + $0x50] sm:$0xff]
        %v874 = vld [vmem:[#allocation2 + $0x58] sm:$0xff]
        %v875 = vld [vmem:[#allocation2 + $0x60] sm:$0xff]
        %v876 = vld [vmem:[#allocation2 + $0x68] sm:$0xff]
        %v877 = vld [vmem:[#allocation2 + $0x70] sm:$0xff]
        %v878 = vld [vmem:[#allocation2 + $0x78] sm:$0xff]
        %v879 = vld [vmem:[#allocation2 + $0x80] sm:$0xff]
        %v880 = vld [vmem:[#allocation2 + $0x88] sm:$0xff]
        %v881 = vld [vmem:[#allocation2 + $0x90] sm:$0xff]
        %v882 = vld [vmem:[#allocation2 + $0x98] sm:$0xff]
        %v883 = vld [vmem:[#allocation2 + $0xa0] sm:$0xff]
        %v884 = vld [vmem:[#allocation2 + $0xa8] sm:$0xff]
        %v885 = vld [vmem:[#allocation2 + $0xb0] sm:$0xff]
        %v886 = vld [vmem:[#allocation2 + $0xb8] sm:$0xff]
        %v887 = vld [vmem:[#allocation2 + $0xc0] sm:$0xff]
        %v888 = vld [vmem:[#allocation2 + $0xc8] sm:$0xff]
        %v889 = vld [vmem:[#allocation2 + $0xd0] sm:$0xff]
        %v890 = vld [vmem:[#allocation2 + $0xd8] sm:$0xff]
        %v891 = vld [vmem:[#allocation2 + $0xe0] sm:$0xff]
        %v892 = vld [vmem:[#allocation2 + $0xe8] sm:$0xff]
        %v893 = vld [vmem:[#allocation2 + $0xf0] sm:$0xff]
        %v894 = vld [vmem:[#allocation2 + $0xf8] sm:$0xff]
        %v895 = vld [vmem:[#allocation2 + $0x100] sm:$0xff]
        %v896 = vld [vmem:[#allocation2 + $0x108] sm:$0xff]
        %v897 = vld [vmem:[#allocation2 + $0x110] sm:$0xff]
        %v898 = vld [vmem:[#allocation2 + $0x118] sm:$0xff]
        %v899 = vld [vmem:[#allocation2 + $0x120] sm:$0xff]
        %v900 = vld [vmem:[#allocation2 + $0x128] sm:$0xff]
        %v901 = vld [vmem:[#allocation2 + $0x130] sm:$0xff]
        %v902 = vld [vmem:[#allocation2 + $0x138] sm:$0xff]
        %v903 = vld [vmem:[#allocation2 + $0x140] sm:$0xff]
        %v904 = vld [vmem:[#allocation2 + $0x148] sm:$0xff]
        %v905 = vld [vmem:[#allocation2 + $0x150] sm:$0xff]
        %v906 = vld [vmem:[#allocation2 + $0x158] sm:$0xff]
        %v907 = vld [vmem:[#allocation2 + $0x160] sm:$0xff]
        %v908 = vld [vmem:[#allocation2 + $0x168] sm:$0xff]
        %v909 = vld [vmem:[#allocation2 + $0x170] sm:$0xff]
        %v910 = vld [vmem:[#allocation2 + $0x178] sm:$0xff]
        %v911 = vld [vmem:[#allocation2 + $0x180] sm:$0xff]
        %v912 = vpack.c.bf16 %v865, %v864
        %v913 = vpack.c.bf16 %v867, %v866
        %v914 = vpack.c.bf16 %v869, %v868
        %v915 = vpack.c.bf16 %v871, %v870
        %v916 = vpack.c.bf16 %v873, %v872
        %v917 = vpack.c.bf16 %v875, %v874
        %v918 = vpack.c.bf16 %v877, %v876
        %v919 = vpack.c.bf16 %v879, %v878
        %v920 = vpack.c.bf16 %v881, %v880
        %v921 = vpack.c.bf16 %v883, %v882
        %v922 = vpack.c.bf16 %v885, %v884
        %v923 = vpack.c.bf16 %v887, %v886
        %v924 = vpack.c.bf16 %v889, %v888
        %v925 = vpack.c.bf16 %v891, %v890
        %v926 = vpack.c.bf16 %v893, %v892
        %v927 = vpack.c.bf16 %v895, %v894
        %v928 = vpack.c.bf16 %v897, %v896
        %v929 = vpack.c.bf16 %v899, %v898
        %v930 = vpack.c.bf16 %v901, %v900
        %v931 = vpack.c.bf16 %v903, %v902
        %v932 = vpack.c.bf16 %v905, %v904
        %v933 = vpack.c.bf16 %v907, %v906
        %v934 = vpack.c.bf16 %v909, %v908
        %v935 = vpack.c.bf16 %v911, %v910
        %s936 = scalar_lea.vmem [#allocation8], 64
        %v937 = vld [vmem:[%s936] sm:$0xf]
        %v938 = vld [vmem:[%s936 + $0x4] sm:$0xf]
        %v939 = vld [vmem:[%s936 + $0x8] sm:$0xf]
        %v940 = vld [vmem:[%s936 + $0xc] sm:$0xf]
        %v941 = vld [vmem:[%s936 + $0x10] sm:$0xf]
        %v942 = vld [vmem:[%s936 + $0x14] sm:$0xf]
        %v943 = vld [vmem:[%s936 + $0x18] sm:$0xf]
        %v944 = vld [vmem:[%s936 + $0x1c] sm:$0xf]
        %v945 = vld [vmem:[%s936 + $0x20] sm:$0xf]
        %v946 = vld [vmem:[%s936 + $0x24] sm:$0xf]
        %v947 = vld [vmem:[%s936 + $0x28] sm:$0xf]
        %v948 = vld [vmem:[%s936 + $0x2c] sm:$0xf]
        %v949 = vld [vmem:[%s936 + $0x30] sm:$0xf]
        %v950 = vld [vmem:[%s936 + $0x34] sm:$0xf]
        %v951 = vld [vmem:[%s936 + $0x38] sm:$0xf]
        %v952 = vld [vmem:[%s936 + $0x3c] sm:$0xf]
        %v969 = vunpack.c.l.b16 %v937
        %v970 = vunpack.c.l.b16 %v938
        %v971 = vunpack.c.l.b16 %v939
        %v972 = vunpack.c.l.b16 %v940
        %v973 = vunpack.c.l.b16 %v941
        %v974 = vunpack.c.l.b16 %v942
        %v975 = vunpack.c.l.b16 %v943
        %v976 = vunpack.c.l.b16 %v944
        %v977 = vunpack.c.l.b16 %v945
        %v978 = vunpack.c.l.b16 %v946
        %v979 = vunpack.c.l.b16 %v947
        %v980 = vunpack.c.l.b16 %v948
        %v981 = vunpack.c.l.b16 %v949
        %v982 = vunpack.c.l.b16 %v950
        %v983 = vunpack.c.l.b16 %v951
        %v984 = vunpack.c.l.b16 %v952
        %v985 = vpack.c.b16 %v970, %v969
        %v986 = vpack.c.b16 %v972, %v971
        %v987 = vpack.c.b16 %v974, %v973
        %v988 = vpack.c.b16 %v976, %v975
        %v989 = vpack.c.b16 %v978, %v977
        %v990 = vpack.c.b16 %v980, %v979
        %v991 = vpack.c.b16 %v982, %v981
        %v992 = vpack.c.b16 %v984, %v983
        %1001 = vmatpush.bf16.msra.mxu0 %v992
        %1002 = vmatpush.bf16.msra.mxu0 %v991
        %1003 = vmatpush.bf16.msra.mxu0 %v990
        %1004 = vmatpush.bf16.msra.mxu0 %v989
        %1005 = vmatpush.bf16.msra.mxu0 %v988
        %1006 = vmatpush.bf16.msra.mxu0 %v987
        %1007 = vmatpush.bf16.msra.mxu0 %v986
        %1008 = vmatpush.bf16.msra.mxu0 %v985
        %1009 = vmatmul.bf16.gmra.mxu0 %v912
        %v1010 = vpop.f32.mrf.mxu0
        %v1011 = vadd.f32 0.0, %v1010
        %v1012 = vpop.f32.mrf.mxu0
        %v1013 = vadd.f32 0.0, %v1012
        %1014 = vmatmul.bf16.gmra.mxu0 %v913
        %v1015 = vpop.f32.mrf.mxu0
        %v1016 = vpop.f32.mrf.mxu0
        %v1017 = vadd.f32 0.0, %v1016
        %1018 = vmatmul.bf16.gmra.mxu0 %v914
        %v1019 = vpop.f32.mrf.mxu0
        %v1020 = vadd.f32 0.0, %v1019
        %v1021 = vpop.f32.mrf.mxu0
        %1022 = vmatmul.bf16.gmra.mxu0 %v915
        %v1023 = vpop.f32.mrf.mxu0
        %v1024 = vadd.f32 0.0, %v1023
        %v1025 = vpop.f32.mrf.mxu0
        %v1026 = vadd.f32 0.0, %v1025
        %1027 = vmatmul.bf16.gmra.mxu0 %v916
        %v1028 = vpop.f32.mrf.mxu0
        %v1029 = vpop.f32.mrf.mxu0
        %v1030 = vadd.f32 0.0, %v1029
        %1031 = vmatmul.bf16.gmra.mxu0 %v917
        %v1032 = vpop.f32.mrf.mxu0
        %v1033 = vadd.f32 0.0, %v1032
        %v1034 = vpop.f32.mrf.mxu0
        %1035 = vmatmul.bf16.gmra.mxu0 %v918
        %v1036 = vpop.f32.mrf.mxu0
        %v1037 = vadd.f32 0.0, %v1036
        %v1038 = vpop.f32.mrf.mxu0
        %v1039 = vadd.f32 0.0, %v1038
        %1040 = vmatmul.bf16.gmra.mxu0 %v919
        %v1041 = vpop.f32.mrf.mxu0
        %v1042 = vpop.f32.mrf.mxu0
        %v1043 = vadd.f32 0.0, %v1042
        %1044 = vmatmul.bf16.gmra.mxu0 %v920
        %v1045 = vpop.f32.mrf.mxu0
        %v1046 = vadd.f32 0.0, %v1045
        %v1047 = vpop.f32.mrf.mxu0
        %1048 = vmatmul.bf16.gmra.mxu0 %v921
        %v1049 = vpop.f32.mrf.mxu0
        %v1050 = vadd.f32 0.0, %v1049
        %v1051 = vpop.f32.mrf.mxu0
        %v1052 = vadd.f32 0.0, %v1051
        %1053 = vmatmul.bf16.gmra.mxu0 %v922
        %v1054 = vpop.f32.mrf.mxu0
        %v1055 = vpop.f32.mrf.mxu0
        %v1056 = vadd.f32 0.0, %v1055
        %1057 = vmatmul.bf16.gmra.mxu0 %v923
        %v1058 = vpop.f32.mrf.mxu0
        %v1059 = vadd.f32 0.0, %v1058
        %v1060 = vpop.f32.mrf.mxu0
        %1061 = vmatmul.bf16.gmra.mxu0 %v924
        %v1062 = vpop.f32.mrf.mxu0
        %v1063 = vadd.f32 0.0, %v1062
        %v1064 = vpop.f32.mrf.mxu0
        %v1065 = vadd.f32 0.0, %v1064
        %1066 = vmatmul.bf16.gmra.mxu0 %v925
        %v1067 = vpop.f32.mrf.mxu0
        %v1068 = vpop.f32.mrf.mxu0
        %v1069 = vadd.f32 0.0, %v1068
        %1070 = vmatmul.bf16.gmra.mxu0 %v926
        %v1071 = vpop.f32.mrf.mxu0
        %v1072 = vadd.f32 0.0, %v1071
        %v1073 = vpop.f32.mrf.mxu0
        %1074 = vmatmul.bf16.gmra.mxu0 %v927
        %v1075 = vpop.f32.mrf.mxu0
        %v1076 = vadd.f32 0.0, %v1075
        %v1077 = vpop.f32.mrf.mxu0
        %v1078 = vadd.f32 0.0, %v1077
        %1079 = vmatmul.bf16.gmra.mxu0 %v928
        %v1080 = vpop.f32.mrf.mxu0
        %v1081 = vpop.f32.mrf.mxu0
        %v1082 = vadd.f32 0.0, %v1081
        %1083 = vmatmul.bf16.gmra.mxu0 %v929
        %v1084 = vpop.f32.mrf.mxu0
        %v1085 = vadd.f32 0.0, %v1084
        %v1086 = vpop.f32.mrf.mxu0
        %1087 = vmatmul.bf16.gmra.mxu0 %v930
        %v1088 = vpop.f32.mrf.mxu0
        %v1089 = vadd.f32 0.0, %v1088
        %v1090 = vpop.f32.mrf.mxu0
        %v1091 = vadd.f32 0.0, %v1090
        %1092 = vmatmul.bf16.gmra.mxu0 %v931
        %v1093 = vpop.f32.mrf.mxu0
        %v1094 = vpop.f32.mrf.mxu0
        %v1095 = vadd.f32 0.0, %v1094
        %1096 = vmatmul.bf16.gmra.mxu0 %v932
        %v1097 = vpop.f32.mrf.mxu0
        %v1098 = vadd.f32 0.0, %v1097
        %v1099 = vpop.f32.mrf.mxu0
        %1100 = vmatmul.bf16.gmra.mxu0 %v933
        %v1101 = vpop.f32.mrf.mxu0
        %v1102 = vadd.f32 0.0, %v1101
        %v1103 = vpop.f32.mrf.mxu0
        %v1104 = vadd.f32 0.0, %v1103
        %1105 = vmatmul.bf16.gmra.mxu0 %v934
        %v1106 = vpop.f32.mrf.mxu0
        %v1107 = vpop.f32.mrf.mxu0
        %v1108 = vadd.f32 0.0, %v1107
        %1109 = vmatmul.bf16.gmra.mxu0 %v935
        %v1110 = vpop.f32.mrf.mxu0
        %v1111 = vadd.f32 0.0, %v1110
        %v1112 = vpop.f32.mrf.mxu0
        %1113 = vdwg.mxu0
        %v1130 = vunpack.c.l.b16 %v848
        %v1131 = vunpack.c.l.b16 %v849
        %v1132 = vunpack.c.l.b16 %v850
        %v1133 = vunpack.c.l.b16 %v851
        %v1134 = vunpack.c.l.b16 %v852
        %v1135 = vunpack.c.l.b16 %v853
        %v1136 = vunpack.c.l.b16 %v854
        %v1137 = vunpack.c.l.b16 %v855
        %v1138 = vunpack.c.l.b16 %v856
        %v1139 = vunpack.c.l.b16 %v857
        %v1140 = vunpack.c.l.b16 %v858
        %v1141 = vunpack.c.l.b16 %v859
        %v1142 = vunpack.c.l.b16 %v860
        %v1143 = vunpack.c.l.b16 %v861
        %v1144 = vunpack.c.l.b16 %v862
        %v1145 = vunpack.c.l.b16 %v863
        %v1146 = vpack.c.b16 %v1131, %v1130
        %v1147 = vpack.c.b16 %v1133, %v1132
        %v1148 = vpack.c.b16 %v1135, %v1134
        %v1149 = vpack.c.b16 %v1137, %v1136
        %v1150 = vpack.c.b16 %v1139, %v1138
        %v1151 = vpack.c.b16 %v1141, %v1140
        %v1152 = vpack.c.b16 %v1143, %v1142
        %v1153 = vpack.c.b16 %v1145, %v1144
        %1162 = vmatpush.bf16.msra.mxu0 %v1153
        %1163 = vmatpush.bf16.msra.mxu0 %v1152
        %1164 = vmatpush.bf16.msra.mxu0 %v1151
        %1165 = vmatpush.bf16.msra.mxu0 %v1150
        %1166 = vmatpush.bf16.msra.mxu0 %v1149
        %1167 = vmatpush.bf16.msra.mxu0 %v1148
        %1168 = vmatpush.bf16.msra.mxu0 %v1147
        %1169 = vmatpush.bf16.msra.mxu0 %v1146
        %1170 = vmatmul.bf16.gmra.mxu0 %v824
        %v1171 = vpop.f32.mrf.mxu0
        %v1172 = vadd.f32 %v1011, %v1171
        %v1173 = vpop.f32.mrf.mxu0
        %v1174 = vadd.f32 %v1013, %v1173
        %1175 = vmatmul.bf16.gmra.mxu0 %v825
        %v1176 = vpop.f32.mrf.mxu0
        %v1177 = vpop.f32.mrf.mxu0
        %v1178 = vadd.f32 %v1017, %v1177
        %1179 = vmatmul.bf16.gmra.mxu0 %v826
        %v1180 = vpop.f32.mrf.mxu0
        %v1181 = vadd.f32 %v1020, %v1180
        %v1182 = vpop.f32.mrf.mxu0
        %1183 = vmatmul.bf16.gmra.mxu0 %v827
        %v1184 = vpop.f32.mrf.mxu0
        %v1185 = vadd.f32 %v1024, %v1184
        %v1186 = vpop.f32.mrf.mxu0
        %v1187 = vadd.f32 %v1026, %v1186
        %1188 = vmatmul.bf16.gmra.mxu0 %v828
        %v1189 = vpop.f32.mrf.mxu0
        %v1190 = vpop.f32.mrf.mxu0
        %v1191 = vadd.f32 %v1030, %v1190
        %1192 = vmatmul.bf16.gmra.mxu0 %v829
        %v1193 = vpop.f32.mrf.mxu0
        %v1194 = vadd.f32 %v1033, %v1193
        %v1195 = vpop.f32.mrf.mxu0
        %1196 = vmatmul.bf16.gmra.mxu0 %v830
        %v1197 = vpop.f32.mrf.mxu0
        %v1198 = vadd.f32 %v1037, %v1197
        %v1199 = vpop.f32.mrf.mxu0
        %v1200 = vadd.f32 %v1039, %v1199
        %1201 = vmatmul.bf16.gmra.mxu0 %v831
        %v1202 = vpop.f32.mrf.mxu0
        %v1203 = vpop.f32.mrf.mxu0
        %v1204 = vadd.f32 %v1043, %v1203
        %1205 = vmatmul.bf16.gmra.mxu0 %v832
        %v1206 = vpop.f32.mrf.mxu0
        %v1207 = vadd.f32 %v1046, %v1206
        %v1208 = vpop.f32.mrf.mxu0
        %1209 = vmatmul.bf16.gmra.mxu0 %v833
        %v1210 = vpop.f32.mrf.mxu0
        %v1211 = vadd.f32 %v1050, %v1210
        %v1212 = vpop.f32.mrf.mxu0
        %v1213 = vadd.f32 %v1052, %v1212
        %1214 = vmatmul.bf16.gmra.mxu0 %v834
        %v1215 = vpop.f32.mrf.mxu0
        %v1216 = vpop.f32.mrf.mxu0
        %v1217 = vadd.f32 %v1056, %v1216
        %1218 = vmatmul.bf16.gmra.mxu0 %v835
        %v1219 = vpop.f32.mrf.mxu0
        %v1220 = vadd.f32 %v1059, %v1219
        %v1221 = vpop.f32.mrf.mxu0
        %1222 = vmatmul.bf16.gmra.mxu0 %v836
        %v1223 = vpop.f32.mrf.mxu0
        %v1224 = vadd.f32 %v1063, %v1223
        %v1225 = vpop.f32.mrf.mxu0
        %v1226 = vadd.f32 %v1065, %v1225
        %1227 = vmatmul.bf16.gmra.mxu0 %v837
        %v1228 = vpop.f32.mrf.mxu0
        %v1229 = vpop.f32.mrf.mxu0
        %v1230 = vadd.f32 %v1069, %v1229
        %1231 = vmatmul.bf16.gmra.mxu0 %v838
        %v1232 = vpop.f32.mrf.mxu0
        %v1233 = vadd.f32 %v1072, %v1232
        %v1234 = vpop.f32.mrf.mxu0
        %1235 = vmatmul.bf16.gmra.mxu0 %v839
        %v1236 = vpop.f32.mrf.mxu0
        %v1237 = vadd.f32 %v1076, %v1236
        %v1238 = vpop.f32.mrf.mxu0
        %v1239 = vadd.f32 %v1078, %v1238
        %1240 = vmatmul.bf16.gmra.mxu0 %v840
        %v1241 = vpop.f32.mrf.mxu0
        %v1242 = vpop.f32.mrf.mxu0
        %v1243 = vadd.f32 %v1082, %v1242
        %1244 = vmatmul.bf16.gmra.mxu0 %v841
        %v1245 = vpop.f32.mrf.mxu0
        %v1246 = vadd.f32 %v1085, %v1245
        %v1247 = vpop.f32.mrf.mxu0
        %1248 = vmatmul.bf16.gmra.mxu0 %v842
        %v1249 = vpop.f32.mrf.mxu0
        %v1250 = vadd.f32 %v1089, %v1249
        %v1251 = vpop.f32.mrf.mxu0
        %v1252 = vadd.f32 %v1091, %v1251
        %1253 = vmatmul.bf16.gmra.mxu0 %v843
        %v1254 = vpop.f32.mrf.mxu0
        %v1255 = vpop.f32.mrf.mxu0
        %v1256 = vadd.f32 %v1095, %v1255
        %1257 = vmatmul.bf16.gmra.mxu0 %v844
        %v1258 = vpop.f32.mrf.mxu0
        %v1259 = vadd.f32 %v1098, %v1258
        %v1260 = vpop.f32.mrf.mxu0
        %1261 = vmatmul.bf16.gmra.mxu0 %v845
        %v1262 = vpop.f32.mrf.mxu0
        %v1263 = vadd.f32 %v1102, %v1262
        %v1264 = vpop.f32.mrf.mxu0
        %v1265 = vadd.f32 %v1104, %v1264
        %1266 = vmatmul.bf16.gmra.mxu0 %v846
        %v1267 = vpop.f32.mrf.mxu0
        %v1268 = vpop.f32.mrf.mxu0
        %v1269 = vadd.f32 %v1108, %v1268
        %1270 = vmatmul.bf16.gmra.mxu0 %v847
        %v1271 = vpop.f32.mrf.mxu0
        %v1272 = vadd.f32 %v1111, %v1271
        %v1273 = vpop.f32.mrf.mxu0
        %1274 = vdwg.mxu0
        %v1275 = vld [vmem:[#allocation2 + $0x9] sm:$0xff]
        %v1276 = vld [vmem:[#allocation2 + $0x11] sm:$0xff]
        %v1277 = vld [vmem:[#allocation2 + $0x19] sm:$0xff]
        %v1278 = vld [vmem:[#allocation2 + $0x21] sm:$0xff]
        %v1279 = vld [vmem:[#allocation2 + $0x29] sm:$0xff]
        %v1280 = vld [vmem:[#allocation2 + $0x31] sm:$0xff]
        %v1281 = vld [vmem:[#allocation2 + $0x39] sm:$0xff]
        %v1282 = vld [vmem:[#allocation2 + $0x41] sm:$0xff]
        %v1283 = vld [vmem:[#allocation2 + $0x49] sm:$0xff]
        %v1284 = vld [vmem:[#allocation2 + $0x51] sm:$0xff]
        %v1285 = vld [vmem:[#allocation2 + $0x59] sm:$0xff]
        %v1286 = vld [vmem:[#allocation2 + $0x61] sm:$0xff]
        %v1287 = vld [vmem:[#allocation2 + $0x69] sm:$0xff]
        %v1288 = vld [vmem:[#allocation2 + $0x71] sm:$0xff]
        %v1289 = vld [vmem:[#allocation2 + $0x79] sm:$0xff]
        %v1290 = vld [vmem:[#allocation2 + $0x81] sm:$0xff]
        %v1291 = vld [vmem:[#allocation2 + $0x89] sm:$0xff]
        %v1292 = vld [vmem:[#allocation2 + $0x91] sm:$0xff]
        %v1293 = vld [vmem:[#allocation2 + $0x99] sm:$0xff]
        %v1294 = vld [vmem:[#allocation2 + $0xa1] sm:$0xff]
        %v1295 = vld [vmem:[#allocation2 + $0xa9] sm:$0xff]
        %v1296 = vld [vmem:[#allocation2 + $0xb1] sm:$0xff]
        %v1297 = vld [vmem:[#allocation2 + $0xb9] sm:$0xff]
        %v1298 = vld [vmem:[#allocation2 + $0xc1] sm:$0xff]
        %v1299 = vld [vmem:[#allocation2 + $0xc9] sm:$0xff]
        %v1300 = vld [vmem:[#allocation2 + $0xd1] sm:$0xff]
        %v1301 = vld [vmem:[#allocation2 + $0xd9] sm:$0xff]
        %v1302 = vld [vmem:[#allocation2 + $0xe1] sm:$0xff]
        %v1303 = vld [vmem:[#allocation2 + $0xe9] sm:$0xff]
        %v1304 = vld [vmem:[#allocation2 + $0xf1] sm:$0xff]
        %v1305 = vld [vmem:[#allocation2 + $0xf9] sm:$0xff]
        %v1306 = vld [vmem:[#allocation2 + $0x101] sm:$0xff]
        %v1307 = vld [vmem:[#allocation2 + $0x109] sm:$0xff]
        %v1308 = vld [vmem:[#allocation2 + $0x111] sm:$0xff]
        %v1309 = vld [vmem:[#allocation2 + $0x119] sm:$0xff]
        %v1310 = vld [vmem:[#allocation2 + $0x121] sm:$0xff]
        %v1311 = vld [vmem:[#allocation2 + $0x129] sm:$0xff]
        %v1312 = vld [vmem:[#allocation2 + $0x131] sm:$0xff]
        %v1313 = vld [vmem:[#allocation2 + $0x139] sm:$0xff]
        %v1314 = vld [vmem:[#allocation2 + $0x141] sm:$0xff]
        %v1315 = vld [vmem:[#allocation2 + $0x149] sm:$0xff]
        %v1316 = vld [vmem:[#allocation2 + $0x151] sm:$0xff]
        %v1317 = vld [vmem:[#allocation2 + $0x159] sm:$0xff]
        %v1318 = vld [vmem:[#allocation2 + $0x161] sm:$0xff]
        %v1319 = vld [vmem:[#allocation2 + $0x169] sm:$0xff]
        %v1320 = vld [vmem:[#allocation2 + $0x171] sm:$0xff]
        %v1321 = vld [vmem:[#allocation2 + $0x179] sm:$0xff]
        %v1322 = vld [vmem:[#allocation2 + $0x181] sm:$0xff]
        %v1323 = vpack.c.bf16 %v1276, %v1275
        %v1324 = vpack.c.bf16 %v1278, %v1277
        %v1325 = vpack.c.bf16 %v1280, %v1279
        %v1326 = vpack.c.bf16 %v1282, %v1281
        %v1327 = vpack.c.bf16 %v1284, %v1283
        %v1328 = vpack.c.bf16 %v1286, %v1285
        %v1329 = vpack.c.bf16 %v1288, %v1287
        %v1330 = vpack.c.bf16 %v1290, %v1289
        %v1331 = vpack.c.bf16 %v1292, %v1291
        %v1332 = vpack.c.bf16 %v1294, %v1293
        %v1333 = vpack.c.bf16 %v1296, %v1295
        %v1334 = vpack.c.bf16 %v1298, %v1297
        %v1335 = vpack.c.bf16 %v1300, %v1299
        %v1336 = vpack.c.bf16 %v1302, %v1301
        %v1337 = vpack.c.bf16 %v1304, %v1303
        %v1338 = vpack.c.bf16 %v1306, %v1305
        %v1339 = vpack.c.bf16 %v1308, %v1307
        %v1340 = vpack.c.bf16 %v1310, %v1309
        %v1341 = vpack.c.bf16 %v1312, %v1311
        %v1342 = vpack.c.bf16 %v1314, %v1313
        %v1343 = vpack.c.bf16 %v1316, %v1315
        %v1344 = vpack.c.bf16 %v1318, %v1317
        %v1345 = vpack.c.bf16 %v1320, %v1319
        %v1346 = vpack.c.bf16 %v1322, %v1321
        %s1347 = scalar_lea.vmem [#allocation8], 128
        %v1348 = vld [vmem:[%s1347] sm:$0xf]
        %v1349 = vld [vmem:[%s1347 + $0x4] sm:$0xf]
        %v1350 = vld [vmem:[%s1347 + $0x8] sm:$0xf]
        %v1351 = vld [vmem:[%s1347 + $0xc] sm:$0xf]
        %v1352 = vld [vmem:[%s1347 + $0x10] sm:$0xf]
        %v1353 = vld [vmem:[%s1347 + $0x14] sm:$0xf]
        %v1354 = vld [vmem:[%s1347 + $0x18] sm:$0xf]
        %v1355 = vld [vmem:[%s1347 + $0x1c] sm:$0xf]
        %v1356 = vld [vmem:[%s1347 + $0x20] sm:$0xf]
        %v1357 = vld [vmem:[%s1347 + $0x24] sm:$0xf]
        %v1358 = vld [vmem:[%s1347 + $0x28] sm:$0xf]
        %v1359 = vld [vmem:[%s1347 + $0x2c] sm:$0xf]
        %v1360 = vld [vmem:[%s1347 + $0x30] sm:$0xf]
        %v1361 = vld [vmem:[%s1347 + $0x34] sm:$0xf]
        %v1362 = vld [vmem:[%s1347 + $0x38] sm:$0xf]
        %v1363 = vld [vmem:[%s1347 + $0x3c] sm:$0xf]
        %v1380 = vunpack.c.l.b16 %v1348
        %v1381 = vunpack.c.l.b16 %v1349
        %v1382 = vunpack.c.l.b16 %v1350
        %v1383 = vunpack.c.l.b16 %v1351
        %v1384 = vunpack.c.l.b16 %v1352
        %v1385 = vunpack.c.l.b16 %v1353
        %v1386 = vunpack.c.l.b16 %v1354
        %v1387 = vunpack.c.l.b16 %v1355
        %v1388 = vunpack.c.l.b16 %v1356
        %v1389 = vunpack.c.l.b16 %v1357
        %v1390 = vunpack.c.l.b16 %v1358
        %v1391 = vunpack.c.l.b16 %v1359
        %v1392 = vunpack.c.l.b16 %v1360
        %v1393 = vunpack.c.l.b16 %v1361
        %v1394 = vunpack.c.l.b16 %v1362
        %v1395 = vunpack.c.l.b16 %v1363
        %v1396 = vpack.c.b16 %v1381, %v1380
        %v1397 = vpack.c.b16 %v1383, %v1382
        %v1398 = vpack.c.b16 %v1385, %v1384
        %v1399 = vpack.c.b16 %v1387, %v1386
        %v1400 = vpack.c.b16 %v1389, %v1388
        %v1401 = vpack.c.b16 %v1391, %v1390
        %v1402 = vpack.c.b16 %v1393, %v1392
        %v1403 = vpack.c.b16 %v1395, %v1394
        %1412 = vmatpush.bf16.msra.mxu0 %v1403
        %1413 = vmatpush.bf16.msra.mxu0 %v1402
        %1414 = vmatpush.bf16.msra.mxu0 %v1401
        %1415 = vmatpush.bf16.msra.mxu0 %v1400
        %1416 = vmatpush.bf16.msra.mxu0 %v1399
        %1417 = vmatpush.bf16.msra.mxu0 %v1398
        %1418 = vmatpush.bf16.msra.mxu0 %v1397
        %1419 = vmatpush.bf16.msra.mxu0 %v1396
        %1420 = vmatmul.bf16.gmra.mxu0 %v1323
        %v1421 = vpop.f32.mrf.mxu0
        %v1422 = vadd.f32 0.0, %v1421
        %v1423 = vpop.f32.mrf.mxu0
        %v1424 = vadd.f32 0.0, %v1423
        %1425 = vmatmul.bf16.gmra.mxu0 %v1324
        %v1426 = vpop.f32.mrf.mxu0
        %v1427 = vpop.f32.mrf.mxu0
        %v1428 = vadd.f32 0.0, %v1427
        %1429 = vmatmul.bf16.gmra.mxu0 %v1325
        %v1430 = vpop.f32.mrf.mxu0
        %v1431 = vadd.f32 0.0, %v1430
        %v1432 = vpop.f32.mrf.mxu0
        %1433 = vmatmul.bf16.gmra.mxu0 %v1326
        %v1434 = vpop.f32.mrf.mxu0
        %v1435 = vadd.f32 0.0, %v1434
        %v1436 = vpop.f32.mrf.mxu0
        %v1437 = vadd.f32 0.0, %v1436
        %1438 = vmatmul.bf16.gmra.mxu0 %v1327
        %v1439 = vpop.f32.mrf.mxu0
        %v1440 = vpop.f32.mrf.mxu0
        %v1441 = vadd.f32 0.0, %v1440
        %1442 = vmatmul.bf16.gmra.mxu0 %v1328
        %v1443 = vpop.f32.mrf.mxu0
        %v1444 = vadd.f32 0.0, %v1443
        %v1445 = vpop.f32.mrf.mxu0
        %1446 = vmatmul.bf16.gmra.mxu0 %v1329
        %v1447 = vpop.f32.mrf.mxu0
        %v1448 = vadd.f32 0.0, %v1447
        %v1449 = vpop.f32.mrf.mxu0
        %v1450 = vadd.f32 0.0, %v1449
        %1451 = vmatmul.bf16.gmra.mxu0 %v1330
        %v1452 = vpop.f32.mrf.mxu0
        %v1453 = vpop.f32.mrf.mxu0
        %v1454 = vadd.f32 0.0, %v1453
        %1455 = vmatmul.bf16.gmra.mxu0 %v1331
        %v1456 = vpop.f32.mrf.mxu0
        %v1457 = vadd.f32 0.0, %v1456
        %v1458 = vpop.f32.mrf.mxu0
        %1459 = vmatmul.bf16.gmra.mxu0 %v1332
        %v1460 = vpop.f32.mrf.mxu0
        %v1461 = vadd.f32 0.0, %v1460
        %v1462 = vpop.f32.mrf.mxu0
        %v1463 = vadd.f32 0.0, %v1462
        %1464 = vmatmul.bf16.gmra.mxu0 %v1333
        %v1465 = vpop.f32.mrf.mxu0
        %v1466 = vpop.f32.mrf.mxu0
        %v1467 = vadd.f32 0.0, %v1466
        %1468 = vmatmul.bf16.gmra.mxu0 %v1334
        %v1469 = vpop.f32.mrf.mxu0
        %v1470 = vadd.f32 0.0, %v1469
        %v1471 = vpop.f32.mrf.mxu0
        %1472 = vmatmul.bf16.gmra.mxu0 %v1335
        %v1473 = vpop.f32.mrf.mxu0
        %v1474 = vadd.f32 0.0, %v1473
        %v1475 = vpop.f32.mrf.mxu0
        %v1476 = vadd.f32 0.0, %v1475
        %1477 = vmatmul.bf16.gmra.mxu0 %v1336
        %v1478 = vpop.f32.mrf.mxu0
        %v1479 = vpop.f32.mrf.mxu0
        %v1480 = vadd.f32 0.0, %v1479
        %1481 = vmatmul.bf16.gmra.mxu0 %v1337
        %v1482 = vpop.f32.mrf.mxu0
        %v1483 = vadd.f32 0.0, %v1482
        %v1484 = vpop.f32.mrf.mxu0
        %1485 = vmatmul.bf16.gmra.mxu0 %v1338
        %v1486 = vpop.f32.mrf.mxu0
        %v1487 = vadd.f32 0.0, %v1486
        %v1488 = vpop.f32.mrf.mxu0
        %v1489 = vadd.f32 0.0, %v1488
        %1490 = vmatmul.bf16.gmra.mxu0 %v1339
        %v1491 = vpop.f32.mrf.mxu0
        %v1492 = vpop.f32.mrf.mxu0
        %v1493 = vadd.f32 0.0, %v1492
        %1494 = vmatmul.bf16.gmra.mxu0 %v1340
        %v1495 = vpop.f32.mrf.mxu0
        %v1496 = vadd.f32 0.0, %v1495
        %v1497 = vpop.f32.mrf.mxu0
        %1498 = vmatmul.bf16.gmra.mxu0 %v1341
        %v1499 = vpop.f32.mrf.mxu0
        %v1500 = vadd.f32 0.0, %v1499
        %v1501 = vpop.f32.mrf.mxu0
        %v1502 = vadd.f32 0.0, %v1501
        %1503 = vmatmul.bf16.gmra.mxu0 %v1342
        %v1504 = vpop.f32.mrf.mxu0
        %v1505 = vpop.f32.mrf.mxu0
        %v1506 = vadd.f32 0.0, %v1505
        %1507 = vmatmul.bf16.gmra.mxu0 %v1343
        %v1508 = vpop.f32.mrf.mxu0
        %v1509 = vadd.f32 0.0, %v1508
        %v1510 = vpop.f32.mrf.mxu0
        %1511 = vmatmul.bf16.gmra.mxu0 %v1344
        %v1512 = vpop.f32.mrf.mxu0
        %v1513 = vadd.f32 0.0, %v1512
        %v1514 = vpop.f32.mrf.mxu0
        %v1515 = vadd.f32 0.0, %v1514
        %1516 = vmatmul.bf16.gmra.mxu0 %v1345
        %v1517 = vpop.f32.mrf.mxu0
        %v1518 = vpop.f32.mrf.mxu0
        %v1519 = vadd.f32 0.0, %v1518
        %1520 = vmatmul.bf16.gmra.mxu0 %v1346
        %v1521 = vpop.f32.mrf.mxu0
        %v1522 = vadd.f32 0.0, %v1521
        %v1523 = vpop.f32.mrf.mxu0
        %1524 = vdwg.mxu0
        %v1525 = vadd.f32 %v1172, %v1422
        %v1526 = vadd.f32 %v1174, %v1424
        %v1527 = vadd.f32 %v1178, %v1428
        %v1528 = vadd.f32 %v1181, %v1431
        %v1529 = vadd.f32 %v1185, %v1435
        %v1530 = vadd.f32 %v1187, %v1437
        %v1531 = vadd.f32 %v1191, %v1441
        %v1532 = vadd.f32 %v1194, %v1444
        %v1533 = vadd.f32 %v1198, %v1448
        %v1534 = vadd.f32 %v1200, %v1450
        %v1535 = vadd.f32 %v1204, %v1454
        %v1536 = vadd.f32 %v1207, %v1457
        %v1537 = vadd.f32 %v1211, %v1461
        %v1538 = vadd.f32 %v1213, %v1463
        %v1539 = vadd.f32 %v1217, %v1467
        %v1540 = vadd.f32 %v1220, %v1470
        %v1541 = vadd.f32 %v1224, %v1474
        %v1542 = vadd.f32 %v1226, %v1476
        %v1543 = vadd.f32 %v1230, %v1480
        %v1544 = vadd.f32 %v1233, %v1483
        %v1545 = vadd.f32 %v1237, %v1487
        %v1546 = vadd.f32 %v1239, %v1489
        %v1547 = vadd.f32 %v1243, %v1493
        %v1548 = vadd.f32 %v1246, %v1496
        %v1549 = vadd.f32 %v1250, %v1500
        %v1550 = vadd.f32 %v1252, %v1502
        %v1551 = vadd.f32 %v1256, %v1506
        %v1552 = vadd.f32 %v1259, %v1509
        %v1553 = vadd.f32 %v1263, %v1513
        %v1554 = vadd.f32 %v1265, %v1515
        %v1555 = vadd.f32 %v1269, %v1519
        %v1556 = vadd.f32 %v1272, %v1522
        %v1557 = vld [vmem:[#allocation2 + $0x1f] sm:$0xff]
        %v1558 = vld [vmem:[#allocation2 + $0x27] sm:$0xff]
        %v1559 = vld [vmem:[#allocation2 + $0x2f] sm:$0xff]
        %v1560 = vld [vmem:[#allocation2 + $0x37] sm:$0xff]
        %v1561 = vld [vmem:[#allocation2 + $0x3f] sm:$0xff]
        %v1562 = vld [vmem:[#allocation2 + $0x47] sm:$0xff]
        %v1563 = vld [vmem:[#allocation2 + $0x4f] sm:$0xff]
        %v1564 = vld [vmem:[#allocation2 + $0x57] sm:$0xff]
        %v1565 = vld [vmem:[#allocation2 + $0x5f] sm:$0xff]
        %v1566 = vld [vmem:[#allocation2 + $0x67] sm:$0xff]
        %v1567 = vld [vmem:[#allocation2 + $0x6f] sm:$0xff]
        %v1568 = vld [vmem:[#allocation2 + $0x77] sm:$0xff]
        %v1569 = vld [vmem:[#allocation2 + $0x7f] sm:$0xff]
        %v1570 = vld [vmem:[#allocation2 + $0x87] sm:$0xff]
        %v1571 = vld [vmem:[#allocation2 + $0x8f] sm:$0xff]
        %v1572 = vld [vmem:[#allocation2 + $0x97] sm:$0xff]
        %v1573 = vld [vmem:[#allocation2 + $0x9f] sm:$0xff]
        %v1574 = vld [vmem:[#allocation2 + $0xa7] sm:$0xff]
        %v1575 = vld [vmem:[#allocation2 + $0xaf] sm:$0xff]
        %v1576 = vld [vmem:[#allocation2 + $0xb7] sm:$0xff]
        %v1577 = vld [vmem:[#allocation2 + $0xbf] sm:$0xff]
        %v1578 = vld [vmem:[#allocation2 + $0xc7] sm:$0xff]
        %v1579 = vld [vmem:[#allocation2 + $0xcf] sm:$0xff]
        %v1580 = vld [vmem:[#allocation2 + $0xd7] sm:$0xff]
        %v1581 = vld [vmem:[#allocation2 + $0xdf] sm:$0xff]
        %v1582 = vld [vmem:[#allocation2 + $0xe7] sm:$0xff]
        %v1583 = vld [vmem:[#allocation2 + $0xef] sm:$0xff]
        %v1584 = vld [vmem:[#allocation2 + $0xf7] sm:$0xff]
        %v1585 = vld [vmem:[#allocation2 + $0xff] sm:$0xff]
        %v1586 = vld [vmem:[#allocation2 + $0x107] sm:$0xff]
        %v1587 = vld [vmem:[#allocation2 + $0x10f] sm:$0xff]
        %v1588 = vld [vmem:[#allocation2 + $0x117] sm:$0xff]
        %v1589 = vld [vmem:[#allocation2 + $0x11f] sm:$0xff]
        %v1590 = vld [vmem:[#allocation2 + $0x127] sm:$0xff]
        %v1591 = vld [vmem:[#allocation2 + $0x12f] sm:$0xff]
        %v1592 = vld [vmem:[#allocation2 + $0x137] sm:$0xff]
        %v1593 = vld [vmem:[#allocation2 + $0x13f] sm:$0xff]
        %v1594 = vld [vmem:[#allocation2 + $0x147] sm:$0xff]
        %v1595 = vld [vmem:[#allocation2 + $0x14f] sm:$0xff]
        %v1596 = vld [vmem:[#allocation2 + $0x157] sm:$0xff]
        %v1597 = vld [vmem:[#allocation2 + $0x15f] sm:$0xff]
        %v1598 = vld [vmem:[#allocation2 + $0x167] sm:$0xff]
        %v1599 = vld [vmem:[#allocation2 + $0x16f] sm:$0xff]
        %v1600 = vld [vmem:[#allocation2 + $0x177] sm:$0xff]
        %v1601 = vld [vmem:[#allocation2 + $0x17f] sm:$0xff]
        %v1602 = vld [vmem:[#allocation2 + $0x187] sm:$0xff]
        %v1603 = vld [vmem:[#allocation2 + $0x18f] sm:$0xff]
        %v1604 = vld [vmem:[#allocation2 + $0x197] sm:$0xff]
        %v1605 = vpack.c.bf16 %v1558, %v1557
        %v1606 = vpack.c.bf16 %v1560, %v1559
        %v1607 = vpack.c.bf16 %v1562, %v1561
        %v1608 = vpack.c.bf16 %v1564, %v1563
        %v1609 = vpack.c.bf16 %v1566, %v1565
        %v1610 = vpack.c.bf16 %v1568, %v1567
        %v1611 = vpack.c.bf16 %v1570, %v1569
        %v1612 = vpack.c.bf16 %v1572, %v1571
        %v1613 = vpack.c.bf16 %v1574, %v1573
        %v1614 = vpack.c.bf16 %v1576, %v1575
        %v1615 = vpack.c.bf16 %v1578, %v1577
        %v1616 = vpack.c.bf16 %v1580, %v1579
        %v1617 = vpack.c.bf16 %v1582, %v1581
        %v1618 = vpack.c.bf16 %v1584, %v1583
        %v1619 = vpack.c.bf16 %v1586, %v1585
        %v1620 = vpack.c.bf16 %v1588, %v1587
        %v1621 = vpack.c.bf16 %v1590, %v1589
        %v1622 = vpack.c.bf16 %v1592, %v1591
        %v1623 = vpack.c.bf16 %v1594, %v1593
        %v1624 = vpack.c.bf16 %v1596, %v1595
        %v1625 = vpack.c.bf16 %v1598, %v1597
        %v1626 = vpack.c.bf16 %v1600, %v1599
        %v1627 = vpack.c.bf16 %v1602, %v1601
        %v1628 = vpack.c.bf16 %v1604, %v1603
        %s1629 = scalar_lea.vmem [#allocation8], 192
        %v1630 = vld [vmem:[%s1629] sm:$0xf]
        %v1631 = vld [vmem:[%s1629 + $0x4] sm:$0xf]
        %v1632 = vld [vmem:[%s1629 + $0x8] sm:$0xf]
        %v1633 = vld [vmem:[%s1629 + $0xc] sm:$0xf]
        %v1634 = vld [vmem:[%s1629 + $0x10] sm:$0xf]
        %v1635 = vld [vmem:[%s1629 + $0x14] sm:$0xf]
        %v1636 = vld [vmem:[%s1629 + $0x18] sm:$0xf]
        %v1637 = vld [vmem:[%s1629 + $0x1c] sm:$0xf]
        %v1638 = vld [vmem:[%s1629 + $0x20] sm:$0xf]
        %v1639 = vld [vmem:[%s1629 + $0x24] sm:$0xf]
        %v1640 = vld [vmem:[%s1629 + $0x28] sm:$0xf]
        %v1641 = vld [vmem:[%s1629 + $0x2c] sm:$0xf]
        %v1642 = vld [vmem:[%s1629 + $0x30] sm:$0xf]
        %v1643 = vld [vmem:[%s1629 + $0x34] sm:$0xf]
        %v1644 = vld [vmem:[%s1629 + $0x38] sm:$0xf]
        %v1645 = vld [vmem:[%s1629 + $0x3c] sm:$0xf]
        %v1662 = vunpack.c.l.b16 %v1630
        %v1663 = vunpack.c.l.b16 %v1631
        %v1664 = vunpack.c.l.b16 %v1632
        %v1665 = vunpack.c.l.b16 %v1633
        %v1666 = vunpack.c.l.b16 %v1634
        %v1667 = vunpack.c.l.b16 %v1635
        %v1668 = vunpack.c.l.b16 %v1636
        %v1669 = vunpack.c.l.b16 %v1637
        %v1670 = vunpack.c.l.b16 %v1638
        %v1671 = vunpack.c.l.b16 %v1639
        %v1672 = vunpack.c.l.b16 %v1640
        %v1673 = vunpack.c.l.b16 %v1641
        %v1674 = vunpack.c.l.b16 %v1642
        %v1675 = vunpack.c.l.b16 %v1643
        %v1676 = vunpack.c.l.b16 %v1644
        %v1677 = vunpack.c.l.b16 %v1645
        %v1678 = vpack.c.b16 %v1663, %v1662
        %v1679 = vpack.c.b16 %v1665, %v1664
        %v1680 = vpack.c.b16 %v1667, %v1666
        %v1681 = vpack.c.b16 %v1669, %v1668
        %v1682 = vpack.c.b16 %v1671, %v1670
        %v1683 = vpack.c.b16 %v1673, %v1672
        %v1684 = vpack.c.b16 %v1675, %v1674
        %v1685 = vpack.c.b16 %v1677, %v1676
        %1694 = vmatpush.bf16.msra.mxu0 %v1685
        %1695 = vmatpush.bf16.msra.mxu0 %v1684
        %1696 = vmatpush.bf16.msra.mxu0 %v1683
        %1697 = vmatpush.bf16.msra.mxu0 %v1682
        %1698 = vmatpush.bf16.msra.mxu0 %v1681
        %1699 = vmatpush.bf16.msra.mxu0 %v1680
        %1700 = vmatpush.bf16.msra.mxu0 %v1679
        %1701 = vmatpush.bf16.msra.mxu0 %v1678
        %1702 = vmatmul.bf16.gmra.mxu0 %v1605
        %v1703 = vpop.f32.mrf.mxu0
        %v1704 = vadd.f32 0.0, %v1703
        %v1705 = vpop.f32.mrf.mxu0
        %v1706 = vadd.f32 0.0, %v1705
        %1707 = vmatmul.bf16.gmra.mxu0 %v1606
        %v1708 = vpop.f32.mrf.mxu0
        %v1709 = vpop.f32.mrf.mxu0
        %v1710 = vadd.f32 0.0, %v1709
        %1711 = vmatmul.bf16.gmra.mxu0 %v1607
        %v1712 = vpop.f32.mrf.mxu0
        %v1713 = vadd.f32 0.0, %v1712
        %v1714 = vpop.f32.mrf.mxu0
        %1715 = vmatmul.bf16.gmra.mxu0 %v1608
        %v1716 = vpop.f32.mrf.mxu0
        %v1717 = vadd.f32 0.0, %v1716
        %v1718 = vpop.f32.mrf.mxu0
        %v1719 = vadd.f32 0.0, %v1718
        %1720 = vmatmul.bf16.gmra.mxu0 %v1609
        %v1721 = vpop.f32.mrf.mxu0
        %v1722 = vpop.f32.mrf.mxu0
        %v1723 = vadd.f32 0.0, %v1722
        %1724 = vmatmul.bf16.gmra.mxu0 %v1610
        %v1725 = vpop.f32.mrf.mxu0
        %v1726 = vadd.f32 0.0, %v1725
        %v1727 = vpop.f32.mrf.mxu0
        %1728 = vmatmul.bf16.gmra.mxu0 %v1611
        %v1729 = vpop.f32.mrf.mxu0
        %v1730 = vadd.f32 0.0, %v1729
        %v1731 = vpop.f32.mrf.mxu0
        %v1732 = vadd.f32 0.0, %v1731
        %1733 = vmatmul.bf16.gmra.mxu0 %v1612
        %v1734 = vpop.f32.mrf.mxu0
        %v1735 = vpop.f32.mrf.mxu0
        %v1736 = vadd.f32 0.0, %v1735
        %1737 = vmatmul.bf16.gmra.mxu0 %v1613
        %v1738 = vpop.f32.mrf.mxu0
        %v1739 = vadd.f32 0.0, %v1738
        %v1740 = vpop.f32.mrf.mxu0
        %1741 = vmatmul.bf16.gmra.mxu0 %v1614
        %v1742 = vpop.f32.mrf.mxu0
        %v1743 = vadd.f32 0.0, %v1742
        %v1744 = vpop.f32.mrf.mxu0
        %v1745 = vadd.f32 0.0, %v1744
        %1746 = vmatmul.bf16.gmra.mxu0 %v1615
        %v1747 = vpop.f32.mrf.mxu0
        %v1748 = vpop.f32.mrf.mxu0
        %v1749 = vadd.f32 0.0, %v1748
        %1750 = vmatmul.bf16.gmra.mxu0 %v1616
        %v1751 = vpop.f32.mrf.mxu0
        %v1752 = vadd.f32 0.0, %v1751
        %v1753 = vpop.f32.mrf.mxu0
        %1754 = vmatmul.bf16.gmra.mxu0 %v1617
        %v1755 = vpop.f32.mrf.mxu0
        %v1756 = vadd.f32 0.0, %v1755
        %v1757 = vpop.f32.mrf.mxu0
        %v1758 = vadd.f32 0.0, %v1757
        %1759 = vmatmul.bf16.gmra.mxu0 %v1618
        %v1760 = vpop.f32.mrf.mxu0
        %v1761 = vpop.f32.mrf.mxu0
        %v1762 = vadd.f32 0.0, %v1761
        %1763 = vmatmul.bf16.gmra.mxu0 %v1619
        %v1764 = vpop.f32.mrf.mxu0
        %v1765 = vadd.f32 0.0, %v1764
        %v1766 = vpop.f32.mrf.mxu0
        %1767 = vmatmul.bf16.gmra.mxu0 %v1620
        %v1768 = vpop.f32.mrf.mxu0
        %v1769 = vadd.f32 0.0, %v1768
        %v1770 = vpop.f32.mrf.mxu0
        %v1771 = vadd.f32 0.0, %v1770
        %1772 = vmatmul.bf16.gmra.mxu0 %v1621
        %v1773 = vpop.f32.mrf.mxu0
        %v1774 = vpop.f32.mrf.mxu0
        %v1775 = vadd.f32 0.0, %v1774
        %1776 = vmatmul.bf16.gmra.mxu0 %v1622
        %v1777 = vpop.f32.mrf.mxu0
        %v1778 = vadd.f32 0.0, %v1777
        %v1779 = vpop.f32.mrf.mxu0
        %1780 = vmatmul.bf16.gmra.mxu0 %v1623
        %v1781 = vpop.f32.mrf.mxu0
        %v1782 = vadd.f32 0.0, %v1781
        %v1783 = vpop.f32.mrf.mxu0
        %v1784 = vadd.f32 0.0, %v1783
        %1785 = vmatmul.bf16.gmra.mxu0 %v1624
        %v1786 = vpop.f32.mrf.mxu0
        %v1787 = vpop.f32.mrf.mxu0
        %v1788 = vadd.f32 0.0, %v1787
        %1789 = vmatmul.bf16.gmra.mxu0 %v1625
        %v1790 = vpop.f32.mrf.mxu0
        %v1791 = vadd.f32 0.0, %v1790
        %v1792 = vpop.f32.mrf.mxu0
        %1793 = vmatmul.bf16.gmra.mxu0 %v1626
        %v1794 = vpop.f32.mrf.mxu0
        %v1795 = vadd.f32 0.0, %v1794
        %v1796 = vpop.f32.mrf.mxu0
        %v1797 = vadd.f32 0.0, %v1796
        %1798 = vmatmul.bf16.gmra.mxu0 %v1627
        %v1799 = vpop.f32.mrf.mxu0
        %v1800 = vpop.f32.mrf.mxu0
        %v1801 = vadd.f32 0.0, %v1800
        %1802 = vmatmul.bf16.gmra.mxu0 %v1628
        %v1803 = vpop.f32.mrf.mxu0
        %v1804 = vadd.f32 0.0, %v1803
        %v1805 = vpop.f32.mrf.mxu0
        %1806 = vdwg.mxu0
        %v1807 = vadd.f32 %v1525, %v1704
        %v1808 = vadd.f32 %v1526, %v1706
        %v1809 = vadd.f32 %v1527, %v1710
        %v1810 = vadd.f32 %v1528, %v1713
        %v1811 = vadd.f32 %v1529, %v1717
        %v1812 = vadd.f32 %v1530, %v1719
        %v1813 = vadd.f32 %v1531, %v1723
        %v1814 = vadd.f32 %v1532, %v1726
        %v1815 = vadd.f32 %v1533, %v1730
        %v1816 = vadd.f32 %v1534, %v1732
        %v1817 = vadd.f32 %v1535, %v1736
        %v1818 = vadd.f32 %v1536, %v1739
        %v1819 = vadd.f32 %v1537, %v1743
        %v1820 = vadd.f32 %v1538, %v1745
        %v1821 = vadd.f32 %v1539, %v1749
        %v1822 = vadd.f32 %v1540, %v1752
        %v1823 = vadd.f32 %v1541, %v1756
        %v1824 = vadd.f32 %v1542, %v1758
        %v1825 = vadd.f32 %v1543, %v1762
        %v1826 = vadd.f32 %v1544, %v1765
        %v1827 = vadd.f32 %v1545, %v1769
        %v1828 = vadd.f32 %v1546, %v1771
        %v1829 = vadd.f32 %v1547, %v1775
        %v1830 = vadd.f32 %v1548, %v1778
        %v1831 = vadd.f32 %v1549, %v1782
        %v1832 = vadd.f32 %v1550, %v1784
        %v1833 = vadd.f32 %v1551, %v1788
        %v1834 = vadd.f32 %v1552, %v1791
        %v1835 = vadd.f32 %v1553, %v1795
        %v1836 = vadd.f32 %v1554, %v1797
        %v1837 = vadd.f32 %v1555, %v1801
        %v1838 = vadd.f32 %v1556, %v1804
        %v1839 = vld [vmem:[#allocation2 + $0x20] sm:$0xff]
        %v1840 = vld [vmem:[#allocation2 + $0x28] sm:$0xff]
        %v1841 = vld [vmem:[#allocation2 + $0x30] sm:$0xff]
        %v1842 = vld [vmem:[#allocation2 + $0x38] sm:$0xff]
        %v1843 = vld [vmem:[#allocation2 + $0x40] sm:$0xff]
        %v1844 = vld [vmem:[#allocation2 + $0x48] sm:$0xff]
        %v1845 = vld [vmem:[#allocation2 + $0x50] sm:$0xff]
        %v1846 = vld [vmem:[#allocation2 + $0x58] sm:$0xff]
        %v1847 = vld [vmem:[#allocation2 + $0x60] sm:$0xff]
        %v1848 = vld [vmem:[#allocation2 + $0x68] sm:$0xff]
        %v1849 = vld [vmem:[#allocation2 + $0x70] sm:$0xff]
        %v1850 = vld [vmem:[#allocation2 + $0x78] sm:$0xff]
        %v1851 = vld [vmem:[#allocation2 + $0x80] sm:$0xff]
        %v1852 = vld [vmem:[#allocation2 + $0x88] sm:$0xff]
        %v1853 = vld [vmem:[#allocation2 + $0x90] sm:$0xff]
        %v1854 = vld [vmem:[#allocation2 + $0x98] sm:$0xff]
        %v1855 = vld [vmem:[#allocation2 + $0xa0] sm:$0xff]
        %v1856 = vld [vmem:[#allocation2 + $0xa8] sm:$0xff]
        %v1857 = vld [vmem:[#allocation2 + $0xb0] sm:$0xff]
        %v1858 = vld [vmem:[#allocation2 + $0xb8] sm:$0xff]
        %v1859 = vld [vmem:[#allocation2 + $0xc0] sm:$0xff]
        %v1860 = vld [vmem:[#allocation2 + $0xc8] sm:$0xff]
        %v1861 = vld [vmem:[#allocation2 + $0xd0] sm:$0xff]
        %v1862 = vld [vmem:[#allocation2 + $0xd8] sm:$0xff]
        %v1863 = vld [vmem:[#allocation2 + $0xe0] sm:$0xff]
        %v1864 = vld [vmem:[#allocation2 + $0xe8] sm:$0xff]
        %v1865 = vld [vmem:[#allocation2 + $0xf0] sm:$0xff]
        %v1866 = vld [vmem:[#allocation2 + $0xf8] sm:$0xff]
        %v1867 = vld [vmem:[#allocation2 + $0x100] sm:$0xff]
        %v1868 = vld [vmem:[#allocation2 + $0x108] sm:$0xff]
        %v1869 = vld [vmem:[#allocation2 + $0x110] sm:$0xff]
        %v1870 = vld [vmem:[#allocation2 + $0x118] sm:$0xff]
        %v1871 = vld [vmem:[#allocation2 + $0x120] sm:$0xff]
        %v1872 = vld [vmem:[#allocation2 + $0x128] sm:$0xff]
        %v1873 = vld [vmem:[#allocation2 + $0x130] sm:$0xff]
        %v1874 = vld [vmem:[#allocation2 + $0x138] sm:$0xff]
        %v1875 = vld [vmem:[#allocation2 + $0x140] sm:$0xff]
        %v1876 = vld [vmem:[#allocation2 + $0x148] sm:$0xff]
        %v1877 = vld [vmem:[#allocation2 + $0x150] sm:$0xff]
        %v1878 = vld [vmem:[#allocation2 + $0x158] sm:$0xff]
        %v1879 = vld [vmem:[#allocation2 + $0x160] sm:$0xff]
        %v1880 = vld [vmem:[#allocation2 + $0x168] sm:$0xff]
        %v1881 = vld [vmem:[#allocation2 + $0x170] sm:$0xff]
        %v1882 = vld [vmem:[#allocation2 + $0x178] sm:$0xff]
        %v1883 = vld [vmem:[#allocation2 + $0x180] sm:$0xff]
        %v1884 = vld [vmem:[#allocation2 + $0x188] sm:$0xff]
        %v1885 = vld [vmem:[#allocation2 + $0x190] sm:$0xff]
        %v1886 = vld [vmem:[#allocation2 + $0x198] sm:$0xff]
        %v1887 = vpack.c.bf16 %v1840, %v1839
        %v1888 = vpack.c.bf16 %v1842, %v1841
        %v1889 = vpack.c.bf16 %v1844, %v1843
        %v1890 = vpack.c.bf16 %v1846, %v1845
        %v1891 = vpack.c.bf16 %v1848, %v1847
        %v1892 = vpack.c.bf16 %v1850, %v1849
        %v1893 = vpack.c.bf16 %v1852, %v1851
        %v1894 = vpack.c.bf16 %v1854, %v1853
        %v1895 = vpack.c.bf16 %v1856, %v1855
        %v1896 = vpack.c.bf16 %v1858, %v1857
        %v1897 = vpack.c.bf16 %v1860, %v1859
        %v1898 = vpack.c.bf16 %v1862, %v1861
        %v1899 = vpack.c.bf16 %v1864, %v1863
        %v1900 = vpack.c.bf16 %v1866, %v1865
        %v1901 = vpack.c.bf16 %v1868, %v1867
        %v1902 = vpack.c.bf16 %v1870, %v1869
        %v1903 = vpack.c.bf16 %v1872, %v1871
        %v1904 = vpack.c.bf16 %v1874, %v1873
        %v1905 = vpack.c.bf16 %v1876, %v1875
        %v1906 = vpack.c.bf16 %v1878, %v1877
        %v1907 = vpack.c.bf16 %v1880, %v1879
        %v1908 = vpack.c.bf16 %v1882, %v1881
        %v1909 = vpack.c.bf16 %v1884, %v1883
        %v1910 = vpack.c.bf16 %v1886, %v1885
        %s1911 = scalar_lea.vmem [#allocation8], 256
        %v1912 = vld [vmem:[%s1911] sm:$0xf]
        %v1913 = vld [vmem:[%s1911 + $0x4] sm:$0xf]
        %v1914 = vld [vmem:[%s1911 + $0x8] sm:$0xf]
        %v1915 = vld [vmem:[%s1911 + $0xc] sm:$0xf]
        %v1916 = vld [vmem:[%s1911 + $0x10] sm:$0xf]
        %v1917 = vld [vmem:[%s1911 + $0x14] sm:$0xf]
        %v1918 = vld [vmem:[%s1911 + $0x18] sm:$0xf]
        %v1919 = vld [vmem:[%s1911 + $0x1c] sm:$0xf]
        %v1920 = vld [vmem:[%s1911 + $0x20] sm:$0xf]
        %v1921 = vld [vmem:[%s1911 + $0x24] sm:$0xf]
        %v1922 = vld [vmem:[%s1911 + $0x28] sm:$0xf]
        %v1923 = vld [vmem:[%s1911 + $0x2c] sm:$0xf]
        %v1924 = vld [vmem:[%s1911 + $0x30] sm:$0xf]
        %v1925 = vld [vmem:[%s1911 + $0x34] sm:$0xf]
        %v1926 = vld [vmem:[%s1911 + $0x38] sm:$0xf]
        %v1927 = vld [vmem:[%s1911 + $0x3c] sm:$0xf]
        %v1944 = vunpack.c.l.b16 %v1912
        %v1945 = vunpack.c.l.b16 %v1913
        %v1946 = vunpack.c.l.b16 %v1914
        %v1947 = vunpack.c.l.b16 %v1915
        %v1948 = vunpack.c.l.b16 %v1916
        %v1949 = vunpack.c.l.b16 %v1917
        %v1950 = vunpack.c.l.b16 %v1918
        %v1951 = vunpack.c.l.b16 %v1919
        %v1952 = vunpack.c.l.b16 %v1920
        %v1953 = vunpack.c.l.b16 %v1921
        %v1954 = vunpack.c.l.b16 %v1922
        %v1955 = vunpack.c.l.b16 %v1923
        %v1956 = vunpack.c.l.b16 %v1924
        %v1957 = vunpack.c.l.b16 %v1925
        %v1958 = vunpack.c.l.b16 %v1926
        %v1959 = vunpack.c.l.b16 %v1927
        %v1960 = vpack.c.b16 %v1945, %v1944
        %v1961 = vpack.c.b16 %v1947, %v1946
        %v1962 = vpack.c.b16 %v1949, %v1948
        %v1963 = vpack.c.b16 %v1951, %v1950
        %v1964 = vpack.c.b16 %v1953, %v1952
        %v1965 = vpack.c.b16 %v1955, %v1954
        %v1966 = vpack.c.b16 %v1957, %v1956
        %v1967 = vpack.c.b16 %v1959, %v1958
        %1976 = vmatpush.bf16.msra.mxu0 %v1967
        %1977 = vmatpush.bf16.msra.mxu0 %v1966
        %1978 = vmatpush.bf16.msra.mxu0 %v1965
        %1979 = vmatpush.bf16.msra.mxu0 %v1964
        %1980 = vmatpush.bf16.msra.mxu0 %v1963
        %1981 = vmatpush.bf16.msra.mxu0 %v1962
        %1982 = vmatpush.bf16.msra.mxu0 %v1961
        %1983 = vmatpush.bf16.msra.mxu0 %v1960
        %1984 = vmatmul.bf16.gmra.mxu0 %v1887
        %v1985 = vpop.f32.mrf.mxu0
        %v1986 = vadd.f32 0.0, %v1985
        %v1987 = vpop.f32.mrf.mxu0
        %v1988 = vadd.f32 0.0, %v1987
        %1989 = vmatmul.bf16.gmra.mxu0 %v1888
        %v1990 = vpop.f32.mrf.mxu0
        %v1991 = vpop.f32.mrf.mxu0
        %v1992 = vadd.f32 0.0, %v1991
        %1993 = vmatmul.bf16.gmra.mxu0 %v1889
        %v1994 = vpop.f32.mrf.mxu0
        %v1995 = vadd.f32 0.0, %v1994
        %v1996 = vpop.f32.mrf.mxu0
        %1997 = vmatmul.bf16.gmra.mxu0 %v1890
        %v1998 = vpop.f32.mrf.mxu0
        %v1999 = vadd.f32 0.0, %v1998
        %v2000 = vpop.f32.mrf.mxu0
        %v2001 = vadd.f32 0.0, %v2000
        %2002 = vmatmul.bf16.gmra.mxu0 %v1891
        %v2003 = vpop.f32.mrf.mxu0
        %v2004 = vpop.f32.mrf.mxu0
        %v2005 = vadd.f32 0.0, %v2004
        %2006 = vmatmul.bf16.gmra.mxu0 %v1892
        %v2007 = vpop.f32.mrf.mxu0
        %v2008 = vadd.f32 0.0, %v2007
        %v2009 = vpop.f32.mrf.mxu0
        %2010 = vmatmul.bf16.gmra.mxu0 %v1893
        %v2011 = vpop.f32.mrf.mxu0
        %v2012 = vadd.f32 0.0, %v2011
        %v2013 = vpop.f32.mrf.mxu0
        %v2014 = vadd.f32 0.0, %v2013
        %2015 = vmatmul.bf16.gmra.mxu0 %v1894
        %v2016 = vpop.f32.mrf.mxu0
        %v2017 = vpop.f32.mrf.mxu0
        %v2018 = vadd.f32 0.0, %v2017
        %2019 = vmatmul.bf16.gmra.mxu0 %v1895
        %v2020 = vpop.f32.mrf.mxu0
        %v2021 = vadd.f32 0.0, %v2020
        %v2022 = vpop.f32.mrf.mxu0
        %2023 = vmatmul.bf16.gmra.mxu0 %v1896
        %v2024 = vpop.f32.mrf.mxu0
        %v2025 = vadd.f32 0.0, %v2024
        %v2026 = vpop.f32.mrf.mxu0
        %v2027 = vadd.f32 0.0, %v2026
        %2028 = vmatmul.bf16.gmra.mxu0 %v1897
        %v2029 = vpop.f32.mrf.mxu0
        %v2030 = vpop.f32.mrf.mxu0
        %v2031 = vadd.f32 0.0, %v2030
        %2032 = vmatmul.bf16.gmra.mxu0 %v1898
        %v2033 = vpop.f32.mrf.mxu0
        %v2034 = vadd.f32 0.0, %v2033
        %v2035 = vpop.f32.mrf.mxu0
        %2036 = vmatmul.bf16.gmra.mxu0 %v1899
        %v2037 = vpop.f32.mrf.mxu0
        %v2038 = vadd.f32 0.0, %v2037
        %v2039 = vpop.f32.mrf.mxu0
        %v2040 = vadd.f32 0.0, %v2039
        %2041 = vmatmul.bf16.gmra.mxu0 %v1900
        %v2042 = vpop.f32.mrf.mxu0
        %v2043 = vpop.f32.mrf.mxu0
        %v2044 = vadd.f32 0.0, %v2043
        %2045 = vmatmul.bf16.gmra.mxu0 %v1901
        %v2046 = vpop.f32.mrf.mxu0
        %v2047 = vadd.f32 0.0, %v2046
        %v2048 = vpop.f32.mrf.mxu0
        %2049 = vmatmul.bf16.gmra.mxu0 %v1902
        %v2050 = vpop.f32.mrf.mxu0
        %v2051 = vadd.f32 0.0, %v2050
        %v2052 = vpop.f32.mrf.mxu0
        %v2053 = vadd.f32 0.0, %v2052
        %2054 = vmatmul.bf16.gmra.mxu0 %v1903
        %v2055 = vpop.f32.mrf.mxu0
        %v2056 = vpop.f32.mrf.mxu0
        %v2057 = vadd.f32 0.0, %v2056
        %2058 = vmatmul.bf16.gmra.mxu0 %v1904
        %v2059 = vpop.f32.mrf.mxu0
        %v2060 = vadd.f32 0.0, %v2059
        %v2061 = vpop.f32.mrf.mxu0
        %2062 = vmatmul.bf16.gmra.mxu0 %v1905
        %v2063 = vpop.f32.mrf.mxu0
        %v2064 = vadd.f32 0.0, %v2063
        %v2065 = vpop.f32.mrf.mxu0
        %v2066 = vadd.f32 0.0, %v2065
        %2067 = vmatmul.bf16.gmra.mxu0 %v1906
        %v2068 = vpop.f32.mrf.mxu0
        %v2069 = vpop.f32.mrf.mxu0
        %v2070 = vadd.f32 0.0, %v2069
        %2071 = vmatmul.bf16.gmra.mxu0 %v1907
        %v2072 = vpop.f32.mrf.mxu0
        %v2073 = vadd.f32 0.0, %v2072
        %v2074 = vpop.f32.mrf.mxu0
        %2075 = vmatmul.bf16.gmra.mxu0 %v1908
        %v2076 = vpop.f32.mrf.mxu0
        %v2077 = vadd.f32 0.0, %v2076
        %v2078 = vpop.f32.mrf.mxu0
        %v2079 = vadd.f32 0.0, %v2078
        %2080 = vmatmul.bf16.gmra.mxu0 %v1909
        %v2081 = vpop.f32.mrf.mxu0
        %v2082 = vpop.f32.mrf.mxu0
        %v2083 = vadd.f32 0.0, %v2082
        %2084 = vmatmul.bf16.gmra.mxu0 %v1910
        %v2085 = vpop.f32.mrf.mxu0
        %v2086 = vadd.f32 0.0, %v2085
        %v2087 = vpop.f32.mrf.mxu0
        %2088 = vdwg.mxu0
        %v2089 = vadd.f32 %v1807, %v1986
        %v2090 = vadd.f32 %v1808, %v1988
        %v2091 = vadd.f32 %v1809, %v1992
        %v2092 = vadd.f32 %v1810, %v1995
        %v2093 = vadd.f32 %v1811, %v1999
        %v2094 = vadd.f32 %v1812, %v2001
        %v2095 = vadd.f32 %v1813, %v2005
        %v2096 = vadd.f32 %v1814, %v2008
        %v2097 = vadd.f32 %v1815, %v2012
        %v2098 = vadd.f32 %v1816, %v2014
        %v2099 = vadd.f32 %v1817, %v2018
        %v2100 = vadd.f32 %v1818, %v2021
        %v2101 = vadd.f32 %v1819, %v2025
        %v2102 = vadd.f32 %v1820, %v2027
        %v2103 = vadd.f32 %v1821, %v2031
        %v2104 = vadd.f32 %v1822, %v2034
        %v2105 = vadd.f32 %v1823, %v2038
        %v2106 = vadd.f32 %v1824, %v2040
        %v2107 = vadd.f32 %v1825, %v2044
        %v2108 = vadd.f32 %v1826, %v2047
        %v2109 = vadd.f32 %v1827, %v2051
        %v2110 = vadd.f32 %v1828, %v2053
        %v2111 = vadd.f32 %v1829, %v2057
        %v2112 = vadd.f32 %v1830, %v2060
        %v2113 = vadd.f32 %v1831, %v2064
        %v2114 = vadd.f32 %v1832, %v2066
        %v2115 = vadd.f32 %v1833, %v2070
        %v2116 = vadd.f32 %v1834, %v2073
        %v2117 = vadd.f32 %v1835, %v2077
        %v2118 = vadd.f32 %v1836, %v2079
        %v2119 = vadd.f32 %v1837, %v2083
        %v2120 = vadd.f32 %v1838, %v2086
        %v2121 = vld [vmem:[#allocation2 + $0x21] sm:$0xff]
        %v2122 = vld [vmem:[#allocation2 + $0x29] sm:$0xff]
        %v2123 = vld [vmem:[#allocation2 + $0x31] sm:$0xff]
        %v2124 = vld [vmem:[#allocation2 + $0x39] sm:$0xff]
        %v2125 = vld [vmem:[#allocation2 + $0x41] sm:$0xff]
        %v2126 = vld [vmem:[#allocation2 + $0x49] sm:$0xff]
        %v2127 = vld [vmem:[#allocation2 + $0x51] sm:$0xff]
        %v2128 = vld [vmem:[#allocation2 + $0x59] sm:$0xff]
        %v2129 = vld [vmem:[#allocation2 + $0x61] sm:$0xff]
        %v2130 = vld [vmem:[#allocation2 + $0x69] sm:$0xff]
        %v2131 = vld [vmem:[#allocation2 + $0x71] sm:$0xff]
        %v2132 = vld [vmem:[#allocation2 + $0x79] sm:$0xff]
        %v2133 = vld [vmem:[#allocation2 + $0x81] sm:$0xff]
        %v2134 = vld [vmem:[#allocation2 + $0x89] sm:$0xff]
        %v2135 = vld [vmem:[#allocation2 + $0x91] sm:$0xff]
        %v2136 = vld [vmem:[#allocation2 + $0x99] sm:$0xff]
        %v2137 = vld [vmem:[#allocation2 + $0xa1] sm:$0xff]
        %v2138 = vld [vmem:[#allocation2 + $0xa9] sm:$0xff]
        %v2139 = vld [vmem:[#allocation2 + $0xb1] sm:$0xff]
        %v2140 = vld [vmem:[#allocation2 + $0xb9] sm:$0xff]
        %v2141 = vld [vmem:[#allocation2 + $0xc1] sm:$0xff]
        %v2142 = vld [vmem:[#allocation2 + $0xc9] sm:$0xff]
        %v2143 = vld [vmem:[#allocation2 + $0xd1] sm:$0xff]
        %v2144 = vld [vmem:[#allocation2 + $0xd9] sm:$0xff]
        %v2145 = vld [vmem:[#allocation2 + $0xe1] sm:$0xff]
        %v2146 = vld [vmem:[#allocation2 + $0xe9] sm:$0xff]
        %v2147 = vld [vmem:[#allocation2 + $0xf1] sm:$0xff]
        %v2148 = vld [vmem:[#allocation2 + $0xf9] sm:$0xff]
        %v2149 = vld [vmem:[#allocation2 + $0x101] sm:$0xff]
        %v2150 = vld [vmem:[#allocation2 + $0x109] sm:$0xff]
        %v2151 = vld [vmem:[#allocation2 + $0x111] sm:$0xff]
        %v2152 = vld [vmem:[#allocation2 + $0x119] sm:$0xff]
        %v2153 = vld [vmem:[#allocation2 + $0x121] sm:$0xff]
        %v2154 = vld [vmem:[#allocation2 + $0x129] sm:$0xff]
        %v2155 = vld [vmem:[#allocation2 + $0x131] sm:$0xff]
        %v2156 = vld [vmem:[#allocation2 + $0x139] sm:$0xff]
        %v2157 = vld [vmem:[#allocation2 + $0x141] sm:$0xff]
        %v2158 = vld [vmem:[#allocation2 + $0x149] sm:$0xff]
        %v2159 = vld [vmem:[#allocation2 + $0x151] sm:$0xff]
        %v2160 = vld [vmem:[#allocation2 + $0x159] sm:$0xff]
        %v2161 = vld [vmem:[#allocation2 + $0x161] sm:$0xff]
        %v2162 = vld [vmem:[#allocation2 + $0x169] sm:$0xff]
        %v2163 = vld [vmem:[#allocation2 + $0x171] sm:$0xff]
        %v2164 = vld [vmem:[#allocation2 + $0x179] sm:$0xff]
        %v2165 = vld [vmem:[#allocation2 + $0x181] sm:$0xff]
        %v2166 = vld [vmem:[#allocation2 + $0x189] sm:$0xff]
        %v2167 = vld [vmem:[#allocation2 + $0x191] sm:$0xff]
        %v2168 = vld [vmem:[#allocation2 + $0x199] sm:$0xff]
        %v2169 = vpack.c.bf16 %v2122, %v2121
        %v2170 = vpack.c.bf16 %v2124, %v2123
        %v2171 = vpack.c.bf16 %v2126, %v2125
        %v2172 = vpack.c.bf16 %v2128, %v2127
        %v2173 = vpack.c.bf16 %v2130, %v2129
        %v2174 = vpack.c.bf16 %v2132, %v2131
        %v2175 = vpack.c.bf16 %v2134, %v2133
        %v2176 = vpack.c.bf16 %v2136, %v2135
        %v2177 = vpack.c.bf16 %v2138, %v2137
        %v2178 = vpack.c.bf16 %v2140, %v2139
        %v2179 = vpack.c.bf16 %v2142, %v2141
        %v2180 = vpack.c.bf16 %v2144, %v2143
        %v2181 = vpack.c.bf16 %v2146, %v2145
        %v2182 = vpack.c.bf16 %v2148, %v2147
        %v2183 = vpack.c.bf16 %v2150, %v2149
        %v2184 = vpack.c.bf16 %v2152, %v2151
        %v2185 = vpack.c.bf16 %v2154, %v2153
        %v2186 = vpack.c.bf16 %v2156, %v2155
        %v2187 = vpack.c.bf16 %v2158, %v2157
        %v2188 = vpack.c.bf16 %v2160, %v2159
        %v2189 = vpack.c.bf16 %v2162, %v2161
        %v2190 = vpack.c.bf16 %v2164, %v2163
        %v2191 = vpack.c.bf16 %v2166, %v2165
        %v2192 = vpack.c.bf16 %v2168, %v2167
        %s2193 = scalar_lea.vmem [#allocation8], 320
        %v2194 = vld [vmem:[%s2193] sm:$0xf]
        %v2195 = vld [vmem:[%s2193 + $0x4] sm:$0xf]
        %v2196 = vld [vmem:[%s2193 + $0x8] sm:$0xf]
        %v2197 = vld [vmem:[%s2193 + $0xc] sm:$0xf]
        %v2198 = vld [vmem:[%s2193 + $0x10] sm:$0xf]
        %v2199 = vld [vmem:[%s2193 + $0x14] sm:$0xf]
        %v2200 = vld [vmem:[%s2193 + $0x18] sm:$0xf]
        %v2201 = vld [vmem:[%s2193 + $0x1c] sm:$0xf]
        %v2202 = vld [vmem:[%s2193 + $0x20] sm:$0xf]
        %v2203 = vld [vmem:[%s2193 + $0x24] sm:$0xf]
        %v2204 = vld [vmem:[%s2193 + $0x28] sm:$0xf]
        %v2205 = vld [vmem:[%s2193 + $0x2c] sm:$0xf]
        %v2206 = vld [vmem:[%s2193 + $0x30] sm:$0xf]
        %v2207 = vld [vmem:[%s2193 + $0x34] sm:$0xf]
        %v2208 = vld [vmem:[%s2193 + $0x38] sm:$0xf]
        %v2209 = vld [vmem:[%s2193 + $0x3c] sm:$0xf]
        %v2226 = vunpack.c.l.b16 %v2194
        %v2227 = vunpack.c.l.b16 %v2195
        %v2228 = vunpack.c.l.b16 %v2196
        %v2229 = vunpack.c.l.b16 %v2197
        %v2230 = vunpack.c.l.b16 %v2198
        %v2231 = vunpack.c.l.b16 %v2199
        %v2232 = vunpack.c.l.b16 %v2200
        %v2233 = vunpack.c.l.b16 %v2201
        %v2234 = vunpack.c.l.b16 %v2202
        %v2235 = vunpack.c.l.b16 %v2203
        %v2236 = vunpack.c.l.b16 %v2204
        %v2237 = vunpack.c.l.b16 %v2205
        %v2238 = vunpack.c.l.b16 %v2206
        %v2239 = vunpack.c.l.b16 %v2207
        %v2240 = vunpack.c.l.b16 %v2208
        %v2241 = vunpack.c.l.b16 %v2209
        %v2242 = vpack.c.b16 %v2227, %v2226
        %v2243 = vpack.c.b16 %v2229, %v2228
        %v2244 = vpack.c.b16 %v2231, %v2230
        %v2245 = vpack.c.b16 %v2233, %v2232
        %v2246 = vpack.c.b16 %v2235, %v2234
        %v2247 = vpack.c.b16 %v2237, %v2236
        %v2248 = vpack.c.b16 %v2239, %v2238
        %v2249 = vpack.c.b16 %v2241, %v2240
        %2258 = vmatpush.bf16.msra.mxu0 %v2249
        %2259 = vmatpush.bf16.msra.mxu0 %v2248
        %2260 = vmatpush.bf16.msra.mxu0 %v2247
        %2261 = vmatpush.bf16.msra.mxu0 %v2246
        %2262 = vmatpush.bf16.msra.mxu0 %v2245
        %2263 = vmatpush.bf16.msra.mxu0 %v2244
        %2264 = vmatpush.bf16.msra.mxu0 %v2243
        %2265 = vmatpush.bf16.msra.mxu0 %v2242
        %2266 = vmatmul.bf16.gmra.mxu0 %v2169
        %v2267 = vpop.f32.mrf.mxu0
        %v2268 = vadd.f32 0.0, %v2267
        %v2269 = vpop.f32.mrf.mxu0
        %v2270 = vadd.f32 0.0, %v2269
        %2271 = vmatmul.bf16.gmra.mxu0 %v2170
        %v2272 = vpop.f32.mrf.mxu0
        %v2273 = vpop.f32.mrf.mxu0
        %v2274 = vadd.f32 0.0, %v2273
        %2275 = vmatmul.bf16.gmra.mxu0 %v2171
        %v2276 = vpop.f32.mrf.mxu0
        %v2277 = vadd.f32 0.0, %v2276
        %v2278 = vpop.f32.mrf.mxu0
        %2279 = vmatmul.bf16.gmra.mxu0 %v2172
        %v2280 = vpop.f32.mrf.mxu0
        %v2281 = vadd.f32 0.0, %v2280
        %v2282 = vpop.f32.mrf.mxu0
        %v2283 = vadd.f32 0.0, %v2282
        %2284 = vmatmul.bf16.gmra.mxu0 %v2173
        %v2285 = vpop.f32.mrf.mxu0
        %v2286 = vpop.f32.mrf.mxu0
        %v2287 = vadd.f32 0.0, %v2286
        %2288 = vmatmul.bf16.gmra.mxu0 %v2174
        %v2289 = vpop.f32.mrf.mxu0
        %v2290 = vadd.f32 0.0, %v2289
        %v2291 = vpop.f32.mrf.mxu0
        %2292 = vmatmul.bf16.gmra.mxu0 %v2175
        %v2293 = vpop.f32.mrf.mxu0
        %v2294 = vadd.f32 0.0, %v2293
        %v2295 = vpop.f32.mrf.mxu0
        %v2296 = vadd.f32 0.0, %v2295
        %2297 = vmatmul.bf16.gmra.mxu0 %v2176
        %v2298 = vpop.f32.mrf.mxu0
        %v2299 = vpop.f32.mrf.mxu0
        %v2300 = vadd.f32 0.0, %v2299
        %2301 = vmatmul.bf16.gmra.mxu0 %v2177
        %v2302 = vpop.f32.mrf.mxu0
        %v2303 = vadd.f32 0.0, %v2302
        %v2304 = vpop.f32.mrf.mxu0
        %2305 = vmatmul.bf16.gmra.mxu0 %v2178
        %v2306 = vpop.f32.mrf.mxu0
        %v2307 = vadd.f32 0.0, %v2306
        %v2308 = vpop.f32.mrf.mxu0
        %v2309 = vadd.f32 0.0, %v2308
        %2310 = vmatmul.bf16.gmra.mxu0 %v2179
        %v2311 = vpop.f32.mrf.mxu0
        %v2312 = vpop.f32.mrf.mxu0
        %v2313 = vadd.f32 0.0, %v2312
        %2314 = vmatmul.bf16.gmra.mxu0 %v2180
        %v2315 = vpop.f32.mrf.mxu0
        %v2316 = vadd.f32 0.0, %v2315
        %v2317 = vpop.f32.mrf.mxu0
        %2318 = vmatmul.bf16.gmra.mxu0 %v2181
        %v2319 = vpop.f32.mrf.mxu0
        %v2320 = vadd.f32 0.0, %v2319
        %v2321 = vpop.f32.mrf.mxu0
        %v2322 = vadd.f32 0.0, %v2321
        %2323 = vmatmul.bf16.gmra.mxu0 %v2182
        %v2324 = vpop.f32.mrf.mxu0
        %v2325 = vpop.f32.mrf.mxu0
        %v2326 = vadd.f32 0.0, %v2325
        %2327 = vmatmul.bf16.gmra.mxu0 %v2183
        %v2328 = vpop.f32.mrf.mxu0
        %v2329 = vadd.f32 0.0, %v2328
        %v2330 = vpop.f32.mrf.mxu0
        %2331 = vmatmul.bf16.gmra.mxu0 %v2184
        %v2332 = vpop.f32.mrf.mxu0
        %v2333 = vadd.f32 0.0, %v2332
        %v2334 = vpop.f32.mrf.mxu0
        %v2335 = vadd.f32 0.0, %v2334
        %2336 = vmatmul.bf16.gmra.mxu0 %v2185
        %v2337 = vpop.f32.mrf.mxu0
        %v2338 = vpop.f32.mrf.mxu0
        %v2339 = vadd.f32 0.0, %v2338
        %2340 = vmatmul.bf16.gmra.mxu0 %v2186
        %v2341 = vpop.f32.mrf.mxu0
        %v2342 = vadd.f32 0.0, %v2341
        %v2343 = vpop.f32.mrf.mxu0
        %2344 = vmatmul.bf16.gmra.mxu0 %v2187
        %v2345 = vpop.f32.mrf.mxu0
        %v2346 = vadd.f32 0.0, %v2345
        %v2347 = vpop.f32.mrf.mxu0
        %v2348 = vadd.f32 0.0, %v2347
        %2349 = vmatmul.bf16.gmra.mxu0 %v2188
        %v2350 = vpop.f32.mrf.mxu0
        %v2351 = vpop.f32.mrf.mxu0
        %v2352 = vadd.f32 0.0, %v2351
        %2353 = vmatmul.bf16.gmra.mxu0 %v2189
        %v2354 = vpop.f32.mrf.mxu0
        %v2355 = vadd.f32 0.0, %v2354
        %v2356 = vpop.f32.mrf.mxu0
        %2357 = vmatmul.bf16.gmra.mxu0 %v2190
        %v2358 = vpop.f32.mrf.mxu0
        %v2359 = vadd.f32 0.0, %v2358
        %v2360 = vpop.f32.mrf.mxu0
        %v2361 = vadd.f32 0.0, %v2360
        %2362 = vmatmul.bf16.gmra.mxu0 %v2191
        %v2363 = vpop.f32.mrf.mxu0
        %v2364 = vpop.f32.mrf.mxu0
        %v2365 = vadd.f32 0.0, %v2364
        %2366 = vmatmul.bf16.gmra.mxu0 %v2192
        %v2367 = vpop.f32.mrf.mxu0
        %v2368 = vadd.f32 0.0, %v2367
        %v2369 = vpop.f32.mrf.mxu0
        %2370 = vdwg.mxu0
        %v2371 = vadd.f32 %v2089, %v2268
        %v2372 = vadd.f32 %v2090, %v2270
        %v2373 = vadd.f32 %v2091, %v2274
        %v2374 = vadd.f32 %v2092, %v2277
        %v2375 = vadd.f32 %v2093, %v2281
        %v2376 = vadd.f32 %v2094, %v2283
        %v2377 = vadd.f32 %v2095, %v2287
        %v2378 = vadd.f32 %v2096, %v2290
        %v2379 = vadd.f32 %v2097, %v2294
        %v2380 = vadd.f32 %v2098, %v2296
        %v2381 = vadd.f32 %v2099, %v2300
        %v2382 = vadd.f32 %v2100, %v2303
        %v2383 = vadd.f32 %v2101, %v2307
        %v2384 = vadd.f32 %v2102, %v2309
        %v2385 = vadd.f32 %v2103, %v2313
        %v2386 = vadd.f32 %v2104, %v2316
        %v2387 = vadd.f32 %v2105, %v2320
        %v2388 = vadd.f32 %v2106, %v2322
        %v2389 = vadd.f32 %v2107, %v2326
        %v2390 = vadd.f32 %v2108, %v2329
        %v2391 = vadd.f32 %v2109, %v2333
        %v2392 = vadd.f32 %v2110, %v2335
        %v2393 = vadd.f32 %v2111, %v2339
        %v2394 = vadd.f32 %v2112, %v2342
        %v2395 = vadd.f32 %v2113, %v2346
        %v2396 = vadd.f32 %v2114, %v2348
        %v2397 = vadd.f32 %v2115, %v2352
        %v2398 = vadd.f32 %v2116, %v2355
        %v2399 = vadd.f32 %v2117, %v2359
        %v2400 = vadd.f32 %v2118, %v2361
        %v2401 = vadd.f32 %v2119, %v2365
        %v2402 = vadd.f32 %v2120, %v2368
        %v2403 = vld [vmem:[#allocation2 + $0x37] sm:$0xff]
        %v2404 = vld [vmem:[#allocation2 + $0x3f] sm:$0xff]
        %v2405 = vld [vmem:[#allocation2 + $0x47] sm:$0xff]
        %v2406 = vld [vmem:[#allocation2 + $0x4f] sm:$0xff]
        %v2407 = vld [vmem:[#allocation2 + $0x57] sm:$0xff]
        %v2408 = vld [vmem:[#allocation2 + $0x5f] sm:$0xff]
        %v2409 = vld [vmem:[#allocation2 + $0x67] sm:$0xff]
        %v2410 = vld [vmem:[#allocation2 + $0x6f] sm:$0xff]
        %v2411 = vld [vmem:[#allocation2 + $0x77] sm:$0xff]
        %v2412 = vld [vmem:[#allocation2 + $0x7f] sm:$0xff]
        %v2413 = vld [vmem:[#allocation2 + $0x87] sm:$0xff]
        %v2414 = vld [vmem:[#allocation2 + $0x8f] sm:$0xff]
        %v2415 = vld [vmem:[#allocation2 + $0x97] sm:$0xff]
        %v2416 = vld [vmem:[#allocation2 + $0x9f] sm:$0xff]
        %v2417 = vld [vmem:[#allocation2 + $0xa7] sm:$0xff]
        %v2418 = vld [vmem:[#allocation2 + $0xaf] sm:$0xff]
        %v2419 = vld [vmem:[#allocation2 + $0xb7] sm:$0xff]
        %v2420 = vld [vmem:[#allocation2 + $0xbf] sm:$0xff]
        %v2421 = vld [vmem:[#allocation2 + $0xc7] sm:$0xff]
        %v2422 = vld [vmem:[#allocation2 + $0xcf] sm:$0xff]
        %v2423 = vld [vmem:[#allocation2 + $0xd7] sm:$0xff]
        %v2424 = vld [vmem:[#allocation2 + $0xdf] sm:$0xff]
        %v2425 = vld [vmem:[#allocation2 + $0xe7] sm:$0xff]
        %v2426 = vld [vmem:[#allocation2 + $0xef] sm:$0xff]
        %v2427 = vld [vmem:[#allocation2 + $0xf7] sm:$0xff]
        %v2428 = vld [vmem:[#allocation2 + $0xff] sm:$0xff]
        %v2429 = vld [vmem:[#allocation2 + $0x107] sm:$0xff]
        %v2430 = vld [vmem:[#allocation2 + $0x10f] sm:$0xff]
        %v2431 = vld [vmem:[#allocation2 + $0x117] sm:$0xff]
        %v2432 = vld [vmem:[#allocation2 + $0x11f] sm:$0xff]
        %v2433 = vld [vmem:[#allocation2 + $0x127] sm:$0xff]
        %v2434 = vld [vmem:[#allocation2 + $0x12f] sm:$0xff]
        %v2435 = vld [vmem:[#allocation2 + $0x137] sm:$0xff]
        %v2436 = vld [vmem:[#allocation2 + $0x13f] sm:$0xff]
        %v2437 = vld [vmem:[#allocation2 + $0x147] sm:$0xff]
        %v2438 = vld [vmem:[#allocation2 + $0x14f] sm:$0xff]
        %v2439 = vld [vmem:[#allocation2 + $0x157] sm:$0xff]
        %v2440 = vld [vmem:[#allocation2 + $0x15f] sm:$0xff]
        %v2441 = vld [vmem:[#allocation2 + $0x167] sm:$0xff]
        %v2442 = vld [vmem:[#allocation2 + $0x16f] sm:$0xff]
        %v2443 = vld [vmem:[#allocation2 + $0x177] sm:$0xff]
        %v2444 = vld [vmem:[#allocation2 + $0x17f] sm:$0xff]
        %v2445 = vld [vmem:[#allocation2 + $0x187] sm:$0xff]
        %v2446 = vld [vmem:[#allocation2 + $0x18f] sm:$0xff]
        %v2447 = vld [vmem:[#allocation2 + $0x197] sm:$0xff]
        %v2448 = vld [vmem:[#allocation2 + $0x19f] sm:$0xff]
        %v2449 = vld [vmem:[#allocation2 + $0x1a7] sm:$0xff]
        %v2450 = vld [vmem:[#allocation2 + $0x1af] sm:$0xff]
        %v2451 = vpack.c.bf16 %v2404, %v2403
        %v2452 = vpack.c.bf16 %v2406, %v2405
        %v2453 = vpack.c.bf16 %v2408, %v2407
        %v2454 = vpack.c.bf16 %v2410, %v2409
        %v2455 = vpack.c.bf16 %v2412, %v2411
        %v2456 = vpack.c.bf16 %v2414, %v2413
        %v2457 = vpack.c.bf16 %v2416, %v2415
        %v2458 = vpack.c.bf16 %v2418, %v2417
        %v2459 = vpack.c.bf16 %v2420, %v2419
        %v2460 = vpack.c.bf16 %v2422, %v2421
        %v2461 = vpack.c.bf16 %v2424, %v2423
        %v2462 = vpack.c.bf16 %v2426, %v2425
        %v2463 = vpack.c.bf16 %v2428, %v2427
        %v2464 = vpack.c.bf16 %v2430, %v2429
        %v2465 = vpack.c.bf16 %v2432, %v2431
        %v2466 = vpack.c.bf16 %v2434, %v2433
        %v2467 = vpack.c.bf16 %v2436, %v2435
        %v2468 = vpack.c.bf16 %v2438, %v2437
        %v2469 = vpack.c.bf16 %v2440, %v2439
        %v2470 = vpack.c.bf16 %v2442, %v2441
        %v2471 = vpack.c.bf16 %v2444, %v2443
        %v2472 = vpack.c.bf16 %v2446, %v2445
        %v2473 = vpack.c.bf16 %v2448, %v2447
        %v2474 = vpack.c.bf16 %v2450, %v2449
        %s2475 = scalar_lea.vmem [#allocation8], 384
        %v2476 = vld [vmem:[%s2475] sm:$0xf]
        %v2477 = vld [vmem:[%s2475 + $0x4] sm:$0xf]
        %v2478 = vld [vmem:[%s2475 + $0x8] sm:$0xf]
        %v2479 = vld [vmem:[%s2475 + $0xc] sm:$0xf]
        %v2480 = vld [vmem:[%s2475 + $0x10] sm:$0xf]
        %v2481 = vld [vmem:[%s2475 + $0x14] sm:$0xf]
        %v2482 = vld [vmem:[%s2475 + $0x18] sm:$0xf]
        %v2483 = vld [vmem:[%s2475 + $0x1c] sm:$0xf]
        %v2484 = vld [vmem:[%s2475 + $0x20] sm:$0xf]
        %v2485 = vld [vmem:[%s2475 + $0x24] sm:$0xf]
        %v2486 = vld [vmem:[%s2475 + $0x28] sm:$0xf]
        %v2487 = vld [vmem:[%s2475 + $0x2c] sm:$0xf]
        %v2488 = vld [vmem:[%s2475 + $0x30] sm:$0xf]
        %v2489 = vld [vmem:[%s2475 + $0x34] sm:$0xf]
        %v2490 = vld [vmem:[%s2475 + $0x38] sm:$0xf]
        %v2491 = vld [vmem:[%s2475 + $0x3c] sm:$0xf]
        %v2508 = vunpack.c.l.b16 %v2476
        %v2509 = vunpack.c.l.b16 %v2477
        %v2510 = vunpack.c.l.b16 %v2478
        %v2511 = vunpack.c.l.b16 %v2479
        %v2512 = vunpack.c.l.b16 %v2480
        %v2513 = vunpack.c.l.b16 %v2481
        %v2514 = vunpack.c.l.b16 %v2482
        %v2515 = vunpack.c.l.b16 %v2483
        %v2516 = vunpack.c.l.b16 %v2484
        %v2517 = vunpack.c.l.b16 %v2485
        %v2518 = vunpack.c.l.b16 %v2486
        %v2519 = vunpack.c.l.b16 %v2487
        %v2520 = vunpack.c.l.b16 %v2488
        %v2521 = vunpack.c.l.b16 %v2489
        %v2522 = vunpack.c.l.b16 %v2490
        %v2523 = vunpack.c.l.b16 %v2491
        %v2524 = vpack.c.b16 %v2509, %v2508
        %v2525 = vpack.c.b16 %v2511, %v2510
        %v2526 = vpack.c.b16 %v2513, %v2512
        %v2527 = vpack.c.b16 %v2515, %v2514
        %v2528 = vpack.c.b16 %v2517, %v2516
        %v2529 = vpack.c.b16 %v2519, %v2518
        %v2530 = vpack.c.b16 %v2521, %v2520
        %v2531 = vpack.c.b16 %v2523, %v2522
        %2540 = vmatpush.bf16.msra.mxu0 %v2531
        %2541 = vmatpush.bf16.msra.mxu0 %v2530
        %2542 = vmatpush.bf16.msra.mxu0 %v2529
        %2543 = vmatpush.bf16.msra.mxu0 %v2528
        %2544 = vmatpush.bf16.msra.mxu0 %v2527
        %2545 = vmatpush.bf16.msra.mxu0 %v2526
        %2546 = vmatpush.bf16.msra.mxu0 %v2525
        %2547 = vmatpush.bf16.msra.mxu0 %v2524
        %2548 = vmatmul.bf16.gmra.mxu0 %v2451
        %v2549 = vpop.f32.mrf.mxu0
        %v2550 = vadd.f32 0.0, %v2549
        %v2551 = vpop.f32.mrf.mxu0
        %v2552 = vadd.f32 0.0, %v2551
        %2553 = vmatmul.bf16.gmra.mxu0 %v2452
        %v2554 = vpop.f32.mrf.mxu0
        %v2555 = vpop.f32.mrf.mxu0
        %v2556 = vadd.f32 0.0, %v2555
        %2557 = vmatmul.bf16.gmra.mxu0 %v2453
        %v2558 = vpop.f32.mrf.mxu0
        %v2559 = vadd.f32 0.0, %v2558
        %v2560 = vpop.f32.mrf.mxu0
        %2561 = vmatmul.bf16.gmra.mxu0 %v2454
        %v2562 = vpop.f32.mrf.mxu0
        %v2563 = vadd.f32 0.0, %v2562
        %v2564 = vpop.f32.mrf.mxu0
        %v2565 = vadd.f32 0.0, %v2564
        %2566 = vmatmul.bf16.gmra.mxu0 %v2455
        %v2567 = vpop.f32.mrf.mxu0
        %v2568 = vpop.f32.mrf.mxu0
        %v2569 = vadd.f32 0.0, %v2568
        %2570 = vmatmul.bf16.gmra.mxu0 %v2456
        %v2571 = vpop.f32.mrf.mxu0
        %v2572 = vadd.f32 0.0, %v2571
        %v2573 = vpop.f32.mrf.mxu0
        %2574 = vmatmul.bf16.gmra.mxu0 %v2457
        %v2575 = vpop.f32.mrf.mxu0
        %v2576 = vadd.f32 0.0, %v2575
        %v2577 = vpop.f32.mrf.mxu0
        %v2578 = vadd.f32 0.0, %v2577
        %2579 = vmatmul.bf16.gmra.mxu0 %v2458
        %v2580 = vpop.f32.mrf.mxu0
        %v2581 = vpop.f32.mrf.mxu0
        %v2582 = vadd.f32 0.0, %v2581
        %2583 = vmatmul.bf16.gmra.mxu0 %v2459
        %v2584 = vpop.f32.mrf.mxu0
        %v2585 = vadd.f32 0.0, %v2584
        %v2586 = vpop.f32.mrf.mxu0
        %2587 = vmatmul.bf16.gmra.mxu0 %v2460
        %v2588 = vpop.f32.mrf.mxu0
        %v2589 = vadd.f32 0.0, %v2588
        %v2590 = vpop.f32.mrf.mxu0
        %v2591 = vadd.f32 0.0, %v2590
        %2592 = vmatmul.bf16.gmra.mxu0 %v2461
        %v2593 = vpop.f32.mrf.mxu0
        %v2594 = vpop.f32.mrf.mxu0
        %v2595 = vadd.f32 0.0, %v2594
        %2596 = vmatmul.bf16.gmra.mxu0 %v2462
        %v2597 = vpop.f32.mrf.mxu0
        %v2598 = vadd.f32 0.0, %v2597
        %v2599 = vpop.f32.mrf.mxu0
        %2600 = vmatmul.bf16.gmra.mxu0 %v2463
        %v2601 = vpop.f32.mrf.mxu0
        %v2602 = vadd.f32 0.0, %v2601
        %v2603 = vpop.f32.mrf.mxu0
        %v2604 = vadd.f32 0.0, %v2603
        %2605 = vmatmul.bf16.gmra.mxu0 %v2464
        %v2606 = vpop.f32.mrf.mxu0
        %v2607 = vpop.f32.mrf.mxu0
        %v2608 = vadd.f32 0.0, %v2607
        %2609 = vmatmul.bf16.gmra.mxu0 %v2465
        %v2610 = vpop.f32.mrf.mxu0
        %v2611 = vadd.f32 0.0, %v2610
        %v2612 = vpop.f32.mrf.mxu0
        %2613 = vmatmul.bf16.gmra.mxu0 %v2466
        %v2614 = vpop.f32.mrf.mxu0
        %v2615 = vadd.f32 0.0, %v2614
        %v2616 = vpop.f32.mrf.mxu0
        %v2617 = vadd.f32 0.0, %v2616
        %2618 = vmatmul.bf16.gmra.mxu0 %v2467
        %v2619 = vpop.f32.mrf.mxu0
        %v2620 = vpop.f32.mrf.mxu0
        %v2621 = vadd.f32 0.0, %v2620
        %2622 = vmatmul.bf16.gmra.mxu0 %v2468
        %v2623 = vpop.f32.mrf.mxu0
        %v2624 = vadd.f32 0.0, %v2623
        %v2625 = vpop.f32.mrf.mxu0
        %2626 = vmatmul.bf16.gmra.mxu0 %v2469
        %v2627 = vpop.f32.mrf.mxu0
        %v2628 = vadd.f32 0.0, %v2627
        %v2629 = vpop.f32.mrf.mxu0
        %v2630 = vadd.f32 0.0, %v2629
        %2631 = vmatmul.bf16.gmra.mxu0 %v2470
        %v2632 = vpop.f32.mrf.mxu0
        %v2633 = vpop.f32.mrf.mxu0
        %v2634 = vadd.f32 0.0, %v2633
        %2635 = vmatmul.bf16.gmra.mxu0 %v2471
        %v2636 = vpop.f32.mrf.mxu0
        %v2637 = vadd.f32 0.0, %v2636
        %v2638 = vpop.f32.mrf.mxu0
        %2639 = vmatmul.bf16.gmra.mxu0 %v2472
        %v2640 = vpop.f32.mrf.mxu0
        %v2641 = vadd.f32 0.0, %v2640
        %v2642 = vpop.f32.mrf.mxu0
        %v2643 = vadd.f32 0.0, %v2642
        %2644 = vmatmul.bf16.gmra.mxu0 %v2473
        %v2645 = vpop.f32.mrf.mxu0
        %v2646 = vpop.f32.mrf.mxu0
        %v2647 = vadd.f32 0.0, %v2646
        %2648 = vmatmul.bf16.gmra.mxu0 %v2474
        %v2649 = vpop.f32.mrf.mxu0
        %v2650 = vadd.f32 0.0, %v2649
        %v2651 = vpop.f32.mrf.mxu0
        %2652 = vdwg.mxu0
        %v2653 = vadd.f32 %v2371, %v2550
        %v2654 = vadd.f32 %v2372, %v2552
        %v2655 = vadd.f32 %v2373, %v2556
        %v2656 = vadd.f32 %v2374, %v2559
        %v2657 = vadd.f32 %v2375, %v2563
        %v2658 = vadd.f32 %v2376, %v2565
        %v2659 = vadd.f32 %v2377, %v2569
        %v2660 = vadd.f32 %v2378, %v2572
        %v2661 = vadd.f32 %v2379, %v2576
        %v2662 = vadd.f32 %v2380, %v2578
        %v2663 = vadd.f32 %v2381, %v2582
        %v2664 = vadd.f32 %v2382, %v2585
        %v2665 = vadd.f32 %v2383, %v2589
        %v2666 = vadd.f32 %v2384, %v2591
        %v2667 = vadd.f32 %v2385, %v2595
        %v2668 = vadd.f32 %v2386, %v2598
        %v2669 = vadd.f32 %v2387, %v2602
        %v2670 = vadd.f32 %v2388, %v2604
        %v2671 = vadd.f32 %v2389, %v2608
        %v2672 = vadd.f32 %v2390, %v2611
        %v2673 = vadd.f32 %v2391, %v2615
        %v2674 = vadd.f32 %v2392, %v2617
        %v2675 = vadd.f32 %v2393, %v2621
        %v2676 = vadd.f32 %v2394, %v2624
        %v2677 = vadd.f32 %v2395, %v2628
        %v2678 = vadd.f32 %v2396, %v2630
        %v2679 = vadd.f32 %v2397, %v2634
        %v2680 = vadd.f32 %v2398, %v2637
        %v2681 = vadd.f32 %v2399, %v2641
        %v2682 = vadd.f32 %v2400, %v2643
        %v2683 = vadd.f32 %v2401, %v2647
        %v2684 = vadd.f32 %v2402, %v2650
        %v2685 = vld [vmem:[#allocation2 + $0x38] sm:$0xff]
        %v2686 = vld [vmem:[#allocation2 + $0x40] sm:$0xff]
        %v2687 = vld [vmem:[#allocation2 + $0x48] sm:$0xff]
        %v2688 = vld [vmem:[#allocation2 + $0x50] sm:$0xff]
        %v2689 = vld [vmem:[#allocation2 + $0x58] sm:$0xff]
        %v2690 = vld [vmem:[#allocation2 + $0x60] sm:$0xff]
        %v2691 = vld [vmem:[#allocation2 + $0x68] sm:$0xff]
        %v2692 = vld [vmem:[#allocation2 + $0x70] sm:$0xff]
        %v2693 = vld [vmem:[#allocation2 + $0x78] sm:$0xff]
        %v2694 = vld [vmem:[#allocation2 + $0x80] sm:$0xff]
        %v2695 = vld [vmem:[#allocation2 + $0x88] sm:$0xff]
        %v2696 = vld [vmem:[#allocation2 + $0x90] sm:$0xff]
        %v2697 = vld [vmem:[#allocation2 + $0x98] sm:$0xff]
        %v2698 = vld [vmem:[#allocation2 + $0xa0] sm:$0xff]
        %v2699 = vld [vmem:[#allocation2 + $0xa8] sm:$0xff]
        %v2700 = vld [vmem:[#allocation2 + $0xb0] sm:$0xff]
        %v2701 = vld [vmem:[#allocation2 + $0xb8] sm:$0xff]
        %v2702 = vld [vmem:[#allocation2 + $0xc0] sm:$0xff]
        %v2703 = vld [vmem:[#allocation2 + $0xc8] sm:$0xff]
        %v2704 = vld [vmem:[#allocation2 + $0xd0] sm:$0xff]
        %v2705 = vld [vmem:[#allocation2 + $0xd8] sm:$0xff]
        %v2706 = vld [vmem:[#allocation2 + $0xe0] sm:$0xff]
        %v2707 = vld [vmem:[#allocation2 + $0xe8] sm:$0xff]
        %v2708 = vld [vmem:[#allocation2 + $0xf0] sm:$0xff]
        %v2709 = vld [vmem:[#allocation2 + $0xf8] sm:$0xff]
        %v2710 = vld [vmem:[#allocation2 + $0x100] sm:$0xff]
        %v2711 = vld [vmem:[#allocation2 + $0x108] sm:$0xff]
        %v2712 = vld [vmem:[#allocation2 + $0x110] sm:$0xff]
        %v2713 = vld [vmem:[#allocation2 + $0x118] sm:$0xff]
        %v2714 = vld [vmem:[#allocation2 + $0x120] sm:$0xff]
        %v2715 = vld [vmem:[#allocation2 + $0x128] sm:$0xff]
        %v2716 = vld [vmem:[#allocation2 + $0x130] sm:$0xff]
        %v2717 = vld [vmem:[#allocation2 + $0x138] sm:$0xff]
        %v2718 = vld [vmem:[#allocation2 + $0x140] sm:$0xff]
        %v2719 = vld [vmem:[#allocation2 + $0x148] sm:$0xff]
        %v2720 = vld [vmem:[#allocation2 + $0x150] sm:$0xff]
        %v2721 = vld [vmem:[#allocation2 + $0x158] sm:$0xff]
        %v2722 = vld [vmem:[#allocation2 + $0x160] sm:$0xff]
        %v2723 = vld [vmem:[#allocation2 + $0x168] sm:$0xff]
        %v2724 = vld [vmem:[#allocation2 + $0x170] sm:$0xff]
        %v2725 = vld [vmem:[#allocation2 + $0x178] sm:$0xff]
        %v2726 = vld [vmem:[#allocation2 + $0x180] sm:$0xff]
        %v2727 = vld [vmem:[#allocation2 + $0x188] sm:$0xff]
        %v2728 = vld [vmem:[#allocation2 + $0x190] sm:$0xff]
        %v2729 = vld [vmem:[#allocation2 + $0x198] sm:$0xff]
        %v2730 = vld [vmem:[#allocation2 + $0x1a0] sm:$0xff]
        %v2731 = vld [vmem:[#allocation2 + $0x1a8] sm:$0xff]
        %v2732 = vld [vmem:[#allocation2 + $0x1b0] sm:$0xff]
        %v2733 = vpack.c.bf16 %v2686, %v2685
        %v2734 = vpack.c.bf16 %v2688, %v2687
        %v2735 = vpack.c.bf16 %v2690, %v2689
        %v2736 = vpack.c.bf16 %v2692, %v2691
        %v2737 = vpack.c.bf16 %v2694, %v2693
        %v2738 = vpack.c.bf16 %v2696, %v2695
        %v2739 = vpack.c.bf16 %v2698, %v2697
        %v2740 = vpack.c.bf16 %v2700, %v2699
        %v2741 = vpack.c.bf16 %v2702, %v2701
        %v2742 = vpack.c.bf16 %v2704, %v2703
        %v2743 = vpack.c.bf16 %v2706, %v2705
        %v2744 = vpack.c.bf16 %v2708, %v2707
        %v2745 = vpack.c.bf16 %v2710, %v2709
        %v2746 = vpack.c.bf16 %v2712, %v2711
        %v2747 = vpack.c.bf16 %v2714, %v2713
        %v2748 = vpack.c.bf16 %v2716, %v2715
        %v2749 = vpack.c.bf16 %v2718, %v2717
        %v2750 = vpack.c.bf16 %v2720, %v2719
        %v2751 = vpack.c.bf16 %v2722, %v2721
        %v2752 = vpack.c.bf16 %v2724, %v2723
        %v2753 = vpack.c.bf16 %v2726, %v2725
        %v2754 = vpack.c.bf16 %v2728, %v2727
        %v2755 = vpack.c.bf16 %v2730, %v2729
        %v2756 = vpack.c.bf16 %v2732, %v2731
        %s2757 = scalar_lea.vmem [#allocation8], 448
        %v2758 = vld [vmem:[%s2757] sm:$0xf]
        %v2759 = vld [vmem:[%s2757 + $0x4] sm:$0xf]
        %v2760 = vld [vmem:[%s2757 + $0x8] sm:$0xf]
        %v2761 = vld [vmem:[%s2757 + $0xc] sm:$0xf]
        %v2762 = vld [vmem:[%s2757 + $0x10] sm:$0xf]
        %v2763 = vld [vmem:[%s2757 + $0x14] sm:$0xf]
        %v2764 = vld [vmem:[%s2757 + $0x18] sm:$0xf]
        %v2765 = vld [vmem:[%s2757 + $0x1c] sm:$0xf]
        %v2766 = vld [vmem:[%s2757 + $0x20] sm:$0xf]
        %v2767 = vld [vmem:[%s2757 + $0x24] sm:$0xf]
        %v2768 = vld [vmem:[%s2757 + $0x28] sm:$0xf]
        %v2769 = vld [vmem:[%s2757 + $0x2c] sm:$0xf]
        %v2770 = vld [vmem:[%s2757 + $0x30] sm:$0xf]
        %v2771 = vld [vmem:[%s2757 + $0x34] sm:$0xf]
        %v2772 = vld [vmem:[%s2757 + $0x38] sm:$0xf]
        %v2773 = vld [vmem:[%s2757 + $0x3c] sm:$0xf]
        %v2790 = vunpack.c.l.b16 %v2758
        %v2791 = vunpack.c.l.b16 %v2759
        %v2792 = vunpack.c.l.b16 %v2760
        %v2793 = vunpack.c.l.b16 %v2761
        %v2794 = vunpack.c.l.b16 %v2762
        %v2795 = vunpack.c.l.b16 %v2763
        %v2796 = vunpack.c.l.b16 %v2764
        %v2797 = vunpack.c.l.b16 %v2765
        %v2798 = vunpack.c.l.b16 %v2766
        %v2799 = vunpack.c.l.b16 %v2767
        %v2800 = vunpack.c.l.b16 %v2768
        %v2801 = vunpack.c.l.b16 %v2769
        %v2802 = vunpack.c.l.b16 %v2770
        %v2803 = vunpack.c.l.b16 %v2771
        %v2804 = vunpack.c.l.b16 %v2772
        %v2805 = vunpack.c.l.b16 %v2773
        %v2806 = vpack.c.b16 %v2791, %v2790
        %v2807 = vpack.c.b16 %v2793, %v2792
        %v2808 = vpack.c.b16 %v2795, %v2794
        %v2809 = vpack.c.b16 %v2797, %v2796
        %v2810 = vpack.c.b16 %v2799, %v2798
        %v2811 = vpack.c.b16 %v2801, %v2800
        %v2812 = vpack.c.b16 %v2803, %v2802
        %v2813 = vpack.c.b16 %v2805, %v2804
        %2822 = vmatpush.bf16.msra.mxu0 %v2813
        %2823 = vmatpush.bf16.msra.mxu0 %v2812
        %2824 = vmatpush.bf16.msra.mxu0 %v2811
        %2825 = vmatpush.bf16.msra.mxu0 %v2810
        %2826 = vmatpush.bf16.msra.mxu0 %v2809
        %2827 = vmatpush.bf16.msra.mxu0 %v2808
        %2828 = vmatpush.bf16.msra.mxu0 %v2807
        %2829 = vmatpush.bf16.msra.mxu0 %v2806
        %2830 = vmatmul.bf16.gmra.mxu0 %v2733
        %v2831 = vpop.f32.mrf.mxu0
        %v2832 = vadd.f32 0.0, %v2831
        %v2833 = vpop.f32.mrf.mxu0
        %v2834 = vadd.f32 0.0, %v2833
        %2835 = vmatmul.bf16.gmra.mxu0 %v2734
        %v2836 = vpop.f32.mrf.mxu0
        %v2837 = vpop.f32.mrf.mxu0
        %v2838 = vadd.f32 0.0, %v2837
        %2839 = vmatmul.bf16.gmra.mxu0 %v2735
        %v2840 = vpop.f32.mrf.mxu0
        %v2841 = vadd.f32 0.0, %v2840
        %v2842 = vpop.f32.mrf.mxu0
        %2843 = vmatmul.bf16.gmra.mxu0 %v2736
        %v2844 = vpop.f32.mrf.mxu0
        %v2845 = vadd.f32 0.0, %v2844
        %v2846 = vpop.f32.mrf.mxu0
        %v2847 = vadd.f32 0.0, %v2846
        %2848 = vmatmul.bf16.gmra.mxu0 %v2737
        %v2849 = vpop.f32.mrf.mxu0
        %v2850 = vpop.f32.mrf.mxu0
        %v2851 = vadd.f32 0.0, %v2850
        %2852 = vmatmul.bf16.gmra.mxu0 %v2738
        %v2853 = vpop.f32.mrf.mxu0
        %v2854 = vadd.f32 0.0, %v2853
        %v2855 = vpop.f32.mrf.mxu0
        %2856 = vmatmul.bf16.gmra.mxu0 %v2739
        %v2857 = vpop.f32.mrf.mxu0
        %v2858 = vadd.f32 0.0, %v2857
        %v2859 = vpop.f32.mrf.mxu0
        %v2860 = vadd.f32 0.0, %v2859
        %2861 = vmatmul.bf16.gmra.mxu0 %v2740
        %v2862 = vpop.f32.mrf.mxu0
        %v2863 = vpop.f32.mrf.mxu0
        %v2864 = vadd.f32 0.0, %v2863
        %2865 = vmatmul.bf16.gmra.mxu0 %v2741
        %v2866 = vpop.f32.mrf.mxu0
        %v2867 = vadd.f32 0.0, %v2866
        %v2868 = vpop.f32.mrf.mxu0
        %2869 = vmatmul.bf16.gmra.mxu0 %v2742
        %v2870 = vpop.f32.mrf.mxu0
        %v2871 = vadd.f32 0.0, %v2870
        %v2872 = vpop.f32.mrf.mxu0
        %v2873 = vadd.f32 0.0, %v2872
        %2874 = vmatmul.bf16.gmra.mxu0 %v2743
        %v2875 = vpop.f32.mrf.mxu0
        %v2876 = vpop.f32.mrf.mxu0
        %v2877 = vadd.f32 0.0, %v2876
        %2878 = vmatmul.bf16.gmra.mxu0 %v2744
        %v2879 = vpop.f32.mrf.mxu0
        %v2880 = vadd.f32 0.0, %v2879
        %v2881 = vpop.f32.mrf.mxu0
        %2882 = vmatmul.bf16.gmra.mxu0 %v2745
        %v2883 = vpop.f32.mrf.mxu0
        %v2884 = vadd.f32 0.0, %v2883
        %v2885 = vpop.f32.mrf.mxu0
        %v2886 = vadd.f32 0.0, %v2885
        %2887 = vmatmul.bf16.gmra.mxu0 %v2746
        %v2888 = vpop.f32.mrf.mxu0
        %v2889 = vpop.f32.mrf.mxu0
        %v2890 = vadd.f32 0.0, %v2889
        %2891 = vmatmul.bf16.gmra.mxu0 %v2747
        %v2892 = vpop.f32.mrf.mxu0
        %v2893 = vadd.f32 0.0, %v2892
        %v2894 = vpop.f32.mrf.mxu0
        %2895 = vmatmul.bf16.gmra.mxu0 %v2748
        %v2896 = vpop.f32.mrf.mxu0
        %v2897 = vadd.f32 0.0, %v2896
        %v2898 = vpop.f32.mrf.mxu0
        %v2899 = vadd.f32 0.0, %v2898
        %2900 = vmatmul.bf16.gmra.mxu0 %v2749
        %v2901 = vpop.f32.mrf.mxu0
        %v2902 = vpop.f32.mrf.mxu0
        %v2903 = vadd.f32 0.0, %v2902
        %2904 = vmatmul.bf16.gmra.mxu0 %v2750
        %v2905 = vpop.f32.mrf.mxu0
        %v2906 = vadd.f32 0.0, %v2905
        %v2907 = vpop.f32.mrf.mxu0
        %2908 = vmatmul.bf16.gmra.mxu0 %v2751
        %v2909 = vpop.f32.mrf.mxu0
        %v2910 = vadd.f32 0.0, %v2909
        %v2911 = vpop.f32.mrf.mxu0
        %v2912 = vadd.f32 0.0, %v2911
        %2913 = vmatmul.bf16.gmra.mxu0 %v2752
        %v2914 = vpop.f32.mrf.mxu0
        %v2915 = vpop.f32.mrf.mxu0
        %v2916 = vadd.f32 0.0, %v2915
        %2917 = vmatmul.bf16.gmra.mxu0 %v2753
        %v2918 = vpop.f32.mrf.mxu0
        %v2919 = vadd.f32 0.0, %v2918
        %v2920 = vpop.f32.mrf.mxu0
        %2921 = vmatmul.bf16.gmra.mxu0 %v2754
        %v2922 = vpop.f32.mrf.mxu0
        %v2923 = vadd.f32 0.0, %v2922
        %v2924 = vpop.f32.mrf.mxu0
        %v2925 = vadd.f32 0.0, %v2924
        %2926 = vmatmul.bf16.gmra.mxu0 %v2755
        %v2927 = vpop.f32.mrf.mxu0
        %v2928 = vpop.f32.mrf.mxu0
        %v2929 = vadd.f32 0.0, %v2928
        %2930 = vmatmul.bf16.gmra.mxu0 %v2756
        %v2931 = vpop.f32.mrf.mxu0
        %v2932 = vadd.f32 0.0, %v2931
        %v2933 = vpop.f32.mrf.mxu0
        %2934 = vdwg.mxu0
        %v2935 = vadd.f32 %v2653, %v2832
        %v2936 = vadd.f32 %v2654, %v2834
        %v2937 = vadd.f32 %v2655, %v2838
        %v2938 = vadd.f32 %v2656, %v2841
        %v2939 = vadd.f32 %v2657, %v2845
        %v2940 = vadd.f32 %v2658, %v2847
        %v2941 = vadd.f32 %v2659, %v2851
        %v2942 = vadd.f32 %v2660, %v2854
        %v2943 = vadd.f32 %v2661, %v2858
        %v2944 = vadd.f32 %v2662, %v2860
        %v2945 = vadd.f32 %v2663, %v2864
        %v2946 = vadd.f32 %v2664, %v2867
        %v2947 = vadd.f32 %v2665, %v2871
        %v2948 = vadd.f32 %v2666, %v2873
        %v2949 = vadd.f32 %v2667, %v2877
        %v2950 = vadd.f32 %v2668, %v2880
        %v2951 = vadd.f32 %v2669, %v2884
        %v2952 = vadd.f32 %v2670, %v2886
        %v2953 = vadd.f32 %v2671, %v2890
        %v2954 = vadd.f32 %v2672, %v2893
        %v2955 = vadd.f32 %v2673, %v2897
        %v2956 = vadd.f32 %v2674, %v2899
        %v2957 = vadd.f32 %v2675, %v2903
        %v2958 = vadd.f32 %v2676, %v2906
        %v2959 = vadd.f32 %v2677, %v2910
        %v2960 = vadd.f32 %v2678, %v2912
        %v2961 = vadd.f32 %v2679, %v2916
        %v2962 = vadd.f32 %v2680, %v2919
        %v2963 = vadd.f32 %v2681, %v2923
        %v2964 = vadd.f32 %v2682, %v2925
        %v2965 = vadd.f32 %v2683, %v2929
        %v2966 = vadd.f32 %v2684, %v2932
        %v2967 = vld [vmem:[#allocation2 + $0x39] sm:$0xff]
        %v2968 = vld [vmem:[#allocation2 + $0x41] sm:$0xff]
        %v2969 = vld [vmem:[#allocation2 + $0x49] sm:$0xff]
        %v2970 = vld [vmem:[#allocation2 + $0x51] sm:$0xff]
        %v2971 = vld [vmem:[#allocation2 + $0x59] sm:$0xff]
        %v2972 = vld [vmem:[#allocation2 + $0x61] sm:$0xff]
        %v2973 = vld [vmem:[#allocation2 + $0x69] sm:$0xff]
        %v2974 = vld [vmem:[#allocation2 + $0x71] sm:$0xff]
        %v2975 = vld [vmem:[#allocation2 + $0x79] sm:$0xff]
        %v2976 = vld [vmem:[#allocation2 + $0x81] sm:$0xff]
        %v2977 = vld [vmem:[#allocation2 + $0x89] sm:$0xff]
        %v2978 = vld [vmem:[#allocation2 + $0x91] sm:$0xff]
        %v2979 = vld [vmem:[#allocation2 + $0x99] sm:$0xff]
        %v2980 = vld [vmem:[#allocation2 + $0xa1] sm:$0xff]
        %v2981 = vld [vmem:[#allocation2 + $0xa9] sm:$0xff]
        %v2982 = vld [vmem:[#allocation2 + $0xb1] sm:$0xff]
        %v2983 = vld [vmem:[#allocation2 + $0xb9] sm:$0xff]
        %v2984 = vld [vmem:[#allocation2 + $0xc1] sm:$0xff]
        %v2985 = vld [vmem:[#allocation2 + $0xc9] sm:$0xff]
        %v2986 = vld [vmem:[#allocation2 + $0xd1] sm:$0xff]
        %v2987 = vld [vmem:[#allocation2 + $0xd9] sm:$0xff]
        %v2988 = vld [vmem:[#allocation2 + $0xe1] sm:$0xff]
        %v2989 = vld [vmem:[#allocation2 + $0xe9] sm:$0xff]
        %v2990 = vld [vmem:[#allocation2 + $0xf1] sm:$0xff]
        %v2991 = vld [vmem:[#allocation2 + $0xf9] sm:$0xff]
        %v2992 = vld [vmem:[#allocation2 + $0x101] sm:$0xff]
        %v2993 = vld [vmem:[#allocation2 + $0x109] sm:$0xff]
        %v2994 = vld [vmem:[#allocation2 + $0x111] sm:$0xff]
        %v2995 = vld [vmem:[#allocation2 + $0x119] sm:$0xff]
        %v2996 = vld [vmem:[#allocation2 + $0x121] sm:$0xff]
        %v2997 = vld [vmem:[#allocation2 + $0x129] sm:$0xff]
        %v2998 = vld [vmem:[#allocation2 + $0x131] sm:$0xff]
        %v2999 = vld [vmem:[#allocation2 + $0x139] sm:$0xff]
        %v3000 = vld [vmem:[#allocation2 + $0x141] sm:$0xff]
        %v3001 = vld [vmem:[#allocation2 + $0x149] sm:$0xff]
        %v3002 = vld [vmem:[#allocation2 + $0x151] sm:$0xff]
        %v3003 = vld [vmem:[#allocation2 + $0x159] sm:$0xff]
        %v3004 = vld [vmem:[#allocation2 + $0x161] sm:$0xff]
        %v3005 = vld [vmem:[#allocation2 + $0x169] sm:$0xff]
        %v3006 = vld [vmem:[#allocation2 + $0x171] sm:$0xff]
        %v3007 = vld [vmem:[#allocation2 + $0x179] sm:$0xff]
        %v3008 = vld [vmem:[#allocation2 + $0x181] sm:$0xff]
        %v3009 = vld [vmem:[#allocation2 + $0x189] sm:$0xff]
        %v3010 = vld [vmem:[#allocation2 + $0x191] sm:$0xff]
        %v3011 = vld [vmem:[#allocation2 + $0x199] sm:$0xff]
        %v3012 = vld [vmem:[#allocation2 + $0x1a1] sm:$0xff]
        %v3013 = vld [vmem:[#allocation2 + $0x1a9] sm:$0xff]
        %v3014 = vld [vmem:[#allocation2 + $0x1b1] sm:$0xff]
        %v3015 = vpack.c.bf16 %v2968, %v2967
        %v3016 = vpack.c.bf16 %v2970, %v2969
        %v3017 = vpack.c.bf16 %v2972, %v2971
        %v3018 = vpack.c.bf16 %v2974, %v2973
        %v3019 = vpack.c.bf16 %v2976, %v2975
        %v3020 = vpack.c.bf16 %v2978, %v2977
        %v3021 = vpack.c.bf16 %v2980, %v2979
        %v3022 = vpack.c.bf16 %v2982, %v2981
        %v3023 = vpack.c.bf16 %v2984, %v2983
        %v3024 = vpack.c.bf16 %v2986, %v2985
        %v3025 = vpack.c.bf16 %v2988, %v2987
        %v3026 = vpack.c.bf16 %v2990, %v2989
        %v3027 = vpack.c.bf16 %v2992, %v2991
        %v3028 = vpack.c.bf16 %v2994, %v2993
        %v3029 = vpack.c.bf16 %v2996, %v2995
        %v3030 = vpack.c.bf16 %v2998, %v2997
        %v3031 = vpack.c.bf16 %v3000, %v2999
        %v3032 = vpack.c.bf16 %v3002, %v3001
        %v3033 = vpack.c.bf16 %v3004, %v3003
        %v3034 = vpack.c.bf16 %v3006, %v3005
        %v3035 = vpack.c.bf16 %v3008, %v3007
        %v3036 = vpack.c.bf16 %v3010, %v3009
        %v3037 = vpack.c.bf16 %v3012, %v3011
        %v3038 = vpack.c.bf16 %v3014, %v3013
        %s3039 = scalar_lea.vmem [#allocation8], 512
        %v3040 = vld [vmem:[%s3039] sm:$0xf]
        %v3041 = vld [vmem:[%s3039 + $0x4] sm:$0xf]
        %v3042 = vld [vmem:[%s3039 + $0x8] sm:$0xf]
        %v3043 = vld [vmem:[%s3039 + $0xc] sm:$0xf]
        %v3044 = vld [vmem:[%s3039 + $0x10] sm:$0xf]
        %v3045 = vld [vmem:[%s3039 + $0x14] sm:$0xf]
        %v3046 = vld [vmem:[%s3039 + $0x18] sm:$0xf]
        %v3047 = vld [vmem:[%s3039 + $0x1c] sm:$0xf]
        %v3048 = vld [vmem:[%s3039 + $0x20] sm:$0xf]
        %v3049 = vld [vmem:[%s3039 + $0x24] sm:$0xf]
        %v3050 = vld [vmem:[%s3039 + $0x28] sm:$0xf]
        %v3051 = vld [vmem:[%s3039 + $0x2c] sm:$0xf]
        %v3052 = vld [vmem:[%s3039 + $0x30] sm:$0xf]
        %v3053 = vld [vmem:[%s3039 + $0x34] sm:$0xf]
        %v3054 = vld [vmem:[%s3039 + $0x38] sm:$0xf]
        %v3055 = vld [vmem:[%s3039 + $0x3c] sm:$0xf]
        %v3072 = vunpack.c.l.b16 %v3040
        %v3073 = vunpack.c.l.b16 %v3041
        %v3074 = vunpack.c.l.b16 %v3042
        %v3075 = vunpack.c.l.b16 %v3043
        %v3076 = vunpack.c.l.b16 %v3044
        %v3077 = vunpack.c.l.b16 %v3045
        %v3078 = vunpack.c.l.b16 %v3046
        %v3079 = vunpack.c.l.b16 %v3047
        %v3080 = vunpack.c.l.b16 %v3048
        %v3081 = vunpack.c.l.b16 %v3049
        %v3082 = vunpack.c.l.b16 %v3050
        %v3083 = vunpack.c.l.b16 %v3051
        %v3084 = vunpack.c.l.b16 %v3052
        %v3085 = vunpack.c.l.b16 %v3053
        %v3086 = vunpack.c.l.b16 %v3054
        %v3087 = vunpack.c.l.b16 %v3055
        %v3088 = vpack.c.b16 %v3073, %v3072
        %v3089 = vpack.c.b16 %v3075, %v3074
        %v3090 = vpack.c.b16 %v3077, %v3076
        %v3091 = vpack.c.b16 %v3079, %v3078
        %v3092 = vpack.c.b16 %v3081, %v3080
        %v3093 = vpack.c.b16 %v3083, %v3082
        %v3094 = vpack.c.b16 %v3085, %v3084
        %v3095 = vpack.c.b16 %v3087, %v3086
        %3104 = vmatpush.bf16.msra.mxu0 %v3095
        %3105 = vmatpush.bf16.msra.mxu0 %v3094
        %3106 = vmatpush.bf16.msra.mxu0 %v3093
        %3107 = vmatpush.bf16.msra.mxu0 %v3092
        %3108 = vmatpush.bf16.msra.mxu0 %v3091
        %3109 = vmatpush.bf16.msra.mxu0 %v3090
        %3110 = vmatpush.bf16.msra.mxu0 %v3089
        %3111 = vmatpush.bf16.msra.mxu0 %v3088
        %3112 = vmatmul.bf16.gmra.mxu0 %v3015
        %v3113 = vpop.f32.mrf.mxu0
        %v3114 = vadd.f32 0.0, %v3113
        %v3115 = vpop.f32.mrf.mxu0
        %v3116 = vadd.f32 0.0, %v3115
        %3117 = vmatmul.bf16.gmra.mxu0 %v3016
        %v3118 = vpop.f32.mrf.mxu0
        %v3119 = vpop.f32.mrf.mxu0
        %v3120 = vadd.f32 0.0, %v3119
        %3121 = vmatmul.bf16.gmra.mxu0 %v3017
        %v3122 = vpop.f32.mrf.mxu0
        %v3123 = vadd.f32 0.0, %v3122
        %v3124 = vpop.f32.mrf.mxu0
        %3125 = vmatmul.bf16.gmra.mxu0 %v3018
        %v3126 = vpop.f32.mrf.mxu0
        %v3127 = vadd.f32 0.0, %v3126
        %v3128 = vpop.f32.mrf.mxu0
        %v3129 = vadd.f32 0.0, %v3128
        %3130 = vmatmul.bf16.gmra.mxu0 %v3019
        %v3131 = vpop.f32.mrf.mxu0
        %v3132 = vpop.f32.mrf.mxu0
        %v3133 = vadd.f32 0.0, %v3132
        %3134 = vmatmul.bf16.gmra.mxu0 %v3020
        %v3135 = vpop.f32.mrf.mxu0
        %v3136 = vadd.f32 0.0, %v3135
        %v3137 = vpop.f32.mrf.mxu0
        %3138 = vmatmul.bf16.gmra.mxu0 %v3021
        %v3139 = vpop.f32.mrf.mxu0
        %v3140 = vadd.f32 0.0, %v3139
        %v3141 = vpop.f32.mrf.mxu0
        %v3142 = vadd.f32 0.0, %v3141
        %3143 = vmatmul.bf16.gmra.mxu0 %v3022
        %v3144 = vpop.f32.mrf.mxu0
        %v3145 = vpop.f32.mrf.mxu0
        %v3146 = vadd.f32 0.0, %v3145
        %3147 = vmatmul.bf16.gmra.mxu0 %v3023
        %v3148 = vpop.f32.mrf.mxu0
        %v3149 = vadd.f32 0.0, %v3148
        %v3150 = vpop.f32.mrf.mxu0
        %3151 = vmatmul.bf16.gmra.mxu0 %v3024
        %v3152 = vpop.f32.mrf.mxu0
        %v3153 = vadd.f32 0.0, %v3152
        %v3154 = vpop.f32.mrf.mxu0
        %v3155 = vadd.f32 0.0, %v3154
        %3156 = vmatmul.bf16.gmra.mxu0 %v3025
        %v3157 = vpop.f32.mrf.mxu0
        %v3158 = vpop.f32.mrf.mxu0
        %v3159 = vadd.f32 0.0, %v3158
        %3160 = vmatmul.bf16.gmra.mxu0 %v3026
        %v3161 = vpop.f32.mrf.mxu0
        %v3162 = vadd.f32 0.0, %v3161
        %v3163 = vpop.f32.mrf.mxu0
        %3164 = vmatmul.bf16.gmra.mxu0 %v3027
        %v3165 = vpop.f32.mrf.mxu0
        %v3166 = vadd.f32 0.0, %v3165
        %v3167 = vpop.f32.mrf.mxu0
        %v3168 = vadd.f32 0.0, %v3167
        %3169 = vmatmul.bf16.gmra.mxu0 %v3028
        %v3170 = vpop.f32.mrf.mxu0
        %v3171 = vpop.f32.mrf.mxu0
        %v3172 = vadd.f32 0.0, %v3171
        %3173 = vmatmul.bf16.gmra.mxu0 %v3029
        %v3174 = vpop.f32.mrf.mxu0
        %v3175 = vadd.f32 0.0, %v3174
        %v3176 = vpop.f32.mrf.mxu0
        %3177 = vmatmul.bf16.gmra.mxu0 %v3030
        %v3178 = vpop.f32.mrf.mxu0
        %v3179 = vadd.f32 0.0, %v3178
        %v3180 = vpop.f32.mrf.mxu0
        %v3181 = vadd.f32 0.0, %v3180
        %3182 = vmatmul.bf16.gmra.mxu0 %v3031
        %v3183 = vpop.f32.mrf.mxu0
        %v3184 = vpop.f32.mrf.mxu0
        %v3185 = vadd.f32 0.0, %v3184
        %3186 = vmatmul.bf16.gmra.mxu0 %v3032
        %v3187 = vpop.f32.mrf.mxu0
        %v3188 = vadd.f32 0.0, %v3187
        %v3189 = vpop.f32.mrf.mxu0
        %3190 = vmatmul.bf16.gmra.mxu0 %v3033
        %v3191 = vpop.f32.mrf.mxu0
        %v3192 = vadd.f32 0.0, %v3191
        %v3193 = vpop.f32.mrf.mxu0
        %v3194 = vadd.f32 0.0, %v3193
        %3195 = vmatmul.bf16.gmra.mxu0 %v3034
        %v3196 = vpop.f32.mrf.mxu0
        %v3197 = vpop.f32.mrf.mxu0
        %v3198 = vadd.f32 0.0, %v3197
        %3199 = vmatmul.bf16.gmra.mxu0 %v3035
        %v3200 = vpop.f32.mrf.mxu0
        %v3201 = vadd.f32 0.0, %v3200
        %v3202 = vpop.f32.mrf.mxu0
        %3203 = vmatmul.bf16.gmra.mxu0 %v3036
        %v3204 = vpop.f32.mrf.mxu0
        %v3205 = vadd.f32 0.0, %v3204
        %v3206 = vpop.f32.mrf.mxu0
        %v3207 = vadd.f32 0.0, %v3206
        %3208 = vmatmul.bf16.gmra.mxu0 %v3037
        %v3209 = vpop.f32.mrf.mxu0
        %v3210 = vpop.f32.mrf.mxu0
        %v3211 = vadd.f32 0.0, %v3210
        %3212 = vmatmul.bf16.gmra.mxu0 %v3038
        %v3213 = vpop.f32.mrf.mxu0
        %v3214 = vadd.f32 0.0, %v3213
        %v3215 = vpop.f32.mrf.mxu0
        %3216 = vdwg.mxu0
        %v3217 = vadd.f32 %v2935, %v3114
        %v3218 = vadd.f32 %v2936, %v3116
        %v3219 = vadd.f32 %v2937, %v3120
        %v3220 = vadd.f32 %v2938, %v3123
        %v3221 = vadd.f32 %v2939, %v3127
        %v3222 = vadd.f32 %v2940, %v3129
        %v3223 = vadd.f32 %v2941, %v3133
        %v3224 = vadd.f32 %v2942, %v3136
        %v3225 = vadd.f32 %v2943, %v3140
        %v3226 = vadd.f32 %v2944, %v3142
        %v3227 = vadd.f32 %v2945, %v3146
        %v3228 = vadd.f32 %v2946, %v3149
        %v3229 = vadd.f32 %v2947, %v3153
        %v3230 = vadd.f32 %v2948, %v3155
        %v3231 = vadd.f32 %v2949, %v3159
        %v3232 = vadd.f32 %v2950, %v3162
        %v3233 = vadd.f32 %v2951, %v3166
        %v3234 = vadd.f32 %v2952, %v3168
        %v3235 = vadd.f32 %v2953, %v3172
        %v3236 = vadd.f32 %v2954, %v3175
        %v3237 = vadd.f32 %v2955, %v3179
        %v3238 = vadd.f32 %v2956, %v3181
        %v3239 = vadd.f32 %v2957, %v3185
        %v3240 = vadd.f32 %v2958, %v3188
        %v3241 = vadd.f32 %v2959, %v3192
        %v3242 = vadd.f32 %v2960, %v3194
        %v3243 = vadd.f32 %v2961, %v3198
        %v3244 = vadd.f32 %v2962, %v3201
        %v3245 = vadd.f32 %v2963, %v3205
        %v3246 = vadd.f32 %v2964, %v3207
        %v3247 = vadd.f32 %v2965, %v3211
        %v3248 = vadd.f32 %v2966, %v3214
        %v3249 = vadd.f32 %v3217, %v3218
        %v3250 = vadd.f32 %v3249, %v3219
        %v3251 = vadd.f32 %v3250, %v3220
        %v3252 = vadd.f32 %v3251, %v3221
        %v3253 = vadd.f32 %v3252, %v3222
        %v3254 = vadd.f32 %v3253, %v3223
        %v3255 = vadd.f32 %v3254, %v3224
        %v3256 = vadd.f32 %v3255, %v3225
        %v3257 = vadd.f32 %v3256, %v3226
        %v3258 = vadd.f32 %v3257, %v3227
        %v3259 = vadd.f32 %v3258, %v3228
        %v3260 = vadd.f32 %v3259, %v3229
        %v3261 = vadd.f32 %v3260, %v3230
        %v3262 = vadd.f32 %v3261, %v3231
        %v3263 = vadd.f32 %v3262, %v3232
        %v3264 = vadd.f32 %v3263, %v3233
        %v3265 = vadd.f32 %v3264, %v3234
        %v3266 = vadd.f32 %v3265, %v3235
        %v3267 = vadd.f32 %v3266, %v3236
        %v3268 = vadd.f32 %v3267, %v3237
        %v3269 = vadd.f32 %v3268, %v3238
        %v3270 = vadd.f32 %v3269, %v3239
        %v3271 = vadd.f32 %v3270, %v3240
        %v3272 = vadd.f32 %v3271, %v3241
        %v3273 = vadd.f32 %v3272, %v3242
        %v3274 = vadd.f32 %v3273, %v3243
        %v3275 = vadd.f32 %v3274, %v3244
        %v3276 = vadd.f32 %v3275, %v3245
        %v3277 = vadd.f32 %v3276, %v3246
        %v3278 = vadd.f32 %v3277, %v3247
        %v3279 = vadd.f32 %v3278, %v3248
        %v3280 = vrot.slane %v3279, 4
        %v3281 = vadd.f32 %v3279, %v3280
        %v3282 = vrot.slane %v3281, 2
        %v3283 = vadd.f32 %v3281, %v3282
        %v3284 = vrot.slane %v3283, 1
        %v3285 = vadd.f32 %v3283, %v3284
        %v3286 = vmul.f32 %v3217, %v3217
        %v3287 = vmul.f32 %v3218, %v3218
        %v3288 = vmul.f32 %v3219, %v3219
        %v3289 = vmul.f32 %v3220, %v3220
        %v3290 = vmul.f32 %v3221, %v3221
        %v3291 = vmul.f32 %v3222, %v3222
        %v3292 = vmul.f32 %v3223, %v3223
        %v3293 = vmul.f32 %v3224, %v3224
        %v3294 = vmul.f32 %v3225, %v3225
        %v3295 = vmul.f32 %v3226, %v3226
        %v3296 = vmul.f32 %v3227, %v3227
        %v3297 = vmul.f32 %v3228, %v3228
        %v3298 = vmul.f32 %v3229, %v3229
        %v3299 = vmul.f32 %v3230, %v3230
        %v3300 = vmul.f32 %v3231, %v3231
        %v3301 = vmul.f32 %v3232, %v3232
        %v3302 = vmul.f32 %v3233, %v3233
        %v3303 = vmul.f32 %v3234, %v3234
        %v3304 = vmul.f32 %v3235, %v3235
        %v3305 = vmul.f32 %v3236, %v3236
        %v3306 = vmul.f32 %v3237, %v3237
        %v3307 = vmul.f32 %v3238, %v3238
        %v3308 = vmul.f32 %v3239, %v3239
        %v3309 = vmul.f32 %v3240, %v3240
        %v3310 = vmul.f32 %v3241, %v3241
        %v3311 = vmul.f32 %v3242, %v3242
        %v3312 = vmul.f32 %v3243, %v3243
        %v3313 = vmul.f32 %v3244, %v3244
        %v3314 = vmul.f32 %v3245, %v3245
        %v3315 = vmul.f32 %v3246, %v3246
        %v3316 = vmul.f32 %v3247, %v3247
        %v3317 = vmul.f32 %v3248, %v3248
        %v3318 = vadd.f32 %v3286, %v3287
        %v3319 = vadd.f32 %v3318, %v3288
        %v3320 = vadd.f32 %v3319, %v3289
        %v3321 = vadd.f32 %v3320, %v3290
        %v3322 = vadd.f32 %v3321, %v3291
        %v3323 = vadd.f32 %v3322, %v3292
        %v3324 = vadd.f32 %v3323, %v3293
        %v3325 = vadd.f32 %v3324, %v3294
        %v3326 = vadd.f32 %v3325, %v3295
        %v3327 = vadd.f32 %v3326, %v3296
        %v3328 = vadd.f32 %v3327, %v3297
        %v3329 = vadd.f32 %v3328, %v3298
        %v3330 = vadd.f32 %v3329, %v3299
        %v3331 = vadd.f32 %v3330, %v3300
        %v3332 = vadd.f32 %v3331, %v3301
        %v3333 = vadd.f32 %v3332, %v3302
        %v3334 = vadd.f32 %v3333, %v3303
        %v3335 = vadd.f32 %v3334, %v3304
        %v3336 = vadd.f32 %v3335, %v3305
        %v3337 = vadd.f32 %v3336, %v3306
        %v3338 = vadd.f32 %v3337, %v3307
        %v3339 = vadd.f32 %v3338, %v3308
        %v3340 = vadd.f32 %v3339, %v3309
        %v3341 = vadd.f32 %v3340, %v3310
        %v3342 = vadd.f32 %v3341, %v3311
        %v3343 = vadd.f32 %v3342, %v3312
        %v3344 = vadd.f32 %v3343, %v3313
        %v3345 = vadd.f32 %v3344, %v3314
        %v3346 = vadd.f32 %v3345, %v3315
        %v3347 = vadd.f32 %v3346, %v3316
        %v3348 = vadd.f32 %v3347, %v3317
        %v3349 = vrot.slane %v3348, 4
        %v3350 = vadd.f32 %v3348, %v3349
        %v3351 = vrot.slane %v3350, 2
        %v3352 = vadd.f32 %v3350, %v3351
        %v3353 = vrot.slane %v3352, 1
        %v3354 = vadd.f32 %v3352, %v3353
        %v3355 = vmul.f32 %v3285, 0.00390625
        %v3356 = vmul.f32 %v3354, 0.00390625
        %v3357 = vmul.f32 %v3355, %v3355
        %v3358 = vsub.f32 %v3356, %v3357
        %v3359 = vmax.f32 %v3358, 0.0
        %v3360 = vadd.f32 %v3359, 1e-05
        %v3361 = vrsqrt.pop %v3360
        %v3362 = vmul.f32 %v3361, %v3360
        %v3363 = vmul.f32 %v3362, %v3361
        %v3364 = vmul.f32 0.5, %v3363
        %v3365 = vsub.f32 1.5, %v3364
        %v3366 = vmul.f32 %v3361, %v3365
        %vm3367 = vweird.f32 %v3360
        %vm3368 = vweird.f32 %v3361
        %vm3369 = vmor %vm3367, %vm3368
        %v3370 = vsel %vm3369, %v3361, %v3366
        %v3371 = vmul.f32 %v3217, %v3370
        %v3372 = vmul.f32 %v3218, %v3370
        %v3373 = vmul.f32 %v3219, %v3370
        %v3374 = vmul.f32 %v3220, %v3370
        %v3375 = vmul.f32 %v3221, %v3370
        %v3376 = vmul.f32 %v3222, %v3370
        %v3377 = vmul.f32 %v3223, %v3370
        %v3378 = vmul.f32 %v3224, %v3370
        %v3379 = vmul.f32 %v3225, %v3370
        %v3380 = vmul.f32 %v3226, %v3370
        %v3381 = vmul.f32 %v3227, %v3370
        %v3382 = vmul.f32 %v3228, %v3370
        %v3383 = vmul.f32 %v3229, %v3370
        %v3384 = vmul.f32 %v3230, %v3370
        %v3385 = vmul.f32 %v3231, %v3370
        %v3386 = vmul.f32 %v3232, %v3370
        %v3387 = vmul.f32 %v3233, %v3370
        %v3388 = vmul.f32 %v3234, %v3370
        %v3389 = vmul.f32 %v3235, %v3370
        %v3390 = vmul.f32 %v3236, %v3370
        %v3391 = vmul.f32 %v3237, %v3370
        %v3392 = vmul.f32 %v3238, %v3370
        %v3393 = vmul.f32 %v3239, %v3370
        %v3394 = vmul.f32 %v3240, %v3370
        %v3395 = vmul.f32 %v3241, %v3370
        %v3396 = vmul.f32 %v3242, %v3370
        %v3397 = vmul.f32 %v3243, %v3370
        %v3398 = vmul.f32 %v3244, %v3370
        %v3399 = vmul.f32 %v3245, %v3370
        %v3400 = vmul.f32 %v3246, %v3370
        %v3401 = vmul.f32 %v3247, %v3370
        %v3402 = vmul.f32 %v3248, %v3370
        %v3403 = vmul.f32 %v3355, %v3370
        %v3404 = vsub.f32 %v3371, %v3403
        %v3405 = vsub.f32 %v3372, %v3403
        %v3406 = vsub.f32 %v3373, %v3403
        %v3407 = vsub.f32 %v3374, %v3403
        %v3408 = vsub.f32 %v3375, %v3403
        %v3409 = vsub.f32 %v3376, %v3403
        %v3410 = vsub.f32 %v3377, %v3403
        %v3411 = vsub.f32 %v3378, %v3403
        %v3412 = vsub.f32 %v3379, %v3403
        %v3413 = vsub.f32 %v3380, %v3403
        %v3414 = vsub.f32 %v3381, %v3403
        %v3415 = vsub.f32 %v3382, %v3403
        %v3416 = vsub.f32 %v3383, %v3403
        %v3417 = vsub.f32 %v3384, %v3403
        %v3418 = vsub.f32 %v3385, %v3403
        %v3419 = vsub.f32 %v3386, %v3403
        %v3420 = vsub.f32 %v3387, %v3403
        %v3421 = vsub.f32 %v3388, %v3403
        %v3422 = vsub.f32 %v3389, %v3403
        %v3423 = vsub.f32 %v3390, %v3403
        %v3424 = vsub.f32 %v3391, %v3403
        %v3425 = vsub.f32 %v3392, %v3403
        %v3426 = vsub.f32 %v3393, %v3403
        %v3427 = vsub.f32 %v3394, %v3403
        %v3428 = vsub.f32 %v3395, %v3403
        %v3429 = vsub.f32 %v3396, %v3403
        %v3430 = vsub.f32 %v3397, %v3403
        %v3431 = vsub.f32 %v3398, %v3403
        %v3432 = vsub.f32 %v3399, %v3403
        %v3433 = vsub.f32 %v3400, %v3403
        %v3434 = vsub.f32 %v3401, %v3403
        %v3435 = vsub.f32 %v3402, %v3403
        %v3436 = vmax.f32 %v3404, 0.0
        %v3437 = vmax.f32 %v3405, 0.0
        %v3438 = vmax.f32 %v3406, 0.0
        %v3439 = vmax.f32 %v3407, 0.0
        %v3440 = vmax.f32 %v3408, 0.0
        %v3441 = vmax.f32 %v3409, 0.0
        %v3442 = vmax.f32 %v3410, 0.0
        %v3443 = vmax.f32 %v3411, 0.0
        %v3444 = vmax.f32 %v3412, 0.0
        %v3445 = vmax.f32 %v3413, 0.0
        %v3446 = vmax.f32 %v3414, 0.0
        %v3447 = vmax.f32 %v3415, 0.0
        %v3448 = vmax.f32 %v3416, 0.0
        %v3449 = vmax.f32 %v3417, 0.0
        %v3450 = vmax.f32 %v3418, 0.0
        %v3451 = vmax.f32 %v3419, 0.0
        %v3452 = vmax.f32 %v3420, 0.0
        %v3453 = vmax.f32 %v3421, 0.0
        %v3454 = vmax.f32 %v3422, 0.0
        %v3455 = vmax.f32 %v3423, 0.0
        %v3456 = vmax.f32 %v3424, 0.0
        %v3457 = vmax.f32 %v3425, 0.0
        %v3458 = vmax.f32 %v3426, 0.0
        %v3459 = vmax.f32 %v3427, 0.0
        %v3460 = vmax.f32 %v3428, 0.0
        %v3461 = vmax.f32 %v3429, 0.0
        %v3462 = vmax.f32 %v3430, 0.0
        %v3463 = vmax.f32 %v3431, 0.0
        %v3464 = vmax.f32 %v3432, 0.0
        %v3465 = vmax.f32 %v3433, 0.0
        %v3466 = vmax.f32 %v3434, 0.0
        %v3467 = vmax.f32 %v3435, 0.0
        %v3468 = vpack.c.bf16 %v3437, %v3436
        %v3469 = vpack.c.bf16 %v3439, %v3438
        %v3470 = vpack.c.bf16 %v3441, %v3440
        %v3471 = vpack.c.bf16 %v3443, %v3442
        %v3472 = vpack.c.bf16 %v3445, %v3444
        %v3473 = vpack.c.bf16 %v3447, %v3446
        %v3474 = vpack.c.bf16 %v3449, %v3448
        %v3475 = vpack.c.bf16 %v3451, %v3450
        %v3476 = vpack.c.bf16 %v3453, %v3452
        %v3477 = vpack.c.bf16 %v3455, %v3454
        %v3478 = vpack.c.bf16 %v3457, %v3456
        %v3479 = vpack.c.bf16 %v3459, %v3458
        %v3480 = vpack.c.bf16 %v3461, %v3460
        %v3481 = vpack.c.bf16 %v3463, %v3462
        %v3482 = vpack.c.bf16 %v3465, %v3464
        %v3483 = vpack.c.bf16 %v3467, %v3466
        %v3484 = vld [vmem:[#allocation9] sm:$0xf]
        %v3485 = vld [vmem:[#allocation9 + $0x4] sm:$0xf]
        %v3486 = vld [vmem:[#allocation9 + $0x8] sm:$0xf]
        %v3487 = vld [vmem:[#allocation9 + $0xc] sm:$0xf]
        %v3488 = vld [vmem:[#allocation9 + $0x10] sm:$0xf]
        %v3489 = vld [vmem:[#allocation9 + $0x14] sm:$0xf]
        %v3490 = vld [vmem:[#allocation9 + $0x18] sm:$0xf]
        %v3491 = vld [vmem:[#allocation9 + $0x1c] sm:$0xf]
        %v3492 = vld [vmem:[#allocation9 + $0x20] sm:$0xf]
        %v3493 = vld [vmem:[#allocation9 + $0x24] sm:$0xf]
        %v3494 = vld [vmem:[#allocation9 + $0x28] sm:$0xf]
        %v3495 = vld [vmem:[#allocation9 + $0x2c] sm:$0xf]
        %v3496 = vld [vmem:[#allocation9 + $0x30] sm:$0xf]
        %v3497 = vld [vmem:[#allocation9 + $0x34] sm:$0xf]
        %v3498 = vld [vmem:[#allocation9 + $0x38] sm:$0xf]
        %v3499 = vld [vmem:[#allocation9 + $0x3c] sm:$0xf]
        %v3516 = vunpack.c.l.b16 %v3484
        %v3517 = vunpack.c.l.b16 %v3485
        %v3518 = vunpack.c.l.b16 %v3486
        %v3519 = vunpack.c.l.b16 %v3487
        %v3520 = vunpack.c.l.b16 %v3488
        %v3521 = vunpack.c.l.b16 %v3489
        %v3522 = vunpack.c.l.b16 %v3490
        %v3523 = vunpack.c.l.b16 %v3491
        %v3524 = vunpack.c.l.b16 %v3492
        %v3525 = vunpack.c.l.b16 %v3493
        %v3526 = vunpack.c.l.b16 %v3494
        %v3527 = vunpack.c.l.b16 %v3495
        %v3528 = vunpack.c.l.b16 %v3496
        %v3529 = vunpack.c.l.b16 %v3497
        %v3530 = vunpack.c.l.b16 %v3498
        %v3531 = vunpack.c.l.b16 %v3499
        %v3532 = vpack.c.b16 %v3517, %v3516
        %v3533 = vpack.c.b16 %v3519, %v3518
        %v3534 = vpack.c.b16 %v3521, %v3520
        %v3535 = vpack.c.b16 %v3523, %v3522
        %v3536 = vpack.c.b16 %v3525, %v3524
        %v3537 = vpack.c.b16 %v3527, %v3526
        %v3538 = vpack.c.b16 %v3529, %v3528
        %v3539 = vpack.c.b16 %v3531, %v3530
        %3548 = vmatpush.bf16.msra.mxu0 %v3539
        %3549 = vmatpush.bf16.msra.mxu0 %v3538
        %3550 = vmatpush.bf16.msra.mxu0 %v3537
        %3551 = vmatpush.bf16.msra.mxu0 %v3536
        %3552 = vmatpush.bf16.msra.mxu0 %v3535
        %3553 = vmatpush.bf16.msra.mxu0 %v3534
        %3554 = vmatpush.bf16.msra.mxu0 %v3533
        %3555 = vmatpush.bf16.msra.mxu0 %v3532
        %3556 = vmatmul.bf16.gmra.mxu0 %v3468
        %v3557 = vpop.f32.mrf.mxu0
        %v3558 = vadd.f32 0.0, %v3557
        %v3559 = vpop.f32.mrf.mxu0
        %v3560 = vadd.f32 0.0, %v3559
        %3561 = vmatmul.bf16.gmra.mxu0 %v3469
        %v3562 = vpop.f32.mrf.mxu0
        %v3563 = vadd.f32 0.0, %v3562
        %v3564 = vpop.f32.mrf.mxu0
        %v3565 = vadd.f32 0.0, %v3564
        %3566 = vmatmul.bf16.gmra.mxu0 %v3470
        %v3567 = vpop.f32.mrf.mxu0
        %v3568 = vadd.f32 0.0, %v3567
        %v3569 = vpop.f32.mrf.mxu0
        %v3570 = vadd.f32 0.0, %v3569
        %3571 = vmatmul.bf16.gmra.mxu0 %v3471
        %v3572 = vpop.f32.mrf.mxu0
        %v3573 = vadd.f32 0.0, %v3572
        %v3574 = vpop.f32.mrf.mxu0
        %v3575 = vadd.f32 0.0, %v3574
        %3576 = vmatmul.bf16.gmra.mxu0 %v3472
        %v3577 = vpop.f32.mrf.mxu0
        %v3578 = vadd.f32 0.0, %v3577
        %v3579 = vpop.f32.mrf.mxu0
        %v3580 = vadd.f32 0.0, %v3579
        %3581 = vmatmul.bf16.gmra.mxu0 %v3473
        %v3582 = vpop.f32.mrf.mxu0
        %v3583 = vadd.f32 0.0, %v3582
        %v3584 = vpop.f32.mrf.mxu0
        %v3585 = vadd.f32 0.0, %v3584
        %3586 = vmatmul.bf16.gmra.mxu0 %v3474
        %v3587 = vpop.f32.mrf.mxu0
        %v3588 = vadd.f32 0.0, %v3587
        %v3589 = vpop.f32.mrf.mxu0
        %v3590 = vadd.f32 0.0, %v3589
        %3591 = vmatmul.bf16.gmra.mxu0 %v3475
        %v3592 = vpop.f32.mrf.mxu0
        %v3593 = vadd.f32 0.0, %v3592
        %v3594 = vpop.f32.mrf.mxu0
        %v3595 = vadd.f32 0.0, %v3594
        %3596 = vmatmul.bf16.gmra.mxu0 %v3476
        %v3597 = vpop.f32.mrf.mxu0
        %v3598 = vadd.f32 0.0, %v3597
        %v3599 = vpop.f32.mrf.mxu0
        %v3600 = vadd.f32 0.0, %v3599
        %3601 = vmatmul.bf16.gmra.mxu0 %v3477
        %v3602 = vpop.f32.mrf.mxu0
        %v3603 = vadd.f32 0.0, %v3602
        %v3604 = vpop.f32.mrf.mxu0
        %v3605 = vadd.f32 0.0, %v3604
        %3606 = vmatmul.bf16.gmra.mxu0 %v3478
        %v3607 = vpop.f32.mrf.mxu0
        %v3608 = vadd.f32 0.0, %v3607
        %v3609 = vpop.f32.mrf.mxu0
        %v3610 = vadd.f32 0.0, %v3609
        %3611 = vmatmul.bf16.gmra.mxu0 %v3479
        %v3612 = vpop.f32.mrf.mxu0
        %v3613 = vadd.f32 0.0, %v3612
        %v3614 = vpop.f32.mrf.mxu0
        %v3615 = vadd.f32 0.0, %v3614
        %3616 = vmatmul.bf16.gmra.mxu0 %v3480
        %v3617 = vpop.f32.mrf.mxu0
        %v3618 = vadd.f32 0.0, %v3617
        %v3619 = vpop.f32.mrf.mxu0
        %v3620 = vadd.f32 0.0, %v3619
        %3621 = vmatmul.bf16.gmra.mxu0 %v3481
        %v3622 = vpop.f32.mrf.mxu0
        %v3623 = vadd.f32 0.0, %v3622
        %v3624 = vpop.f32.mrf.mxu0
        %v3625 = vadd.f32 0.0, %v3624
        %3626 = vmatmul.bf16.gmra.mxu0 %v3482
        %v3627 = vpop.f32.mrf.mxu0
        %v3628 = vadd.f32 0.0, %v3627
        %v3629 = vpop.f32.mrf.mxu0
        %v3630 = vadd.f32 0.0, %v3629
        %3631 = vmatmul.bf16.gmra.mxu0 %v3483
        %v3632 = vpop.f32.mrf.mxu0
        %v3633 = vadd.f32 0.0, %v3632
        %v3634 = vpop.f32.mrf.mxu0
        %v3635 = vadd.f32 0.0, %v3634
        %3636 = vdwg.mxu0
        %v3637 = vadd.f32 %v3558, %v3560
        %v3638 = vadd.f32 %v3637, %v3563
        %v3639 = vadd.f32 %v3638, %v3565
        %v3640 = vadd.f32 %v3639, %v3568
        %v3641 = vadd.f32 %v3640, %v3570
        %v3642 = vadd.f32 %v3641, %v3573
        %v3643 = vadd.f32 %v3642, %v3575
        %v3644 = vadd.f32 %v3643, %v3578
        %v3645 = vadd.f32 %v3644, %v3580
        %v3646 = vadd.f32 %v3645, %v3583
        %v3647 = vadd.f32 %v3646, %v3585
        %v3648 = vadd.f32 %v3647, %v3588
        %v3649 = vadd.f32 %v3648, %v3590
        %v3650 = vadd.f32 %v3649, %v3593
        %v3651 = vadd.f32 %v3650, %v3595
        %v3652 = vadd.f32 %v3651, %v3598
        %v3653 = vadd.f32 %v3652, %v3600
        %v3654 = vadd.f32 %v3653, %v3603
        %v3655 = vadd.f32 %v3654, %v3605
        %v3656 = vadd.f32 %v3655, %v3608
        %v3657 = vadd.f32 %v3656, %v3610
        %v3658 = vadd.f32 %v3657, %v3613
        %v3659 = vadd.f32 %v3658, %v3615
        %v3660 = vadd.f32 %v3659, %v3618
        %v3661 = vadd.f32 %v3660, %v3620
        %v3662 = vadd.f32 %v3661, %v3623
        %v3663 = vadd.f32 %v3662, %v3625
        %v3664 = vadd.f32 %v3663, %v3628
        %v3665 = vadd.f32 %v3664, %v3630
        %v3666 = vadd.f32 %v3665, %v3633
        %v3667 = vadd.f32 %v3666, %v3635
        %v3668 = vrot.slane %v3667, 4
        %v3669 = vadd.f32 %v3667, %v3668
        %v3670 = vrot.slane %v3669, 2
        %v3671 = vadd.f32 %v3669, %v3670
        %v3672 = vrot.slane %v3671, 1
        %v3673 = vadd.f32 %v3671, %v3672
        %v3674 = vmul.f32 %v3558, %v3558
        %v3675 = vmul.f32 %v3560, %v3560
        %v3676 = vmul.f32 %v3563, %v3563
        %v3677 = vmul.f32 %v3565, %v3565
        %v3678 = vmul.f32 %v3568, %v3568
        %v3679 = vmul.f32 %v3570, %v3570
        %v3680 = vmul.f32 %v3573, %v3573
        %v3681 = vmul.f32 %v3575, %v3575
        %v3682 = vmul.f32 %v3578, %v3578
        %v3683 = vmul.f32 %v3580, %v3580
        %v3684 = vmul.f32 %v3583, %v3583
        %v3685 = vmul.f32 %v3585, %v3585
        %v3686 = vmul.f32 %v3588, %v3588
        %v3687 = vmul.f32 %v3590, %v3590
        %v3688 = vmul.f32 %v3593, %v3593
        %v3689 = vmul.f32 %v3595, %v3595
        %v3690 = vmul.f32 %v3598, %v3598
        %v3691 = vmul.f32 %v3600, %v3600
        %v3692 = vmul.f32 %v3603, %v3603
        %v3693 = vmul.f32 %v3605, %v3605
        %v3694 = vmul.f32 %v3608, %v3608
        %v3695 = vmul.f32 %v3610, %v3610
        %v3696 = vmul.f32 %v3613, %v3613
        %v3697 = vmul.f32 %v3615, %v3615
        %v3698 = vmul.f32 %v3618, %v3618
        %v3699 = vmul.f32 %v3620, %v3620
        %v3700 = vmul.f32 %v3623, %v3623
        %v3701 = vmul.f32 %v3625, %v3625
        %v3702 = vmul.f32 %v3628, %v3628
        %v3703 = vmul.f32 %v3630, %v3630
        %v3704 = vmul.f32 %v3633, %v3633
        %v3705 = vmul.f32 %v3635, %v3635
        %v3706 = vadd.f32 %v3674, %v3675
        %v3707 = vadd.f32 %v3706, %v3676
        %v3708 = vadd.f32 %v3707, %v3677
        %v3709 = vadd.f32 %v3708, %v3678
        %v3710 = vadd.f32 %v3709, %v3679
        %v3711 = vadd.f32 %v3710, %v3680
        %v3712 = vadd.f32 %v3711, %v3681
        %v3713 = vadd.f32 %v3712, %v3682
        %v3714 = vadd.f32 %v3713, %v3683
        %v3715 = vadd.f32 %v3714, %v3684
        %v3716 = vadd.f32 %v3715, %v3685
        %v3717 = vadd.f32 %v3716, %v3686
        %v3718 = vadd.f32 %v3717, %v3687
        %v3719 = vadd.f32 %v3718, %v3688
        %v3720 = vadd.f32 %v3719, %v3689
        %v3721 = vadd.f32 %v3720, %v3690
        %v3722 = vadd.f32 %v3721, %v3691
        %v3723 = vadd.f32 %v3722, %v3692
        %v3724 = vadd.f32 %v3723, %v3693
        %v3725 = vadd.f32 %v3724, %v3694
        %v3726 = vadd.f32 %v3725, %v3695
        %v3727 = vadd.f32 %v3726, %v3696
        %v3728 = vadd.f32 %v3727, %v3697
        %v3729 = vadd.f32 %v3728, %v3698
        %v3730 = vadd.f32 %v3729, %v3699
        %v3731 = vadd.f32 %v3730, %v3700
        %v3732 = vadd.f32 %v3731, %v3701
        %v3733 = vadd.f32 %v3732, %v3702
        %v3734 = vadd.f32 %v3733, %v3703
        %v3735 = vadd.f32 %v3734, %v3704
        %v3736 = vadd.f32 %v3735, %v3705
        %v3737 = vrot.slane %v3736, 4
        %v3738 = vadd.f32 %v3736, %v3737
        %v3739 = vrot.slane %v3738, 2
        %v3740 = vadd.f32 %v3738, %v3739
        %v3741 = vrot.slane %v3740, 1
        %v3742 = vadd.f32 %v3740, %v3741
        %v3743 = vmul.f32 %v3673, 0.00390625
        %v3744 = vmul.f32 %v3742, 0.00390625
        %v3745 = vmul.f32 %v3743, %v3743
        %v3746 = vsub.f32 %v3744, %v3745
        %v3747 = vmax.f32 %v3746, 0.0
        %v3748 = vadd.f32 %v3747, 1e-05
        %v3749 = vrsqrt.pop %v3748
        %v3750 = vmul.f32 %v3749, %v3748
        %v3751 = vmul.f32 %v3750, %v3749
        %v3752 = vmul.f32 0.5, %v3751
        %v3753 = vsub.f32 1.5, %v3752
        %v3754 = vmul.f32 %v3749, %v3753
        %vm3755 = vweird.f32 %v3748
        %vm3756 = vweird.f32 %v3749
        %vm3757 = vmor %vm3755, %vm3756
        %v3758 = vsel %vm3757, %v3749, %v3754
        %v3759 = vmul.f32 %v3558, %v3758
        %v3760 = vmul.f32 %v3560, %v3758
        %v3761 = vmul.f32 %v3563, %v3758
        %v3762 = vmul.f32 %v3565, %v3758
        %v3763 = vmul.f32 %v3568, %v3758
        %v3764 = vmul.f32 %v3570, %v3758
        %v3765 = vmul.f32 %v3573, %v3758
        %v3766 = vmul.f32 %v3575, %v3758
        %v3767 = vmul.f32 %v3578, %v3758
        %v3768 = vmul.f32 %v3580, %v3758
        %v3769 = vmul.f32 %v3583, %v3758
        %v3770 = vmul.f32 %v3585, %v3758
        %v3771 = vmul.f32 %v3588, %v3758
        %v3772 = vmul.f32 %v3590, %v3758
        %v3773 = vmul.f32 %v3593, %v3758
        %v3774 = vmul.f32 %v3595, %v3758
        %v3775 = vmul.f32 %v3598, %v3758
        %v3776 = vmul.f32 %v3600, %v3758
        %v3777 = vmul.f32 %v3603, %v3758
        %v3778 = vmul.f32 %v3605, %v3758
        %v3779 = vmul.f32 %v3608, %v3758
        %v3780 = vmul.f32 %v3610, %v3758
        %v3781 = vmul.f32 %v3613, %v3758
        %v3782 = vmul.f32 %v3615, %v3758
        %v3783 = vmul.f32 %v3618, %v3758
        %v3784 = vmul.f32 %v3620, %v3758
        %v3785 = vmul.f32 %v3623, %v3758
        %v3786 = vmul.f32 %v3625, %v3758
        %v3787 = vmul.f32 %v3628, %v3758
        %v3788 = vmul.f32 %v3630, %v3758
        %v3789 = vmul.f32 %v3633, %v3758
        %v3790 = vmul.f32 %v3635, %v3758
        %v3791 = vmul.f32 %v3743, %v3758
        %v3792 = vsub.f32 %v3759, %v3791
        %v3793 = vsub.f32 %v3760, %v3791
        %v3794 = vsub.f32 %v3761, %v3791
        %v3795 = vsub.f32 %v3762, %v3791
        %v3796 = vsub.f32 %v3763, %v3791
        %v3797 = vsub.f32 %v3764, %v3791
        %v3798 = vsub.f32 %v3765, %v3791
        %v3799 = vsub.f32 %v3766, %v3791
        %v3800 = vsub.f32 %v3767, %v3791
        %v3801 = vsub.f32 %v3768, %v3791
        %v3802 = vsub.f32 %v3769, %v3791
        %v3803 = vsub.f32 %v3770, %v3791
        %v3804 = vsub.f32 %v3771, %v3791
        %v3805 = vsub.f32 %v3772, %v3791
        %v3806 = vsub.f32 %v3773, %v3791
        %v3807 = vsub.f32 %v3774, %v3791
        %v3808 = vsub.f32 %v3775, %v3791
        %v3809 = vsub.f32 %v3776, %v3791
        %v3810 = vsub.f32 %v3777, %v3791
        %v3811 = vsub.f32 %v3778, %v3791
        %v3812 = vsub.f32 %v3779, %v3791
        %v3813 = vsub.f32 %v3780, %v3791
        %v3814 = vsub.f32 %v3781, %v3791
        %v3815 = vsub.f32 %v3782, %v3791
        %v3816 = vsub.f32 %v3783, %v3791
        %v3817 = vsub.f32 %v3784, %v3791
        %v3818 = vsub.f32 %v3785, %v3791
        %v3819 = vsub.f32 %v3786, %v3791
        %v3820 = vsub.f32 %v3787, %v3791
        %v3821 = vsub.f32 %v3788, %v3791
        %v3822 = vsub.f32 %v3789, %v3791
        %v3823 = vsub.f32 %v3790, %v3791
        %v3824 = vadd.f32 %v268, %v3792
        %v3825 = vadd.f32 %v269, %v3793
        %v3826 = vadd.f32 %v270, %v3794
        %v3827 = vadd.f32 %v271, %v3795
        %v3828 = vadd.f32 %v272, %v3796
        %v3829 = vadd.f32 %v273, %v3797
        %v3830 = vadd.f32 %v274, %v3798
        %v3831 = vadd.f32 %v275, %v3799
        %v3832 = vadd.f32 %v276, %v3800
        %v3833 = vadd.f32 %v277, %v3801
        %v3834 = vadd.f32 %v278, %v3802
        %v3835 = vadd.f32 %v279, %v3803
        %v3836 = vadd.f32 %v280, %v3804
        %v3837 = vadd.f32 %v281, %v3805
        %v3838 = vadd.f32 %v282, %v3806
        %v3839 = vadd.f32 %v283, %v3807
        %v3840 = vadd.f32 %v284, %v3808
        %v3841 = vadd.f32 %v285, %v3809
        %v3842 = vadd.f32 %v286, %v3810
        %v3843 = vadd.f32 %v287, %v3811
        %v3844 = vadd.f32 %v288, %v3812
        %v3845 = vadd.f32 %v289, %v3813
        %v3846 = vadd.f32 %v290, %v3814
        %v3847 = vadd.f32 %v291, %v3815
        %v3848 = vadd.f32 %v292, %v3816
        %v3849 = vadd.f32 %v293, %v3817
        %v3850 = vadd.f32 %v294, %v3818
        %v3851 = vadd.f32 %v295, %v3819
        %v3852 = vadd.f32 %v296, %v3820
        %v3853 = vadd.f32 %v297, %v3821
        %v3854 = vadd.f32 %v298, %v3822
        %v3855 = vadd.f32 %v299, %v3823
        %3856 = vst [vmem:[%s267] sm:$0xff] %v3824
        %3857 = vst [vmem:[%s267 + $0x8] sm:$0xff] %v3825
        %3858 = vst [vmem:[%s267 + $0x10] sm:$0xff] %v3826
        %3859 = vst [vmem:[%s267 + $0x18] sm:$0xff] %v3827
        %3860 = vst [vmem:[%s267 + $0x20] sm:$0xff] %v3828
        %3861 = vst [vmem:[%s267 + $0x28] sm:$0xff] %v3829
        %3862 = vst [vmem:[%s267 + $0x30] sm:$0xff] %v3830
        %3863 = vst [vmem:[%s267 + $0x38] sm:$0xff] %v3831
        %3864 = vst [vmem:[%s267 + $0x40] sm:$0xff] %v3832
        %3865 = vst [vmem:[%s267 + $0x48] sm:$0xff] %v3833
        %3866 = vst [vmem:[%s267 + $0x50] sm:$0xff] %v3834
        %3867 = vst [vmem:[%s267 + $0x58] sm:$0xff] %v3835
        %3868 = vst [vmem:[%s267 + $0x60] sm:$0xff] %v3836
        %3869 = vst [vmem:[%s267 + $0x68] sm:$0xff] %v3837
        %3870 = vst [vmem:[%s267 + $0x70] sm:$0xff] %v3838
        %3871 = vst [vmem:[%s267 + $0x78] sm:$0xff] %v3839
        %3872 = vst [vmem:[%s267 + $0x80] sm:$0xff] %v3840
        %3873 = vst [vmem:[%s267 + $0x88] sm:$0xff] %v3841
        %3874 = vst [vmem:[%s267 + $0x90] sm:$0xff] %v3842
        %3875 = vst [vmem:[%s267 + $0x98] sm:$0xff] %v3843
        %3876 = vst [vmem:[%s267 + $0xa0] sm:$0xff] %v3844
        %3877 = vst [vmem:[%s267 + $0xa8] sm:$0xff] %v3845
        %3878 = vst [vmem:[%s267 + $0xb0] sm:$0xff] %v3846
        %3879 = vst [vmem:[%s267 + $0xb8] sm:$0xff] %v3847
        %3880 = vst [vmem:[%s267 + $0xc0] sm:$0xff] %v3848
        %3881 = vst [vmem:[%s267 + $0xc8] sm:$0xff] %v3849
        %3882 = vst [vmem:[%s267 + $0xd0] sm:$0xff] %v3850
        %3883 = vst [vmem:[%s267 + $0xd8] sm:$0xff] %v3851
        %3884 = vst [vmem:[%s267 + $0xe0] sm:$0xff] %v3852
        %3885 = vst [vmem:[%s267 + $0xe8] sm:$0xff] %v3853
        %3886 = vst [vmem:[%s267 + $0xf0] sm:$0xff] %v3854
        %3887 = vst [vmem:[%s267 + $0xf8] sm:$0xff] %v3855
        %s3888 = sand.u32 %s120, 1
        %s3889 = scalar_lea.sflag [#allocation5], %s3888
        %s3890 = sand.u32 %s120, 1
        %s3891 = smul.addr %s3890, 256
        %s3892 = scalar_lea.vmem [#allocation11], %s3891
        // Predicated region
        $region53: #{tpu_custom_call.1} parent=35 // pred_check
          %p3893 = pneg %p130
        $region54: #{tpu_custom_call.1} parent=35 // pred_check_branch
          %3895 = sbr.rel (%p3893) target = $region56
        $region55: #{tpu_custom_call.1} parent=35 // pred_region
          %3897 = vsyncadd %s3889, 0
          %s3898 = smul.addr %s23, 32
          %s3899 = smul.addr %s3898, 8
          %s3900 = scalar_lea.hbm %s4, %s3899
          %s3901 = sshll.u32 %s3892, 4
          %s3902 = int_to_ptr.vmem [resolvable:$true] %s3901
          %s3903 = sshll.u32 %s3900, 4
          %s3904 = int_to_ptr.hbm [resolvable:$true] %s3903
          %3909 = dma.vmem_to_hbm [thread:$0]  %s3902, 4096, %s3904, %s3889, 128, 128, 8
        $region56: #{tpu_custom_call.1} parent=35 // pred_fallthru
          _
      $region36: #{tpu_custom_call.1} parent=5 // pred_fallthru
        _
      %p3910 = scmp.le.s32.totalorder 2, %s18
      // Predicated region
      $region57: #{tpu_custom_call.1} parent=5 // pred_check
        %p3911 = pneg %p3910
      $region58: #{tpu_custom_call.1} parent=5 // pred_check_branch
        %3913 = sbr.rel (%p3911) target = $region60
      $region59: #{tpu_custom_call.1} parent=5 // pred_region
        %s3914 = ssub.s32 %s18, 2
        // Predicated region
        $region61: #{tpu_custom_call.1} parent=59 // pred_check
          %p3915 = pneg %p136
        $region62: #{tpu_custom_call.1} parent=59 // pred_check_branch
          %3917 = sbr.rel (%p3915) target = $region64
        $region63: #{tpu_custom_call.1} parent=59 // pred_region
          %s3918 = sand.u32 %s121, 1
          %s3919 = scalar_lea.sflag [#allocation5], %s3918
          %s3920 = sand.u32 %s121, 1
          %s3921 = smul.addr %s3920, 256
          %s3922 = scalar_lea.vmem [#allocation11], %s3921
          %3924 = dma.done %s3919, 4096
        $region64: #{tpu_custom_call.1} parent=59 // pred_fallthru
          _
      $region60: #{tpu_custom_call.1} parent=5 // pred_fallthru
        _
    $region6: #{tpu_custom_call.1} parent=1 // loop_footer
      %s22 = sadd.s32 1, %s18
    $region7: #{tpu_custom_call.1} parent=1 // loop_footer_branch
      %17 = sbr.rel target = $region3
    $region8: #{tpu_custom_call.1} parent=1 // loop_exit
      _
    %3925 = vsyncpa [#allocation4], 1
    %s3926 = scalar_lea.sflag [#allocation4], 1
    %3927 = vsyncpa %s3926, 1
    %3928 = vsyncpa [#allocation7], 1
    %3929 = vsyncpa [#allocation10], 1
    %3930 = vsyncpa [#allocation5], 1
    %s3931 = scalar_lea.sflag [#allocation5], 1
    %3932 = vsyncpa %s3931, 1

</llo_original>
